<compile_context>
chip_gen: v7x
topology: tpu7x:2x2x1
jax: 0.10.0
libtpu: 0.0.40
codegen_flags: <defaults>
</compile_context>

<pallas_src>
import math

import jax
import jax.numpy as jnp
from jax import lax
from jax.experimental import pallas as pl
from jax.experimental.pallas import tpu as pltpu


def _make_kernel(prenorm, H, dk, dv, neg_inf=-1e9, eps=1e-5):
    """Build the fused decoder-block kernel (one batch element per invocation)."""
    HDk = H * dk
    HDv = H * dv

    def kernel(dec_in_ref, enc_out_ref, dec_mask_ref, dec_enc_mask_ref,
               ln_w_ref, ln_b_ref,
               wq_ref, bq_ref, wkv_ref, bkv_ref, wo_ref, bo_ref,
               w1_ref, b1_ref, w2_ref, b2_ref,
               dec_out_ref, dec_attns_ref, dec_enc_attns_ref,
               ctx_scr_ref):
        f32 = jnp.float32
        bf16 = jnp.bfloat16

        x = dec_in_ref[0].astype(f32)          # (Lq, D)
        enc_b = enc_out_ref[0].astype(bf16)    # (Lk, D) — only ever a KV input
        dec_mask = dec_mask_ref[0]             # (Lq, Lq), 1.0 = masked
        dec_enc_mask = dec_enc_mask_ref[0]     # (Lq, Lk)

        def layernorm(v, i):
            w = ln_w_ref[i:i + 1, :]           # (1, D)
            b = ln_b_ref[i:i + 1, :]           # (1, D)
            mu = jnp.mean(v, axis=-1, keepdims=True)
            # one-pass variance: E[x^2] - mu^2
            var = jnp.mean(v * v, axis=-1, keepdims=True) - mu * mu
            return (v - mu) * lax.rsqrt(var + eps) * w + b

        def mha(xq_b, xkv_b, mask, idx, attn_ref):
            # idx is a Python constant (0 = self, 1 = cross): static ref slices.
            Wq = wq_ref[idx]                   # bf16 (D, H*dk), pre-scaled 1/sqrt(dk)
            Wkv = wkv_ref[idx]                 # bf16 (D, 2*H*dk): [K cols | V cols]
            Wo = wo_ref[idx]                   # bf16 (H*dv, D)
            bq = bq_ref[idx:idx + 1, :]        # f32 (1, H*dk), pre-scaled
            bkv = bkv_ref[idx:idx + 1, :]      # f32 (1, 2*H*dk)
            bo = bo_ref[idx:idx + 1, :]        # f32 (1, D)

            # two projection matmuls (Q; fused K|V): bf16 operands, f32 accumulate
            Q = jnp.dot(xq_b, Wq, preferred_element_type=f32) + bq     # (Lq, H*dk)
            KV = jnp.dot(xkv_b, Wkv, preferred_element_type=f32) + bkv  # (Lk, 2*H*dk)

            Qb = Q.astype(bf16)
            KVb = KV.astype(bf16)
            # additive mask bias, hoisted out of the head loop
            bias = jnp.where(mask > 0.5, neg_inf, 0.0)

            for h in range(H):                 # static unrolled loop over heads
                qh = Qb[:, h * dk:(h + 1) * dk]
                kh = KVb[:, h * dk:(h + 1) * dk]
                vh = KVb[:, HDk + h * dv:HDk + (h + 1) * dv]
                # scores = (q/sqrt(dk)) @ k^T + mask bias  (scale folded into Wq)
                s = lax.dot_general(qh, kh, (((1,), (1,)), ((), ())),
                                    preferred_element_type=f32) + bias
                s = s - jnp.max(s, axis=-1, keepdims=True)
                p = jnp.exp(s)
                # EUP reciprocal instead of VALU divide
                p = p * pl.reciprocal(jnp.sum(p, axis=-1, keepdims=True), approx=True)
                attn_ref[0, h, :, :] = p
                # stage per-head context; single full-depth output projection below
                ctx_scr_ref[:, h * dv:(h + 1) * dv] = jnp.dot(
                    p.astype(bf16), vh, preferred_element_type=f32)

            ctx = ctx_scr_ref[...].astype(bf16)            # (Lq, H*dv)
            return jnp.dot(ctx, Wo, preferred_element_type=f32) + bo

        # ---- self-attention sub-block ----
        if prenorm:
            x = layernorm(x, 0)
        residual = x
        x_b = x.astype(bf16)                  # cast once, reused for Q and KV
        ctx = mha(x_b, x_b, dec_mask, 0, dec_attns_ref)
        dec = layernorm(residual + ctx, 1 if prenorm else 0)

        # ---- cross-attention sub-block ----
        residual = dec
        ctx2 = mha(dec.astype(bf16), enc_b, dec_enc_mask, 1, dec_enc_attns_ref)
        dec = layernorm(residual + ctx2, 2 if prenorm else 1)

        # ---- position-wise FFN sub-block (Conv1d k=1 == feature-dim matmul) ----
        residual = dec
        h1 = jnp.maximum(
            jnp.dot(dec.astype(bf16), w1_ref[...], preferred_element_type=f32)
            + b1_ref[...], 0.0)
        ffn = jnp.dot(h1.astype(bf16), w2_ref[...], preferred_element_type=f32) \
            + b2_ref[...]
        if prenorm:
            dec = residual + ffn
        else:
            dec = layernorm(residual + ffn, 1)  # module reuses norm2 here (reproduced)

        dec_out_ref[0] = dec.astype(dec_out_ref.dtype)

    return kernel


def uni_decoder_block(dec_in, enc_out, dec_mask, dec_enc_mask, params, *,
                      n_heads, prenorm=False):
    B, Lq, D = dec_in.shape
    Lk = enc_out.shape[1]
    H = n_heads
    assert D % H == 0
    dk = dv = D // H
    dff = params["w1"].shape[1]

    bf16 = jnp.bfloat16
    scale = 1.0 / math.sqrt(dk)
    # Host-side weight prep (once per call):
    #   * bf16 cast halves weight DMA bytes / VMEM residency
    #   * 1/sqrt(dk) folded into the Q projection (weight + bias)
    #   * K and V weights concatenated so the kernel does one fused K|V matmul
    wq = (params["wq"] * scale).astype(bf16)                       # (2, D, H*dk)
    bq = params["bq"] * scale                                      # (2, H*dk) f32
    wkv = jnp.concatenate([params["wk"], params["wv"]], axis=-1).astype(bf16)
    bkv = jnp.concatenate([params["bk"], params["bv"]], axis=-1)   # (2, 2*H*dk)
    wo = params["wo"].astype(bf16)
    w1 = params["w1"].astype(bf16)
    w2 = params["w2"].astype(bf16)

    kernel = _make_kernel(prenorm, H, dk, dv)

    bidx3 = lambda b: (b, 0, 0)
    bidx4 = lambda b: (b, 0, 0, 0)
    fix2 = lambda b: (0, 0)
    fix3 = lambda b: (0, 0, 0)

    in_specs = [
        pl.BlockSpec((1, Lq, D), bidx3),          # dec_in
        pl.BlockSpec((1, Lk, D), bidx3),          # enc_out
        pl.BlockSpec((1, Lq, Lq), bidx3),         # dec_mask
        pl.BlockSpec((1, Lq, Lk), bidx3),         # dec_enc_mask
        pl.BlockSpec((3, D), fix2),               # ln_w (norm1/2/3)
        pl.BlockSpec((3, D), fix2),               # ln_b
        pl.BlockSpec((2, D, H * dk), fix3),       # wq (self, cross)   bf16, scaled
        pl.BlockSpec((2, H * dk), fix2),          # bq                 f32, scaled
        pl.BlockSpec((2, D, 2 * H * dk), fix3),   # wkv = [wk | wv]    bf16
        pl.BlockSpec((2, 2 * H * dk), fix2),      # bkv = [bk | bv]
        pl.BlockSpec((2, H * dv, D), fix3),       # wo                 bf16
        pl.BlockSpec((2, D), fix2),               # bo
        pl.BlockSpec((D, dff), fix2),             # w1                 bf16
        pl.BlockSpec((1, dff), fix2),             # b1
        pl.BlockSpec((dff, D), fix2),             # w2                 bf16
        pl.BlockSpec((1, D), fix2),               # b2
    ]
    out_specs = [
        pl.BlockSpec((1, Lq, D), bidx3),
        pl.BlockSpec((1, H, Lq, Lq), bidx4),
        pl.BlockSpec((1, H, Lq, Lk), bidx4),
    ]
    out_shape = [
        jax.ShapeDtypeStruct((B, Lq, D), dec_in.dtype),
        jax.ShapeDtypeStruct((B, H, Lq, Lq), jnp.float32),
        jax.ShapeDtypeStruct((B, H, Lq, Lk), jnp.float32),
    ]

    return pl.pallas_call(
        kernel,
        grid=(B,),
        in_specs=in_specs,
        out_specs=out_specs,
        out_shape=out_shape,
        scratch_shapes=[pltpu.VMEM((Lq, H * dv), jnp.float32)],  # concat-ctx staging
        compiler_params=pltpu.CompilerParams(
            dimension_semantics=("parallel",),       # 2 TCs on v7x shard the batch
            vmem_limit_bytes=64 * 1024 * 1024),      # raise scoped VMEM (v6e default 32MiB)
    )(dec_in, enc_out, dec_mask, dec_enc_mask,
      params["ln_w"], params["ln_b"],
      wq, bq, wkv, bkv, wo, params["bo"],
      w1, params["b1"], w2, params["b2"])


# ----------------------------- pure-JAX reference -----------------------------
def _reference(dec_in, enc_out, dec_mask, dec_enc_mask, params, n_heads, prenorm):
    D = dec_in.shape[-1]
    H = n_heads
    dk = dv = D // H

    def ln(x, i):
        w = params["ln_w"][i]
        b = params["ln_b"][i]
        mu = x.mean(-1, keepdims=True)
        var = ((x - mu) ** 2).mean(-1, keepdims=True)
        return (x - mu) / jnp.sqrt(var + 1e-5) * w + b

    def mha(xq, xkv, mask, i):
        B, Lq, _ = xq.shape
        Lk = xkv.shape[1]
        Q = xq @ params["wq"][i] + params["bq"][i]
        K = xkv @ params["wk"][i] + params["bk"][i]
        V = xkv @ params["wv"][i] + params["bv"][i]
        Q = Q.reshape(B, Lq, H, dk).transpose(0, 2, 1, 3)
        K = K.reshape(B, Lk, H, dk).transpose(0, 2, 1, 3)
        V = V.reshape(B, Lk, H, dv).transpose(0, 2, 1, 3)
        s = jnp.einsum("bhqd,bhkd->bhqk", Q, K) / math.sqrt(dk)
        s = jnp.where(mask[:, None] > 0.5, -1e9, s)
        p = jax.nn.softmax(s, axis=-1)
        ctx = jnp.einsum("bhqk,bhkd->bhqd", p, V)
        ctx = ctx.transpose(0, 2, 1, 3).reshape(B, Lq, H * dv)
        return ctx @ params["wo"][i] + params["bo"][i], p

    x = dec_in
    if prenorm:
        x = ln(x, 0)
    residual = x
    ctx, dec_attns = mha(x, x, dec_mask, 0)
    dec = (residual + ctx) if prenorm else ln(residual + ctx, 0)
    if prenorm:
        dec = ln(dec, 1)
    residual = dec
    ctx2, dec_enc_attns = mha(dec, enc_out, dec_enc_mask, 1)
    dec = (residual + ctx2) if prenorm else ln(residual + ctx2, 1)
    if prenorm:
        dec = ln(dec, 2)
    residual = dec
    h1 = jnp.maximum(dec @ params["w1"] + params["b1"], 0.0)
    ffn = h1 @ params["w2"] + params["b2"]
    dec = (residual + ffn) if prenorm else ln(residual + ffn, 1)
    return dec, dec_attns, dec_enc_attns


if __name__ == "__main__":
    B, Lq, Lk, D, H, DFF = 2, 8, 16, 32, 4, 64

    key = jax.random.PRNGKey(0)
    ks = jax.random.split(key, 14)

    dec_in = jax.random.normal(ks[0], (B, Lq, D), jnp.float32)
    enc_out = jax.random.normal(ks[1], (B, Lk, D), jnp.float32)
    # causal self-attention mask (1.0 = masked), no masking for cross attention
    dec_mask = jnp.broadcast_to(
        jnp.triu(jnp.ones((Lq, Lq), jnp.float32), k=1), (B, Lq, Lq))
    dec_enc_mask = jnp.zeros((B, Lq, Lk), jnp.float32)

    params = {
        "ln_w": jnp.ones((3, D), jnp.float32),
        "ln_b": jnp.zeros((3, D), jnp.float32),
        "wq": 0.1 * jax.random.normal(ks[2], (2, D, D), jnp.float32),
        "bq": 0.01 * jax.random.normal(ks[3], (2, D), jnp.float32),
        "wk": 0.1 * jax.random.normal(ks[4], (2, D, D), jnp.float32),
        "bk": 0.01 * jax.random.normal(ks[5], (2, D), jnp.float32),
        "wv": 0.1 * jax.random.normal(ks[6], (2, D, D), jnp.float32),
        "bv": 0.01 * jax.random.normal(ks[7], (2, D), jnp.float32),
        "wo": 0.1 * jax.random.normal(ks[8], (2, D, D), jnp.float32),
        "bo": 0.01 * jax.random.normal(ks[9], (2, D), jnp.float32),
        "w1": 0.1 * jax.random.normal(ks[10], (D, DFF), jnp.float32),
        "b1": 0.01 * jax.random.normal(ks[11], (1, DFF), jnp.float32),
        "w2": 0.1 * jax.random.normal(ks[12], (DFF, D), jnp.float32),
        "b2": 0.01 * jax.random.normal(ks[13], (1, D), jnp.float32),
    }

    for prenorm in (False, True):
        dec_out, dec_attns, dec_enc_attns = uni_decoder_block(
            dec_in, enc_out, dec_mask, dec_enc_mask, params,
            n_heads=H, prenorm=prenorm)
        jax.block_until_ready((dec_out, dec_attns, dec_enc_attns))

        # correctness check against a pure-JAX f32 reference
        # (tolerance accounts for bf16 MXU operands + approx reciprocal)
        r_out, r_attns, r_enc_attns = _reference(
            dec_in, enc_out, dec_mask, dec_enc_mask, params, H, prenorm)
        assert jnp.allclose(dec_out, r_out, atol=2e-2, rtol=2e-2)
        assert jnp.allclose(dec_attns, r_attns, atol=2e-2, rtol=2e-2)
        assert jnp.allclose(dec_enc_attns, r_enc_attns, atol=2e-2, rtol=2e-2)

    print("KERNEL_OK")
</pallas_src>

<mosaic_0001>
module attributes {stable_mosaic.version = 11 : i64} {
  func.func @kernel(%arg0: i32, %arg1: memref<1x8x32xf32, #tpu.memory_space<vmem>>, %arg2: memref<1x16x32xf32, #tpu.memory_space<vmem>>, %arg3: memref<1x8x8xf32, #tpu.memory_space<vmem>>, %arg4: memref<1x8x16xf32, #tpu.memory_space<vmem>>, %arg5: memref<3x32xf32, #tpu.memory_space<vmem>>, %arg6: memref<3x32xf32, #tpu.memory_space<vmem>>, %arg7: memref<2x32x32xbf16, #tpu.memory_space<vmem>>, %arg8: memref<2x32xf32, #tpu.memory_space<vmem>>, %arg9: memref<2x32x64xbf16, #tpu.memory_space<vmem>>, %arg10: memref<2x64xf32, #tpu.memory_space<vmem>>, %arg11: memref<2x32x32xbf16, #tpu.memory_space<vmem>>, %arg12: memref<2x32xf32, #tpu.memory_space<vmem>>, %arg13: memref<32x64xbf16, #tpu.memory_space<vmem>>, %arg14: memref<1x64xf32, #tpu.memory_space<vmem>>, %arg15: memref<64x32xbf16, #tpu.memory_space<vmem>>, %arg16: memref<1x32xf32, #tpu.memory_space<vmem>>, %arg17: memref<1x8x32xf32, #tpu.memory_space<vmem>>, %arg18: memref<1x4x8x8xf32, #tpu.memory_space<vmem>>, %arg19: memref<1x4x8x16xf32, #tpu.memory_space<vmem>>, %arg20: memref<8x32xf32, #tpu.memory_space<vmem>>) attributes {dimension_semantics = [#tpu.dimension_semantics<parallel>], iteration_bounds = array<i64: 2>, scalar_prefetch = 0 : i64, scratch_operands = 1 : i64, tpu.core_type = #tpu.core_type<tc>, window_params = [{transform_indices = @transform_0, window_bounds = array<i64: 1, 8, 32>}, {transform_indices = @transform_1, window_bounds = array<i64: 1, 16, 32>}, {transform_indices = @transform_2, window_bounds = array<i64: 1, 8, 8>}, {transform_indices = @transform_3, window_bounds = array<i64: 1, 8, 16>}, {pipeline_mode = #tpu.pipeline_mode<synchronous>, transform_indices = @transform_4, window_bounds = array<i64: 3, 32>}, {pipeline_mode = #tpu.pipeline_mode<synchronous>, transform_indices = @transform_5, window_bounds = array<i64: 3, 32>}, {pipeline_mode = #tpu.pipeline_mode<synchronous>, transform_indices = @transform_6, window_bounds = array<i64: 2, 32, 32>}, {pipeline_mode = #tpu.pipeline_mode<synchronous>, transform_indices = @transform_7, window_bounds = array<i64: 2, 32>}, {pipeline_mode = #tpu.pipeline_mode<synchronous>, transform_indices = @transform_8, window_bounds = array<i64: 2, 32, 64>}, {pipeline_mode = #tpu.pipeline_mode<synchronous>, transform_indices = @transform_9, window_bounds = array<i64: 2, 64>}, {pipeline_mode = #tpu.pipeline_mode<synchronous>, transform_indices = @transform_10, window_bounds = array<i64: 2, 32, 32>}, {pipeline_mode = #tpu.pipeline_mode<synchronous>, transform_indices = @transform_11, window_bounds = array<i64: 2, 32>}, {pipeline_mode = #tpu.pipeline_mode<synchronous>, transform_indices = @transform_12, window_bounds = array<i64: 32, 64>}, {pipeline_mode = #tpu.pipeline_mode<synchronous>, transform_indices = @transform_13, window_bounds = array<i64: 1, 64>}, {pipeline_mode = #tpu.pipeline_mode<synchronous>, transform_indices = @transform_14, window_bounds = array<i64: 64, 32>}, {pipeline_mode = #tpu.pipeline_mode<synchronous>, transform_indices = @transform_15, window_bounds = array<i64: 1, 32>}, {transform_indices = @transform_16, window_bounds = array<i64: 1, 8, 32>}, {transform_indices = @transform_17, window_bounds = array<i64: 1, 4, 8, 8>}, {transform_indices = @transform_18, window_bounds = array<i64: 1, 4, 8, 16>}]} {
    %c0 = arith.constant 0 : index
    %c0_0 = arith.constant 0 : index
    %c0_1 = arith.constant 0 : index
    %0 = vector.load %arg1[%c0, %c0_0, %c0_1] : memref<1x8x32xf32, #tpu.memory_space<vmem>>, vector<1x8x32xf32>
    %1 = vector.shape_cast %0 : vector<1x8x32xf32> to vector<8x32xf32>
    %c0_2 = arith.constant 0 : index
    %c0_3 = arith.constant 0 : index
    %c0_4 = arith.constant 0 : index
    %2 = vector.load %arg2[%c0_2, %c0_3, %c0_4] : memref<1x16x32xf32, #tpu.memory_space<vmem>>, vector<1x16x32xf32>
    %3 = vector.shape_cast %2 : vector<1x16x32xf32> to vector<16x32xf32>
    %4 = arith.truncf %3 : vector<16x32xf32> to vector<16x32xbf16>
    %c0_5 = arith.constant 0 : index
    %c0_6 = arith.constant 0 : index
    %c0_7 = arith.constant 0 : index
    %5 = vector.load %arg3[%c0_5, %c0_6, %c0_7] : memref<1x8x8xf32, #tpu.memory_space<vmem>>, vector<1x8x8xf32>
    %6 = vector.shape_cast %5 : vector<1x8x8xf32> to vector<8x8xf32>
    %c0_8 = arith.constant 0 : index
    %c0_9 = arith.constant 0 : index
    %c0_10 = arith.constant 0 : index
    %7 = vector.load %arg4[%c0_8, %c0_9, %c0_10] : memref<1x8x16xf32, #tpu.memory_space<vmem>>, vector<1x8x16xf32>
    %8 = vector.shape_cast %7 : vector<1x8x16xf32> to vector<8x16xf32>
    %9 = arith.truncf %1 : vector<8x32xf32> to vector<8x32xbf16>
    %c0_11 = arith.constant 0 : index
    %c0_12 = arith.constant 0 : index
    %c0_13 = arith.constant 0 : index
    %10 = vector.load %arg7[%c0_11, %c0_12, %c0_13] : memref<2x32x32xbf16, #tpu.memory_space<vmem>>, vector<1x32x32xbf16>
    %11 = vector.shape_cast %10 : vector<1x32x32xbf16> to vector<32x32xbf16>
    %c0_14 = arith.constant 0 : index
    %c0_15 = arith.constant 0 : index
    %c0_16 = arith.constant 0 : index
    %12 = vector.load %arg9[%c0_14, %c0_15, %c0_16] : memref<2x32x64xbf16, #tpu.memory_space<vmem>>, vector<1x32x64xbf16>
    %13 = vector.shape_cast %12 : vector<1x32x64xbf16> to vector<32x64xbf16>
    %c0_17 = arith.constant 0 : index
    %c0_18 = arith.constant 0 : index
    %c0_19 = arith.constant 0 : index
    %14 = vector.load %arg11[%c0_17, %c0_18, %c0_19] : memref<2x32x32xbf16, #tpu.memory_space<vmem>>, vector<1x32x32xbf16>
    %15 = vector.shape_cast %14 : vector<1x32x32xbf16> to vector<32x32xbf16>
    %c0_20 = arith.constant 0 : index
    %c0_21 = arith.constant 0 : index
    %16 = vector.load %arg8[%c0_20, %c0_21] : memref<2x32xf32, #tpu.memory_space<vmem>>, vector<1x32xf32>
    %c0_22 = arith.constant 0 : index
    %c0_23 = arith.constant 0 : index
    %17 = vector.load %arg10[%c0_22, %c0_23] : memref<2x64xf32, #tpu.memory_space<vmem>>, vector<1x64xf32>
    %c0_24 = arith.constant 0 : index
    %c0_25 = arith.constant 0 : index
    %18 = vector.load %arg12[%c0_24, %c0_25] : memref<2x32xf32, #tpu.memory_space<vmem>>, vector<1x32xf32>
    %cst = arith.constant dense<0.000000e+00> : vector<8x32xf32>
    %19 = tpu.matmul %9, %11, %cst {dimension_numbers = #tpu.dot_dimension_numbers<[1], [0], [0], [1], [0, 0, 1, 1], [], []>} : vector<8x32xbf16>, vector<32x32xbf16>, vector<8x32xf32> -> vector<8x32xf32>
    %20 = vector.broadcast %16 : vector<1x32xf32> to vector<8x32xf32>
    %21 = arith.addf %19, %20 : vector<8x32xf32>
    %cst_26 = arith.constant dense<0.000000e+00> : vector<8x64xf32>
    %22 = tpu.matmul %9, %13, %cst_26 {dimension_numbers = #tpu.dot_dimension_numbers<[1], [0], [0], [1], [0, 0, 1, 1], [], []>} : vector<8x32xbf16>, vector<32x64xbf16>, vector<8x64xf32> -> vector<8x64xf32>
    %23 = vector.broadcast %17 : vector<1x64xf32> to vector<8x64xf32>
    %24 = arith.addf %22, %23 : vector<8x64xf32>
    %25 = arith.truncf %21 : vector<8x32xf32> to vector<8x32xbf16>
    %26 = arith.truncf %24 : vector<8x64xf32> to vector<8x64xbf16>
    %cst_27 = arith.constant 5.000000e-01 : f32
    %27 = vector.broadcast %cst_27 : f32 to vector<8x8xf32>
    %28 = arith.cmpf ogt, %6, %27 : vector<8x8xf32>
    %cst_28 = arith.constant -1.000000e+09 : f32
    %cst_29 = arith.constant 0.000000e+00 : f32
    %29 = vector.broadcast %cst_28 : f32 to vector<8x8xf32>
    %30 = vector.broadcast %cst_29 : f32 to vector<8x8xf32>
    %31 = arith.select %28, %29, %30 : vector<8x8xi1>, vector<8x8xf32>
    %32 = vector.extract_strided_slice %25 {offsets = [0, 0], sizes = [8, 8], strides = [1, 1]} : vector<8x32xbf16> to vector<8x8xbf16>
    %33 = vector.extract_strided_slice %26 {offsets = [0, 0], sizes = [8, 8], strides = [1, 1]} : vector<8x64xbf16> to vector<8x8xbf16>
    %34 = vector.extract_strided_slice %26 {offsets = [0, 32], sizes = [8, 8], strides = [1, 1]} : vector<8x64xbf16> to vector<8x8xbf16>
    %cst_30 = arith.constant dense<0.000000e+00> : vector<8x8xf32>
    %35 = tpu.matmul %32, %33, %cst_30 {dimension_numbers = #tpu.dot_dimension_numbers<[1], [1], [0], [0], [0, 0, 1, 0], [], []>} : vector<8x8xbf16>, vector<8x8xbf16>, vector<8x8xf32> -> vector<8x8xf32>
    %36 = arith.addf %35, %31 : vector<8x8xf32>
    %cst_31 = arith.constant dense<0xFF800000> : vector<8xf32>
    %37 = vector.multi_reduction <maximumf>, %36, %cst_31 [1] : vector<8x8xf32> to vector<8xf32>
    %38 = vector.shape_cast %37 : vector<8xf32> to vector<8x1xf32>
    %39 = vector.broadcast %38 : vector<8x1xf32> to vector<8x8xf32>
    %40 = arith.subf %36, %39 : vector<8x8xf32>
    %41 = math.exp %40 : vector<8x8xf32>
    %cst_32 = arith.constant dense<0.000000e+00> : vector<8xf32>
    %42 = vector.multi_reduction <add>, %41, %cst_32 [1] : vector<8x8xf32> to vector<8xf32>
    %43 = vector.shape_cast %42 : vector<8xf32> to vector<8x1xf32>
    %44 = tpu.reciprocal %43 {approx = true} : vector<8x1xf32> -> vector<8x1xf32>
    %45 = vector.broadcast %44 : vector<8x1xf32> to vector<8x8xf32>
    %46 = arith.mulf %41, %45 : vector<8x8xf32>
    %c0_33 = arith.constant 0 : index
    %c0_34 = arith.constant 0 : index
    %c0_35 = arith.constant 0 : index
    %c0_36 = arith.constant 0 : index
    %47 = vector.load %arg18[%c0_33, %c0_34, %c0_35, %c0_36] : memref<1x4x8x8xf32, #tpu.memory_space<vmem>>, vector<1x1x8x8xf32>
    %48 = vector.shape_cast %47 : vector<1x1x8x8xf32> to vector<8x8xf32>
    %49 = vector.shape_cast %46 : vector<8x8xf32> to vector<1x1x8x8xf32>
    tpu.vector_store %arg18[%c0_33, %c0_34, %c0_35, %c0_36], %49 {strides = array<i32>} : memref<1x4x8x8xf32, #tpu.memory_space<vmem>>, vector<1x1x8x8xf32>,
    %50 = arith.truncf %46 : vector<8x8xf32> to vector<8x8xbf16>
    %cst_37 = arith.constant dense<0.000000e+00> : vector<8x8xf32>
    %51 = tpu.matmul %50, %34, %cst_37 {dimension_numbers = #tpu.dot_dimension_numbers<[1], [0], [0], [1], [0, 0, 1, 1], [], []>} : vector<8x8xbf16>, vector<8x8xbf16>, vector<8x8xf32> -> vector<8x8xf32>
    %c0_38 = arith.constant 0 : index
    %c0_39 = arith.constant 0 : index
    %52 = vector.load %arg20[%c0_38, %c0_39] : memref<8x32xf32, #tpu.memory_space<vmem>>, vector<8x8xf32>
    tpu.vector_store %arg20[%c0_38, %c0_39], %51 {strides = array<i32>} : memref<8x32xf32, #tpu.memory_space<vmem>>, vector<8x8xf32>,
    %53 = vector.extract_strided_slice %25 {offsets = [0, 8], sizes = [8, 8], strides = [1, 1]} : vector<8x32xbf16> to vector<8x8xbf16>
    %54 = vector.extract_strided_slice %26 {offsets = [0, 8], sizes = [8, 8], strides = [1, 1]} : vector<8x64xbf16> to vector<8x8xbf16>
    %55 = vector.extract_strided_slice %26 {offsets = [0, 40], sizes = [8, 8], strides = [1, 1]} : vector<8x64xbf16> to vector<8x8xbf16>
    %cst_40 = arith.constant dense<0.000000e+00> : vector<8x8xf32>
    %56 = tpu.matmul %53, %54, %cst_40 {dimension_numbers = #tpu.dot_dimension_numbers<[1], [1], [0], [0], [0, 0, 1, 0], [], []>} : vector<8x8xbf16>, vector<8x8xbf16>, vector<8x8xf32> -> vector<8x8xf32>
    %57 = arith.addf %56, %31 : vector<8x8xf32>
    %cst_41 = arith.constant dense<0xFF800000> : vector<8xf32>
    %58 = vector.multi_reduction <maximumf>, %57, %cst_41 [1] : vector<8x8xf32> to vector<8xf32>
    %59 = vector.shape_cast %58 : vector<8xf32> to vector<8x1xf32>
    %60 = vector.broadcast %59 : vector<8x1xf32> to vector<8x8xf32>
    %61 = arith.subf %57, %60 : vector<8x8xf32>
    %62 = math.exp %61 : vector<8x8xf32>
    %cst_42 = arith.constant dense<0.000000e+00> : vector<8xf32>
    %63 = vector.multi_reduction <add>, %62, %cst_42 [1] : vector<8x8xf32> to vector<8xf32>
    %64 = vector.shape_cast %63 : vector<8xf32> to vector<8x1xf32>
    %65 = tpu.reciprocal %64 {approx = true} : vector<8x1xf32> -> vector<8x1xf32>
    %66 = vector.broadcast %65 : vector<8x1xf32> to vector<8x8xf32>
    %67 = arith.mulf %62, %66 : vector<8x8xf32>
    %c0_43 = arith.constant 0 : index
    %c1 = arith.constant 1 : index
    %c0_44 = arith.constant 0 : index
    %c0_45 = arith.constant 0 : index
    %68 = vector.load %arg18[%c0_43, %c1, %c0_44, %c0_45] : memref<1x4x8x8xf32, #tpu.memory_space<vmem>>, vector<1x1x8x8xf32>
    %69 = vector.shape_cast %68 : vector<1x1x8x8xf32> to vector<8x8xf32>
    %70 = vector.shape_cast %67 : vector<8x8xf32> to vector<1x1x8x8xf32>
    tpu.vector_store %arg18[%c0_43, %c1, %c0_44, %c0_45], %70 {strides = array<i32>} : memref<1x4x8x8xf32, #tpu.memory_space<vmem>>, vector<1x1x8x8xf32>,
    %71 = arith.truncf %67 : vector<8x8xf32> to vector<8x8xbf16>
    %cst_46 = arith.constant dense<0.000000e+00> : vector<8x8xf32>
    %72 = tpu.matmul %71, %55, %cst_46 {dimension_numbers = #tpu.dot_dimension_numbers<[1], [0], [0], [1], [0, 0, 1, 1], [], []>} : vector<8x8xbf16>, vector<8x8xbf16>, vector<8x8xf32> -> vector<8x8xf32>
    %c0_47 = arith.constant 0 : index
    %c8 = arith.constant 8 : index
    %73 = vector.load %arg20[%c0_47, %c8] : memref<8x32xf32, #tpu.memory_space<vmem>>, vector<8x8xf32>
    tpu.vector_store %arg20[%c0_47, %c8], %72 {strides = array<i32>} : memref<8x32xf32, #tpu.memory_space<vmem>>, vector<8x8xf32>,
    %74 = vector.extract_strided_slice %25 {offsets = [0, 16], sizes = [8, 8], strides = [1, 1]} : vector<8x32xbf16> to vector<8x8xbf16>
    %75 = vector.extract_strided_slice %26 {offsets = [0, 16], sizes = [8, 8], strides = [1, 1]} : vector<8x64xbf16> to vector<8x8xbf16>
    %76 = vector.extract_strided_slice %26 {offsets = [0, 48], sizes = [8, 8], strides = [1, 1]} : vector<8x64xbf16> to vector<8x8xbf16>
    %cst_48 = arith.constant dense<0.000000e+00> : vector<8x8xf32>
    %77 = tpu.matmul %74, %75, %cst_48 {dimension_numbers = #tpu.dot_dimension_numbers<[1], [1], [0], [0], [0, 0, 1, 0], [], []>} : vector<8x8xbf16>, vector<8x8xbf16>, vector<8x8xf32> -> vector<8x8xf32>
    %78 = arith.addf %77, %31 : vector<8x8xf32>
    %cst_49 = arith.constant dense<0xFF800000> : vector<8xf32>
    %79 = vector.multi_reduction <maximumf>, %78, %cst_49 [1] : vector<8x8xf32> to vector<8xf32>
    %80 = vector.shape_cast %79 : vector<8xf32> to vector<8x1xf32>
    %81 = vector.broadcast %80 : vector<8x1xf32> to vector<8x8xf32>
    %82 = arith.subf %78, %81 : vector<8x8xf32>
    %83 = math.exp %82 : vector<8x8xf32>
    %cst_50 = arith.constant dense<0.000000e+00> : vector<8xf32>
    %84 = vector.multi_reduction <add>, %83, %cst_50 [1] : vector<8x8xf32> to vector<8xf32>
    %85 = vector.shape_cast %84 : vector<8xf32> to vector<8x1xf32>
    %86 = tpu.reciprocal %85 {approx = true} : vector<8x1xf32> -> vector<8x1xf32>
    %87 = vector.broadcast %86 : vector<8x1xf32> to vector<8x8xf32>
    %88 = arith.mulf %83, %87 : vector<8x8xf32>
    %c0_51 = arith.constant 0 : index
    %c2 = arith.constant 2 : index
    %c0_52 = arith.constant 0 : index
    %c0_53 = arith.constant 0 : index
    %89 = vector.load %arg18[%c0_51, %c2, %c0_52, %c0_53] : memref<1x4x8x8xf32, #tpu.memory_space<vmem>>, vector<1x1x8x8xf32>
    %90 = vector.shape_cast %89 : vector<1x1x8x8xf32> to vector<8x8xf32>
    %91 = vector.shape_cast %88 : vector<8x8xf32> to vector<1x1x8x8xf32>
    tpu.vector_store %arg18[%c0_51, %c2, %c0_52, %c0_53], %91 {strides = array<i32>} : memref<1x4x8x8xf32, #tpu.memory_space<vmem>>, vector<1x1x8x8xf32>,
    %92 = arith.truncf %88 : vector<8x8xf32> to vector<8x8xbf16>
    %cst_54 = arith.constant dense<0.000000e+00> : vector<8x8xf32>
    %93 = tpu.matmul %92, %76, %cst_54 {dimension_numbers = #tpu.dot_dimension_numbers<[1], [0], [0], [1], [0, 0, 1, 1], [], []>} : vector<8x8xbf16>, vector<8x8xbf16>, vector<8x8xf32> -> vector<8x8xf32>
    %c0_55 = arith.constant 0 : index
    %c16 = arith.constant 16 : index
    %94 = vector.load %arg20[%c0_55, %c16] : memref<8x32xf32, #tpu.memory_space<vmem>>, vector<8x8xf32>
    tpu.vector_store %arg20[%c0_55, %c16], %93 {strides = array<i32>} : memref<8x32xf32, #tpu.memory_space<vmem>>, vector<8x8xf32>,
    %95 = vector.extract_strided_slice %25 {offsets = [0, 24], sizes = [8, 8], strides = [1, 1]} : vector<8x32xbf16> to vector<8x8xbf16>
    %96 = vector.extract_strided_slice %26 {offsets = [0, 24], sizes = [8, 8], strides = [1, 1]} : vector<8x64xbf16> to vector<8x8xbf16>
    %97 = vector.extract_strided_slice %26 {offsets = [0, 56], sizes = [8, 8], strides = [1, 1]} : vector<8x64xbf16> to vector<8x8xbf16>
    %cst_56 = arith.constant dense<0.000000e+00> : vector<8x8xf32>
    %98 = tpu.matmul %95, %96, %cst_56 {dimension_numbers = #tpu.dot_dimension_numbers<[1], [1], [0], [0], [0, 0, 1, 0], [], []>} : vector<8x8xbf16>, vector<8x8xbf16>, vector<8x8xf32> -> vector<8x8xf32>
    %99 = arith.addf %98, %31 : vector<8x8xf32>
    %cst_57 = arith.constant dense<0xFF800000> : vector<8xf32>
    %100 = vector.multi_reduction <maximumf>, %99, %cst_57 [1] : vector<8x8xf32> to vector<8xf32>
    %101 = vector.shape_cast %100 : vector<8xf32> to vector<8x1xf32>
    %102 = vector.broadcast %101 : vector<8x1xf32> to vector<8x8xf32>
    %103 = arith.subf %99, %102 : vector<8x8xf32>
    %104 = math.exp %103 : vector<8x8xf32>
    %cst_58 = arith.constant dense<0.000000e+00> : vector<8xf32>
    %105 = vector.multi_reduction <add>, %104, %cst_58 [1] : vector<8x8xf32> to vector<8xf32>
    %106 = vector.shape_cast %105 : vector<8xf32> to vector<8x1xf32>
    %107 = tpu.reciprocal %106 {approx = true} : vector<8x1xf32> -> vector<8x1xf32>
    %108 = vector.broadcast %107 : vector<8x1xf32> to vector<8x8xf32>
    %109 = arith.mulf %104, %108 : vector<8x8xf32>
    %c0_59 = arith.constant 0 : index
    %c3 = arith.constant 3 : index
    %c0_60 = arith.constant 0 : index
    %c0_61 = arith.constant 0 : index
    %110 = vector.load %arg18[%c0_59, %c3, %c0_60, %c0_61] : memref<1x4x8x8xf32, #tpu.memory_space<vmem>>, vector<1x1x8x8xf32>
    %111 = vector.shape_cast %110 : vector<1x1x8x8xf32> to vector<8x8xf32>
    %112 = vector.shape_cast %109 : vector<8x8xf32> to vector<1x1x8x8xf32>
    tpu.vector_store %arg18[%c0_59, %c3, %c0_60, %c0_61], %112 {strides = array<i32>} : memref<1x4x8x8xf32, #tpu.memory_space<vmem>>, vector<1x1x8x8xf32>,
    %113 = arith.truncf %109 : vector<8x8xf32> to vector<8x8xbf16>
    %cst_62 = arith.constant dense<0.000000e+00> : vector<8x8xf32>
    %114 = tpu.matmul %113, %97, %cst_62 {dimension_numbers = #tpu.dot_dimension_numbers<[1], [0], [0], [1], [0, 0, 1, 1], [], []>} : vector<8x8xbf16>, vector<8x8xbf16>, vector<8x8xf32> -> vector<8x8xf32>
    %c0_63 = arith.constant 0 : index
    %c24 = arith.constant 24 : index
    %115 = vector.load %arg20[%c0_63, %c24] : memref<8x32xf32, #tpu.memory_space<vmem>>, vector<8x8xf32>
    tpu.vector_store %arg20[%c0_63, %c24], %114 {strides = array<i32>} : memref<8x32xf32, #tpu.memory_space<vmem>>, vector<8x8xf32>,
    %c0_64 = arith.constant 0 : index
    %c0_65 = arith.constant 0 : index
    %116 = vector.load %arg20[%c0_64, %c0_65] : memref<8x32xf32, #tpu.memory_space<vmem>>, vector<8x32xf32>
    %117 = arith.truncf %116 : vector<8x32xf32> to vector<8x32xbf16>
    %cst_66 = arith.constant dense<0.000000e+00> : vector<8x32xf32>
    %118 = tpu.matmul %117, %15, %cst_66 {dimension_numbers = #tpu.dot_dimension_numbers<[1], [0], [0], [1], [0, 0, 1, 1], [], []>} : vector<8x32xbf16>, vector<32x32xbf16>, vector<8x32xf32> -> vector<8x32xf32>
    %119 = vector.broadcast %18 : vector<1x32xf32> to vector<8x32xf32>
    %120 = arith.addf %118, %119 : vector<8x32xf32>
    %121 = arith.addf %1, %120 : vector<8x32xf32>
    %c0_67 = arith.constant 0 : index
    %c0_68 = arith.constant 0 : index
    %122 = vector.load %arg5[%c0_67, %c0_68] : memref<3x32xf32, #tpu.memory_space<vmem>>, vector<1x32xf32>
    %c0_69 = arith.constant 0 : index
    %c0_70 = arith.constant 0 : index
    %123 = vector.load %arg6[%c0_69, %c0_70] : memref<3x32xf32, #tpu.memory_space<vmem>>, vector<1x32xf32>
    %cst_71 = arith.constant dense<0.000000e+00> : vector<8xf32>
    %124 = vector.multi_reduction <add>, %121, %cst_71 [1] : vector<8x32xf32> to vector<8xf32>
    %125 = vector.shape_cast %124 : vector<8xf32> to vector<8x1xf32>
    %cst_72 = arith.constant 3.200000e+01 : f32
    %126 = vector.broadcast %cst_72 : f32 to vector<8x1xf32>
    %127 = arith.divf %125, %126 : vector<8x1xf32>
    %128 = arith.mulf %121, %121 : vector<8x32xf32>
    %cst_73 = arith.constant dense<0.000000e+00> : vector<8xf32>
    %129 = vector.multi_reduction <add>, %128, %cst_73 [1] : vector<8x32xf32> to vector<8xf32>
    %130 = vector.shape_cast %129 : vector<8xf32> to vector<8x1xf32>
    %cst_74 = arith.constant 3.200000e+01 : f32
    %131 = vector.broadcast %cst_74 : f32 to vector<8x1xf32>
    %132 = arith.divf %130, %131 : vector<8x1xf32>
    %133 = arith.mulf %127, %127 : vector<8x1xf32>
    %134 = arith.subf %132, %133 : vector<8x1xf32>
    %135 = vector.broadcast %127 : vector<8x1xf32> to vector<8x32xf32>
    %136 = arith.subf %121, %135 : vector<8x32xf32>
    %cst_75 = arith.constant 9.99999974E-6 : f32
    %137 = vector.broadcast %cst_75 : f32 to vector<8x1xf32>
    %138 = arith.addf %134, %137 : vector<8x1xf32>
    %139 = math.rsqrt %138 : vector<8x1xf32>
    %140 = vector.broadcast %139 : vector<8x1xf32> to vector<8x32xf32>
    %141 = arith.mulf %136, %140 : vector<8x32xf32>
    %142 = vector.broadcast %122 : vector<1x32xf32> to vector<8x32xf32>
    %143 = arith.mulf %141, %142 : vector<8x32xf32>
    %144 = vector.broadcast %123 : vector<1x32xf32> to vector<8x32xf32>
    %145 = arith.addf %143, %144 : vector<8x32xf32>
    %146 = arith.truncf %145 : vector<8x32xf32> to vector<8x32xbf16>
    %c1_76 = arith.constant 1 : index
    %c0_77 = arith.constant 0 : index
    %c0_78 = arith.constant 0 : index
    %147 = vector.load %arg7[%c1_76, %c0_77, %c0_78] : memref<2x32x32xbf16, #tpu.memory_space<vmem>>, vector<1x32x32xbf16>
    %148 = vector.shape_cast %147 : vector<1x32x32xbf16> to vector<32x32xbf16>
    %c1_79 = arith.constant 1 : index
    %c0_80 = arith.constant 0 : index
    %c0_81 = arith.constant 0 : index
    %149 = vector.load %arg9[%c1_79, %c0_80, %c0_81] : memref<2x32x64xbf16, #tpu.memory_space<vmem>>, vector<1x32x64xbf16>
    %150 = vector.shape_cast %149 : vector<1x32x64xbf16> to vector<32x64xbf16>
    %c1_82 = arith.constant 1 : index
    %c0_83 = arith.constant 0 : index
    %c0_84 = arith.constant 0 : index
    %151 = vector.load %arg11[%c1_82, %c0_83, %c0_84] : memref<2x32x32xbf16, #tpu.memory_space<vmem>>, vector<1x32x32xbf16>
    %152 = vector.shape_cast %151 : vector<1x32x32xbf16> to vector<32x32xbf16>
    %c1_85 = arith.constant 1 : index
    %c0_86 = arith.constant 0 : index
    %153 = vector.load %arg8[%c1_85, %c0_86] : memref<2x32xf32, #tpu.memory_space<vmem>>, vector<1x32xf32>
    %c1_87 = arith.constant 1 : index
    %c0_88 = arith.constant 0 : index
    %154 = vector.load %arg10[%c1_87, %c0_88] : memref<2x64xf32, #tpu.memory_space<vmem>>, vector<1x64xf32>
    %c1_89 = arith.constant 1 : index
    %c0_90 = arith.constant 0 : index
    %155 = vector.load %arg12[%c1_89, %c0_90] : memref<2x32xf32, #tpu.memory_space<vmem>>, vector<1x32xf32>
    %cst_91 = arith.constant dense<0.000000e+00> : vector<8x32xf32>
    %156 = tpu.matmul %146, %148, %cst_91 {dimension_numbers = #tpu.dot_dimension_numbers<[1], [0], [0], [1], [0, 0, 1, 1], [], []>} : vector<8x32xbf16>, vector<32x32xbf16>, vector<8x32xf32> -> vector<8x32xf32>
    %157 = vector.broadcast %153 : vector<1x32xf32> to vector<8x32xf32>
    %158 = arith.addf %156, %157 : vector<8x32xf32>
    %cst_92 = arith.constant dense<0.000000e+00> : vector<16x64xf32>
    %159 = tpu.matmul %4, %150, %cst_92 {dimension_numbers = #tpu.dot_dimension_numbers<[1], [0], [0], [1], [0, 0, 1, 1], [], []>} : vector<16x32xbf16>, vector<32x64xbf16>, vector<16x64xf32> -> vector<16x64xf32>
    %160 = vector.broadcast %154 : vector<1x64xf32> to vector<16x64xf32>
    %161 = arith.addf %159, %160 : vector<16x64xf32>
    %162 = arith.truncf %158 : vector<8x32xf32> to vector<8x32xbf16>
    %163 = arith.truncf %161 : vector<16x64xf32> to vector<16x64xbf16>
    %cst_93 = arith.constant 5.000000e-01 : f32
    %164 = vector.broadcast %cst_93 : f32 to vector<8x16xf32>
    %165 = arith.cmpf ogt, %8, %164 : vector<8x16xf32>
    %cst_94 = arith.constant -1.000000e+09 : f32
    %cst_95 = arith.constant 0.000000e+00 : f32
    %166 = vector.broadcast %cst_94 : f32 to vector<8x16xf32>
    %167 = vector.broadcast %cst_95 : f32 to vector<8x16xf32>
    %168 = arith.select %165, %166, %167 : vector<8x16xi1>, vector<8x16xf32>
    %169 = vector.extract_strided_slice %162 {offsets = [0, 0], sizes = [8, 8], strides = [1, 1]} : vector<8x32xbf16> to vector<8x8xbf16>
    %170 = vector.extract_strided_slice %163 {offsets = [0, 0], sizes = [16, 8], strides = [1, 1]} : vector<16x64xbf16> to vector<16x8xbf16>
    %171 = vector.extract_strided_slice %163 {offsets = [0, 32], sizes = [16, 8], strides = [1, 1]} : vector<16x64xbf16> to vector<16x8xbf16>
    %cst_96 = arith.constant dense<0.000000e+00> : vector<8x16xf32>
    %172 = tpu.matmul %169, %170, %cst_96 {dimension_numbers = #tpu.dot_dimension_numbers<[1], [1], [0], [0], [0, 0, 1, 0], [], []>} : vector<8x8xbf16>, vector<16x8xbf16>, vector<8x16xf32> -> vector<8x16xf32>
    %173 = arith.addf %172, %168 : vector<8x16xf32>
    %cst_97 = arith.constant dense<0xFF800000> : vector<8xf32>
    %174 = vector.multi_reduction <maximumf>, %173, %cst_97 [1] : vector<8x16xf32> to vector<8xf32>
    %175 = vector.shape_cast %174 : vector<8xf32> to vector<8x1xf32>
    %176 = vector.broadcast %175 : vector<8x1xf32> to vector<8x16xf32>
    %177 = arith.subf %173, %176 : vector<8x16xf32>
    %178 = math.exp %177 : vector<8x16xf32>
    %cst_98 = arith.constant dense<0.000000e+00> : vector<8xf32>
    %179 = vector.multi_reduction <add>, %178, %cst_98 [1] : vector<8x16xf32> to vector<8xf32>
    %180 = vector.shape_cast %179 : vector<8xf32> to vector<8x1xf32>
    %181 = tpu.reciprocal %180 {approx = true} : vector<8x1xf32> -> vector<8x1xf32>
    %182 = vector.broadcast %181 : vector<8x1xf32> to vector<8x16xf32>
    %183 = arith.mulf %178, %182 : vector<8x16xf32>
    %c0_99 = arith.constant 0 : index
    %c0_100 = arith.constant 0 : index
    %c0_101 = arith.constant 0 : index
    %c0_102 = arith.constant 0 : index
    %184 = vector.load %arg19[%c0_99, %c0_100, %c0_101, %c0_102] : memref<1x4x8x16xf32, #tpu.memory_space<vmem>>, vector<1x1x8x16xf32>
    %185 = vector.shape_cast %184 : vector<1x1x8x16xf32> to vector<8x16xf32>
    %186 = vector.shape_cast %183 : vector<8x16xf32> to vector<1x1x8x16xf32>
    tpu.vector_store %arg19[%c0_99, %c0_100, %c0_101, %c0_102], %186 {strides = array<i32>} : memref<1x4x8x16xf32, #tpu.memory_space<vmem>>, vector<1x1x8x16xf32>,
    %187 = arith.truncf %183 : vector<8x16xf32> to vector<8x16xbf16>
    %cst_103 = arith.constant dense<0.000000e+00> : vector<8x8xf32>
    %188 = tpu.matmul %187, %171, %cst_103 {dimension_numbers = #tpu.dot_dimension_numbers<[1], [0], [0], [1], [0, 0, 1, 1], [], []>} : vector<8x16xbf16>, vector<16x8xbf16>, vector<8x8xf32> -> vector<8x8xf32>
    %c0_104 = arith.constant 0 : index
    %c0_105 = arith.constant 0 : index
    %189 = vector.load %arg20[%c0_104, %c0_105] : memref<8x32xf32, #tpu.memory_space<vmem>>, vector<8x8xf32>
    tpu.vector_store %arg20[%c0_104, %c0_105], %188 {strides = array<i32>} : memref<8x32xf32, #tpu.memory_space<vmem>>, vector<8x8xf32>,
    %190 = vector.extract_strided_slice %162 {offsets = [0, 8], sizes = [8, 8], strides = [1, 1]} : vector<8x32xbf16> to vector<8x8xbf16>
    %191 = vector.extract_strided_slice %163 {offsets = [0, 8], sizes = [16, 8], strides = [1, 1]} : vector<16x64xbf16> to vector<16x8xbf16>
    %192 = vector.extract_strided_slice %163 {offsets = [0, 40], sizes = [16, 8], strides = [1, 1]} : vector<16x64xbf16> to vector<16x8xbf16>
    %cst_106 = arith.constant dense<0.000000e+00> : vector<8x16xf32>
    %193 = tpu.matmul %190, %191, %cst_106 {dimension_numbers = #tpu.dot_dimension_numbers<[1], [1], [0], [0], [0, 0, 1, 0], [], []>} : vector<8x8xbf16>, vector<16x8xbf16>, vector<8x16xf32> -> vector<8x16xf32>
    %194 = arith.addf %193, %168 : vector<8x16xf32>
    %cst_107 = arith.constant dense<0xFF800000> : vector<8xf32>
    %195 = vector.multi_reduction <maximumf>, %194, %cst_107 [1] : vector<8x16xf32> to vector<8xf32>
    %196 = vector.shape_cast %195 : vector<8xf32> to vector<8x1xf32>
    %197 = vector.broadcast %196 : vector<8x1xf32> to vector<8x16xf32>
    %198 = arith.subf %194, %197 : vector<8x16xf32>
    %199 = math.exp %198 : vector<8x16xf32>
    %cst_108 = arith.constant dense<0.000000e+00> : vector<8xf32>
    %200 = vector.multi_reduction <add>, %199, %cst_108 [1] : vector<8x16xf32> to vector<8xf32>
    %201 = vector.shape_cast %200 : vector<8xf32> to vector<8x1xf32>
    %202 = tpu.reciprocal %201 {approx = true} : vector<8x1xf32> -> vector<8x1xf32>
    %203 = vector.broadcast %202 : vector<8x1xf32> to vector<8x16xf32>
    %204 = arith.mulf %199, %203 : vector<8x16xf32>
    %c0_109 = arith.constant 0 : index
    %c1_110 = arith.constant 1 : index
    %c0_111 = arith.constant 0 : index
    %c0_112 = arith.constant 0 : index
    %205 = vector.load %arg19[%c0_109, %c1_110, %c0_111, %c0_112] : memref<1x4x8x16xf32, #tpu.memory_space<vmem>>, vector<1x1x8x16xf32>
    %206 = vector.shape_cast %205 : vector<1x1x8x16xf32> to vector<8x16xf32>
    %207 = vector.shape_cast %204 : vector<8x16xf32> to vector<1x1x8x16xf32>
    tpu.vector_store %arg19[%c0_109, %c1_110, %c0_111, %c0_112], %207 {strides = array<i32>} : memref<1x4x8x16xf32, #tpu.memory_space<vmem>>, vector<1x1x8x16xf32>,
    %208 = arith.truncf %204 : vector<8x16xf32> to vector<8x16xbf16>
    %cst_113 = arith.constant dense<0.000000e+00> : vector<8x8xf32>
    %209 = tpu.matmul %208, %192, %cst_113 {dimension_numbers = #tpu.dot_dimension_numbers<[1], [0], [0], [1], [0, 0, 1, 1], [], []>} : vector<8x16xbf16>, vector<16x8xbf16>, vector<8x8xf32> -> vector<8x8xf32>
    %c0_114 = arith.constant 0 : index
    %c8_115 = arith.constant 8 : index
    %210 = vector.load %arg20[%c0_114, %c8_115] : memref<8x32xf32, #tpu.memory_space<vmem>>, vector<8x8xf32>
    tpu.vector_store %arg20[%c0_114, %c8_115], %209 {strides = array<i32>} : memref<8x32xf32, #tpu.memory_space<vmem>>, vector<8x8xf32>,
    %211 = vector.extract_strided_slice %162 {offsets = [0, 16], sizes = [8, 8], strides = [1, 1]} : vector<8x32xbf16> to vector<8x8xbf16>
    %212 = vector.extract_strided_slice %163 {offsets = [0, 16], sizes = [16, 8], strides = [1, 1]} : vector<16x64xbf16> to vector<16x8xbf16>
    %213 = vector.extract_strided_slice %163 {offsets = [0, 48], sizes = [16, 8], strides = [1, 1]} : vector<16x64xbf16> to vector<16x8xbf16>
    %cst_116 = arith.constant dense<0.000000e+00> : vector<8x16xf32>
    %214 = tpu.matmul %211, %212, %cst_116 {dimension_numbers = #tpu.dot_dimension_numbers<[1], [1], [0], [0], [0, 0, 1, 0], [], []>} : vector<8x8xbf16>, vector<16x8xbf16>, vector<8x16xf32> -> vector<8x16xf32>
    %215 = arith.addf %214, %168 : vector<8x16xf32>
    %cst_117 = arith.constant dense<0xFF800000> : vector<8xf32>
    %216 = vector.multi_reduction <maximumf>, %215, %cst_117 [1] : vector<8x16xf32> to vector<8xf32>
    %217 = vector.shape_cast %216 : vector<8xf32> to vector<8x1xf32>
    %218 = vector.broadcast %217 : vector<8x1xf32> to vector<8x16xf32>
    %219 = arith.subf %215, %218 : vector<8x16xf32>
    %220 = math.exp %219 : vector<8x16xf32>
    %cst_118 = arith.constant dense<0.000000e+00> : vector<8xf32>
    %221 = vector.multi_reduction <add>, %220, %cst_118 [1] : vector<8x16xf32> to vector<8xf32>
    %222 = vector.shape_cast %221 : vector<8xf32> to vector<8x1xf32>
    %223 = tpu.reciprocal %222 {approx = true} : vector<8x1xf32> -> vector<8x1xf32>
    %224 = vector.broadcast %223 : vector<8x1xf32> to vector<8x16xf32>
    %225 = arith.mulf %220, %224 : vector<8x16xf32>
    %c0_119 = arith.constant 0 : index
    %c2_120 = arith.constant 2 : index
    %c0_121 = arith.constant 0 : index
    %c0_122 = arith.constant 0 : index
    %226 = vector.load %arg19[%c0_119, %c2_120, %c0_121, %c0_122] : memref<1x4x8x16xf32, #tpu.memory_space<vmem>>, vector<1x1x8x16xf32>
    %227 = vector.shape_cast %226 : vector<1x1x8x16xf32> to vector<8x16xf32>
    %228 = vector.shape_cast %225 : vector<8x16xf32> to vector<1x1x8x16xf32>
    tpu.vector_store %arg19[%c0_119, %c2_120, %c0_121, %c0_122], %228 {strides = array<i32>} : memref<1x4x8x16xf32, #tpu.memory_space<vmem>>, vector<1x1x8x16xf32>,
    %229 = arith.truncf %225 : vector<8x16xf32> to vector<8x16xbf16>
    %cst_123 = arith.constant dense<0.000000e+00> : vector<8x8xf32>
    %230 = tpu.matmul %229, %213, %cst_123 {dimension_numbers = #tpu.dot_dimension_numbers<[1], [0], [0], [1], [0, 0, 1, 1], [], []>} : vector<8x16xbf16>, vector<16x8xbf16>, vector<8x8xf32> -> vector<8x8xf32>
    %c0_124 = arith.constant 0 : index
    %c16_125 = arith.constant 16 : index
    %231 = vector.load %arg20[%c0_124, %c16_125] : memref<8x32xf32, #tpu.memory_space<vmem>>, vector<8x8xf32>
    tpu.vector_store %arg20[%c0_124, %c16_125], %230 {strides = array<i32>} : memref<8x32xf32, #tpu.memory_space<vmem>>, vector<8x8xf32>,
    %232 = vector.extract_strided_slice %162 {offsets = [0, 24], sizes = [8, 8], strides = [1, 1]} : vector<8x32xbf16> to vector<8x8xbf16>
    %233 = vector.extract_strided_slice %163 {offsets = [0, 24], sizes = [16, 8], strides = [1, 1]} : vector<16x64xbf16> to vector<16x8xbf16>
    %234 = vector.extract_strided_slice %163 {offsets = [0, 56], sizes = [16, 8], strides = [1, 1]} : vector<16x64xbf16> to vector<16x8xbf16>
    %cst_126 = arith.constant dense<0.000000e+00> : vector<8x16xf32>
    %235 = tpu.matmul %232, %233, %cst_126 {dimension_numbers = #tpu.dot_dimension_numbers<[1], [1], [0], [0], [0, 0, 1, 0], [], []>} : vector<8x8xbf16>, vector<16x8xbf16>, vector<8x16xf32> -> vector<8x16xf32>
    %236 = arith.addf %235, %168 : vector<8x16xf32>
    %cst_127 = arith.constant dense<0xFF800000> : vector<8xf32>
    %237 = vector.multi_reduction <maximumf>, %236, %cst_127 [1] : vector<8x16xf32> to vector<8xf32>
    %238 = vector.shape_cast %237 : vector<8xf32> to vector<8x1xf32>
    %239 = vector.broadcast %238 : vector<8x1xf32> to vector<8x16xf32>
    %240 = arith.subf %236, %239 : vector<8x16xf32>
    %241 = math.exp %240 : vector<8x16xf32>
    %cst_128 = arith.constant dense<0.000000e+00> : vector<8xf32>
    %242 = vector.multi_reduction <add>, %241, %cst_128 [1] : vector<8x16xf32> to vector<8xf32>
    %243 = vector.shape_cast %242 : vector<8xf32> to vector<8x1xf32>
    %244 = tpu.reciprocal %243 {approx = true} : vector<8x1xf32> -> vector<8x1xf32>
    %245 = vector.broadcast %244 : vector<8x1xf32> to vector<8x16xf32>
    %246 = arith.mulf %241, %245 : vector<8x16xf32>
    %c0_129 = arith.constant 0 : index
    %c3_130 = arith.constant 3 : index
    %c0_131 = arith.constant 0 : index
    %c0_132 = arith.constant 0 : index
    %247 = vector.load %arg19[%c0_129, %c3_130, %c0_131, %c0_132] : memref<1x4x8x16xf32, #tpu.memory_space<vmem>>, vector<1x1x8x16xf32>
    %248 = vector.shape_cast %247 : vector<1x1x8x16xf32> to vector<8x16xf32>
    %249 = vector.shape_cast %246 : vector<8x16xf32> to vector<1x1x8x16xf32>
    tpu.vector_store %arg19[%c0_129, %c3_130, %c0_131, %c0_132], %249 {strides = array<i32>} : memref<1x4x8x16xf32, #tpu.memory_space<vmem>>, vector<1x1x8x16xf32>,
    %250 = arith.truncf %246 : vector<8x16xf32> to vector<8x16xbf16>
    %cst_133 = arith.constant dense<0.000000e+00> : vector<8x8xf32>
    %251 = tpu.matmul %250, %234, %cst_133 {dimension_numbers = #tpu.dot_dimension_numbers<[1], [0], [0], [1], [0, 0, 1, 1], [], []>} : vector<8x16xbf16>, vector<16x8xbf16>, vector<8x8xf32> -> vector<8x8xf32>
    %c0_134 = arith.constant 0 : index
    %c24_135 = arith.constant 24 : index
    %252 = vector.load %arg20[%c0_134, %c24_135] : memref<8x32xf32, #tpu.memory_space<vmem>>, vector<8x8xf32>
    tpu.vector_store %arg20[%c0_134, %c24_135], %251 {strides = array<i32>} : memref<8x32xf32, #tpu.memory_space<vmem>>, vector<8x8xf32>,
    %c0_136 = arith.constant 0 : index
    %c0_137 = arith.constant 0 : index
    %253 = vector.load %arg20[%c0_136, %c0_137] : memref<8x32xf32, #tpu.memory_space<vmem>>, vector<8x32xf32>
    %254 = arith.truncf %253 : vector<8x32xf32> to vector<8x32xbf16>
    %cst_138 = arith.constant dense<0.000000e+00> : vector<8x32xf32>
    %255 = tpu.matmul %254, %152, %cst_138 {dimension_numbers = #tpu.dot_dimension_numbers<[1], [0], [0], [1], [0, 0, 1, 1], [], []>} : vector<8x32xbf16>, vector<32x32xbf16>, vector<8x32xf32> -> vector<8x32xf32>
    %256 = vector.broadcast %155 : vector<1x32xf32> to vector<8x32xf32>
    %257 = arith.addf %255, %256 : vector<8x32xf32>
    %258 = arith.addf %145, %257 : vector<8x32xf32>
    %c1_139 = arith.constant 1 : index
    %c0_140 = arith.constant 0 : index
    %259 = vector.load %arg5[%c1_139, %c0_140] : memref<3x32xf32, #tpu.memory_space<vmem>>, vector<1x32xf32>
    %c1_141 = arith.constant 1 : index
    %c0_142 = arith.constant 0 : index
    %260 = vector.load %arg6[%c1_141, %c0_142] : memref<3x32xf32, #tpu.memory_space<vmem>>, vector<1x32xf32>
    %cst_143 = arith.constant dense<0.000000e+00> : vector<8xf32>
    %261 = vector.multi_reduction <add>, %258, %cst_143 [1] : vector<8x32xf32> to vector<8xf32>
    %262 = vector.shape_cast %261 : vector<8xf32> to vector<8x1xf32>
    %cst_144 = arith.constant 3.200000e+01 : f32
    %263 = vector.broadcast %cst_144 : f32 to vector<8x1xf32>
    %264 = arith.divf %262, %263 : vector<8x1xf32>
    %265 = arith.mulf %258, %258 : vector<8x32xf32>
    %cst_145 = arith.constant dense<0.000000e+00> : vector<8xf32>
    %266 = vector.multi_reduction <add>, %265, %cst_145 [1] : vector<8x32xf32> to vector<8xf32>
    %267 = vector.shape_cast %266 : vector<8xf32> to vector<8x1xf32>
    %cst_146 = arith.constant 3.200000e+01 : f32
    %268 = vector.broadcast %cst_146 : f32 to vector<8x1xf32>
    %269 = arith.divf %267, %268 : vector<8x1xf32>
    %270 = arith.mulf %264, %264 : vector<8x1xf32>
    %271 = arith.subf %269, %270 : vector<8x1xf32>
    %272 = vector.broadcast %264 : vector<8x1xf32> to vector<8x32xf32>
    %273 = arith.subf %258, %272 : vector<8x32xf32>
    %cst_147 = arith.constant 9.99999974E-6 : f32
    %274 = vector.broadcast %cst_147 : f32 to vector<8x1xf32>
    %275 = arith.addf %271, %274 : vector<8x1xf32>
    %276 = math.rsqrt %275 : vector<8x1xf32>
    %277 = vector.broadcast %276 : vector<8x1xf32> to vector<8x32xf32>
    %278 = arith.mulf %273, %277 : vector<8x32xf32>
    %279 = vector.broadcast %259 : vector<1x32xf32> to vector<8x32xf32>
    %280 = arith.mulf %278, %279 : vector<8x32xf32>
    %281 = vector.broadcast %260 : vector<1x32xf32> to vector<8x32xf32>
    %282 = arith.addf %280, %281 : vector<8x32xf32>
    %283 = arith.truncf %282 : vector<8x32xf32> to vector<8x32xbf16>
    %c0_148 = arith.constant 0 : index
    %c0_149 = arith.constant 0 : index
    %284 = vector.load %arg13[%c0_148, %c0_149] : memref<32x64xbf16, #tpu.memory_space<vmem>>, vector<32x64xbf16>
    %cst_150 = arith.constant dense<0.000000e+00> : vector<8x64xf32>
    %285 = tpu.matmul %283, %284, %cst_150 {dimension_numbers = #tpu.dot_dimension_numbers<[1], [0], [0], [1], [0, 0, 1, 1], [], []>} : vector<8x32xbf16>, vector<32x64xbf16>, vector<8x64xf32> -> vector<8x64xf32>
    %c0_151 = arith.constant 0 : index
    %c0_152 = arith.constant 0 : index
    %286 = vector.load %arg14[%c0_151, %c0_152] : memref<1x64xf32, #tpu.memory_space<vmem>>, vector<1x64xf32>
    %287 = vector.broadcast %286 : vector<1x64xf32> to vector<8x64xf32>
    %288 = arith.addf %285, %287 : vector<8x64xf32>
    %cst_153 = arith.constant 0.000000e+00 : f32
    %289 = vector.broadcast %cst_153 : f32 to vector<8x64xf32>
    %290 = arith.maximumf %288, %289 : vector<8x64xf32>
    %291 = arith.truncf %290 : vector<8x64xf32> to vector<8x64xbf16>
    %c0_154 = arith.constant 0 : index
    %c0_155 = arith.constant 0 : index
    %292 = vector.load %arg15[%c0_154, %c0_155] : memref<64x32xbf16, #tpu.memory_space<vmem>>, vector<64x32xbf16>
    %cst_156 = arith.constant dense<0.000000e+00> : vector<8x32xf32>
    %293 = tpu.matmul %291, %292, %cst_156 {dimension_numbers = #tpu.dot_dimension_numbers<[1], [0], [0], [1], [0, 0, 1, 1], [], []>} : vector<8x64xbf16>, vector<64x32xbf16>, vector<8x32xf32> -> vector<8x32xf32>
    %c0_157 = arith.constant 0 : index
    %c0_158 = arith.constant 0 : index
    %294 = vector.load %arg16[%c0_157, %c0_158] : memref<1x32xf32, #tpu.memory_space<vmem>>, vector<1x32xf32>
    %295 = vector.broadcast %294 : vector<1x32xf32> to vector<8x32xf32>
    %296 = arith.addf %293, %295 : vector<8x32xf32>
    %297 = arith.addf %282, %296 : vector<8x32xf32>
    %c1_159 = arith.constant 1 : index
    %c0_160 = arith.constant 0 : index
    %298 = vector.load %arg5[%c1_159, %c0_160] : memref<3x32xf32, #tpu.memory_space<vmem>>, vector<1x32xf32>
    %c1_161 = arith.constant 1 : index
    %c0_162 = arith.constant 0 : index
    %299 = vector.load %arg6[%c1_161, %c0_162] : memref<3x32xf32, #tpu.memory_space<vmem>>, vector<1x32xf32>
    %cst_163 = arith.constant dense<0.000000e+00> : vector<8xf32>
    %300 = vector.multi_reduction <add>, %297, %cst_163 [1] : vector<8x32xf32> to vector<8xf32>
    %301 = vector.shape_cast %300 : vector<8xf32> to vector<8x1xf32>
    %cst_164 = arith.constant 3.200000e+01 : f32
    %302 = vector.broadcast %cst_164 : f32 to vector<8x1xf32>
    %303 = arith.divf %301, %302 : vector<8x1xf32>
    %304 = arith.mulf %297, %297 : vector<8x32xf32>
    %cst_165 = arith.constant dense<0.000000e+00> : vector<8xf32>
    %305 = vector.multi_reduction <add>, %304, %cst_165 [1] : vector<8x32xf32> to vector<8xf32>
    %306 = vector.shape_cast %305 : vector<8xf32> to vector<8x1xf32>
    %cst_166 = arith.constant 3.200000e+01 : f32
    %307 = vector.broadcast %cst_166 : f32 to vector<8x1xf32>
    %308 = arith.divf %306, %307 : vector<8x1xf32>
    %309 = arith.mulf %303, %303 : vector<8x1xf32>
    %310 = arith.subf %308, %309 : vector<8x1xf32>
    %311 = vector.broadcast %303 : vector<8x1xf32> to vector<8x32xf32>
    %312 = arith.subf %297, %311 : vector<8x32xf32>
    %cst_167 = arith.constant 9.99999974E-6 : f32
    %313 = vector.broadcast %cst_167 : f32 to vector<8x1xf32>
    %314 = arith.addf %310, %313 : vector<8x1xf32>
    %315 = math.rsqrt %314 : vector<8x1xf32>
    %316 = vector.broadcast %315 : vector<8x1xf32> to vector<8x32xf32>
    %317 = arith.mulf %312, %316 : vector<8x32xf32>
    %318 = vector.broadcast %298 : vector<1x32xf32> to vector<8x32xf32>
    %319 = arith.mulf %317, %318 : vector<8x32xf32>
    %320 = vector.broadcast %299 : vector<1x32xf32> to vector<8x32xf32>
    %321 = arith.addf %319, %320 : vector<8x32xf32>
    %c0_168 = arith.constant 0 : index
    %c0_169 = arith.constant 0 : index
    %c0_170 = arith.constant 0 : index
    %322 = vector.load %arg17[%c0_168, %c0_169, %c0_170] : memref<1x8x32xf32, #tpu.memory_space<vmem>>, vector<1x8x32xf32>
    %323 = vector.shape_cast %322 : vector<1x8x32xf32> to vector<8x32xf32>
    %324 = vector.shape_cast %321 : vector<8x32xf32> to vector<1x8x32xf32>
    tpu.vector_store %arg17[%c0_168, %c0_169, %c0_170], %324 {strides = array<i32>} : memref<1x8x32xf32, #tpu.memory_space<vmem>>, vector<1x8x32xf32>,
    return
  }
  func.func @transform_0(%arg0: i32) -> (i32, i32, i32) {
    %c0_i32 = arith.constant 0 : i32
    %c0_i32_0 = arith.constant 0 : i32
    %c0_i32_1 = arith.constant 0 : i32
    return %arg0, %c0_i32, %c0_i32_0 : i32, i32, i32
  }
  func.func @transform_1(%arg0: i32) -> (i32, i32, i32) {
    %c0_i32 = arith.constant 0 : i32
    %c0_i32_0 = arith.constant 0 : i32
    %c0_i32_1 = arith.constant 0 : i32
    return %arg0, %c0_i32, %c0_i32_0 : i32, i32, i32
  }
  func.func @transform_2(%arg0: i32) -> (i32, i32, i32) {
    %c0_i32 = arith.constant 0 : i32
    %c0_i32_0 = arith.constant 0 : i32
    %c0_i32_1 = arith.constant 0 : i32
    return %arg0, %c0_i32, %c0_i32_0 : i32, i32, i32
  }
  func.func @transform_3(%arg0: i32) -> (i32, i32, i32) {
    %c0_i32 = arith.constant 0 : i32
    %c0_i32_0 = arith.constant 0 : i32
    %c0_i32_1 = arith.constant 0 : i32
    return %arg0, %c0_i32, %c0_i32_0 : i32, i32, i32
  }
  func.func @transform_4(%arg0: i32) -> (i32, i32) {
    %c0_i32 = arith.constant 0 : i32
    %c0_i32_0 = arith.constant 0 : i32
    %c0_i32_1 = arith.constant 0 : i32
    return %c0_i32, %c0_i32_0 : i32, i32
  }
  func.func @transform_5(%arg0: i32) -> (i32, i32) {
    %c0_i32 = arith.constant 0 : i32
    %c0_i32_0 = arith.constant 0 : i32
    %c0_i32_1 = arith.constant 0 : i32
    return %c0_i32, %c0_i32_0 : i32, i32
  }
  func.func @transform_6(%arg0: i32) -> (i32, i32, i32) {
    %c0_i32 = arith.constant 0 : i32
    %c0_i32_0 = arith.constant 0 : i32
    %c0_i32_1 = arith.constant 0 : i32
    %c0_i32_2 = arith.constant 0 : i32
    return %c0_i32, %c0_i32_0, %c0_i32_1 : i32, i32, i32
  }
  func.func @transform_7(%arg0: i32) -> (i32, i32) {
    %c0_i32 = arith.constant 0 : i32
    %c0_i32_0 = arith.constant 0 : i32
    %c0_i32_1 = arith.constant 0 : i32
    return %c0_i32, %c0_i32_0 : i32, i32
  }
  func.func @transform_8(%arg0: i32) -> (i32, i32, i32) {
    %c0_i32 = arith.constant 0 : i32
    %c0_i32_0 = arith.constant 0 : i32
    %c0_i32_1 = arith.constant 0 : i32
    %c0_i32_2 = arith.constant 0 : i32
    return %c0_i32, %c0_i32_0, %c0_i32_1 : i32, i32, i32
  }
  func.func @transform_9(%arg0: i32) -> (i32, i32) {
    %c0_i32 = arith.constant 0 : i32
    %c0_i32_0 = arith.constant 0 : i32
    %c0_i32_1 = arith.constant 0 : i32
    return %c0_i32, %c0_i32_0 : i32, i32
  }
  func.func @transform_10(%arg0: i32) -> (i32, i32, i32) {
    %c0_i32 = arith.constant 0 : i32
    %c0_i32_0 = arith.constant 0 : i32
    %c0_i32_1 = arith.constant 0 : i32
    %c0_i32_2 = arith.constant 0 : i32
    return %c0_i32, %c0_i32_0, %c0_i32_1 : i32, i32, i32
  }
  func.func @transform_11(%arg0: i32) -> (i32, i32) {
    %c0_i32 = arith.constant 0 : i32
    %c0_i32_0 = arith.constant 0 : i32
    %c0_i32_1 = arith.constant 0 : i32
    return %c0_i32, %c0_i32_0 : i32, i32
  }
  func.func @transform_12(%arg0: i32) -> (i32, i32) {
    %c0_i32 = arith.constant 0 : i32
    %c0_i32_0 = arith.constant 0 : i32
    %c0_i32_1 = arith.constant 0 : i32
    return %c0_i32, %c0_i32_0 : i32, i32
  }
  func.func @transform_13(%arg0: i32) -> (i32, i32) {
    %c0_i32 = arith.constant 0 : i32
    %c0_i32_0 = arith.constant 0 : i32
    %c0_i32_1 = arith.constant 0 : i32
    return %c0_i32, %c0_i32_0 : i32, i32
  }
  func.func @transform_14(%arg0: i32) -> (i32, i32) {
    %c0_i32 = arith.constant 0 : i32
    %c0_i32_0 = arith.constant 0 : i32
    %c0_i32_1 = arith.constant 0 : i32
    return %c0_i32, %c0_i32_0 : i32, i32
  }
  func.func @transform_15(%arg0: i32) -> (i32, i32) {
    %c0_i32 = arith.constant 0 : i32
    %c0_i32_0 = arith.constant 0 : i32
    %c0_i32_1 = arith.constant 0 : i32
    return %c0_i32, %c0_i32_0 : i32, i32
  }
  func.func @transform_16(%arg0: i32) -> (i32, i32, i32) {
    %c0_i32 = arith.constant 0 : i32
    %c0_i32_0 = arith.constant 0 : i32
    %c0_i32_1 = arith.constant 0 : i32
    return %arg0, %c0_i32, %c0_i32_0 : i32, i32, i32
  }
  func.func @transform_17(%arg0: i32) -> (i32, i32, i32, i32) {
    %c0_i32 = arith.constant 0 : i32
    %c0_i32_0 = arith.constant 0 : i32
    %c0_i32_1 = arith.constant 0 : i32
    %c0_i32_2 = arith.constant 0 : i32
    return %arg0, %c0_i32, %c0_i32_0, %c0_i32_1 : i32, i32, i32, i32
  }
  func.func @transform_18(%arg0: i32) -> (i32, i32, i32, i32) {
    %c0_i32 = arith.constant 0 : i32
    %c0_i32_0 = arith.constant 0 : i32
    %c0_i32_1 = arith.constant 0 : i32
    %c0_i32_2 = arith.constant 0 : i32
    return %arg0, %c0_i32, %c0_i32_0, %c0_i32_1 : i32, i32, i32, i32
  }
}

</mosaic_0001>

<llo_original>
// kernel: tpu_custom_call.1
$region0: #{tpu_custom_call.1}
  #allocation0 [shape = 'u32[]', space=smem, size = 0x4, offset = 0x4, fixed_abs, tag = 'smem constant byte address 0x4 - core index']
  #allocation1 [shape = 'u32[144,128]{1,0:T(1,128)}', space=vmem, size = 0x12000, scoped, tag = 'internal scratch']
  #allocation2 [shape = 'f32[8,32]{1,0:T(8,128)}', space=vmem, size = 0x1000, scoped, tag = 'scratch operand']
  %s0 = inlined_call_operand.hbm [shape: f32[2,8,32], index: 0, kind: input, shape index: {}]
  %s1 = inlined_call_operand.hbm [shape: f32[2,16,32], index: 1, kind: input, shape index: {}]
  %s2 = inlined_call_operand.hbm [shape: f32[2,8,8], index: 2, kind: input, shape index: {}]
  %s3 = inlined_call_operand.hbm [shape: f32[2,8,16], index: 3, kind: input, shape index: {}]
  %s4 = inlined_call_operand.hbm [shape: f32[3,32], index: 4, kind: input, shape index: {}]
  %s5 = inlined_call_operand.hbm [shape: f32[3,32], index: 5, kind: input, shape index: {}]
  %s6 = inlined_call_operand.hbm [shape: bf16[2,32,32], index: 6, kind: input, shape index: {}]
  %s7 = inlined_call_operand.hbm [shape: f32[2,32], index: 7, kind: input, shape index: {}]
  %s8 = inlined_call_operand.hbm [shape: bf16[2,32,64], index: 8, kind: input, shape index: {}]
  %s9 = inlined_call_operand.hbm [shape: f32[2,64], index: 9, kind: input, shape index: {}]
  %s10 = inlined_call_operand.hbm [shape: bf16[2,32,32], index: 10, kind: input, shape index: {}]
  %s11 = inlined_call_operand.hbm [shape: f32[2,32], index: 11, kind: input, shape index: {}]
  %s12 = inlined_call_operand.hbm [shape: bf16[32,64], index: 12, kind: input, shape index: {}]
  %s13 = inlined_call_operand.hbm [shape: f32[1,64], index: 13, kind: input, shape index: {}]
  %s14 = inlined_call_operand.hbm [shape: bf16[64,32], index: 14, kind: input, shape index: {}]
  %s15 = inlined_call_operand.hbm [shape: f32[1,32], index: 15, kind: input, shape index: {}]
  %s16 = inlined_call_operand.hbm [shape: f32[2,8,32], index: 16, kind: output, shape index: {0}]
  %s17 = inlined_call_operand.hbm [shape: f32[2,4,8,8], index: 17, kind: output, shape index: {1}]
  %s18 = inlined_call_operand.hbm [shape: f32[2,4,8,16], index: 18, kind: output, shape index: {2}]
  %19 = xla_tuple %s16, %s17, %s18
  %s20 = sld [smem:[#allocation0]]
  $region177: #{tpu_custom_call.1} parent=0
    _
  %s22 = ssub.s32 1, %s20
  %s23 = scalar_select 0, %s22, %s20
  $region1: #{tpu_custom_call.1} parent=0
    #allocation3 [shape = 'u8[8192]{0}', space=vmem, size = 0x2000, scoped, tag = 'input window, operand 0']
    #allocation4 [shape = 's32[2]{0}', space=sflag, size = 0x8, scoped, tag = 'scoped memory for tpu_custom_call.1']
    #allocation5 [shape = 's32[2]{0}', space=sflag, size = 0x8, scoped, tag = 'scoped memory for tpu_custom_call.1']
    #allocation6 [shape = 'u8[16384]{0}', space=vmem, size = 0x4000, scoped, tag = 'input window, operand 1']
    #allocation7 [shape = 's32[2]{0}', space=sflag, size = 0x8, scoped, tag = 'scoped memory for tpu_custom_call.1']
    #allocation8 [shape = 'u8[8192]{0}', space=vmem, size = 0x2000, scoped, tag = 'input window, operand 2']
    #allocation9 [shape = 'u8[8192]{0}', space=vmem, size = 0x2000, scoped, tag = 'input window, operand 3']
    #allocation10 [shape = 's32[2]{0}', space=sflag, size = 0x8, scoped, tag = 'scoped memory for tpu_custom_call.1']
    #allocation11 [shape = 'u8[2048]{0}', space=vmem, size = 0x800, scoped, tag = 'input window, operand 4, single buffered']
    #allocation12 [shape = 'u8[2048]{0}', space=vmem, size = 0x800, scoped, tag = 'input window, operand 5, single buffered']
    #allocation13 [shape = 's32[1]{0}', space=sflag, size = 0x4, scoped, tag = 'scoped memory for tpu_custom_call.1']
    #allocation14 [shape = 'u8[16384]{0}', space=vmem, size = 0x4000, scoped, tag = 'input window, operand 6, single buffered']
    #allocation15 [shape = 'u8[1024]{0}', space=vmem, size = 0x400, scoped, tag = 'input window, operand 7, single buffered']
    #allocation16 [shape = 's32[1]{0}', space=sflag, size = 0x4, scoped, tag = 'scoped memory for tpu_custom_call.1']
    #allocation17 [shape = 'u8[16384]{0}', space=vmem, size = 0x4000, scoped, tag = 'input window, operand 8, single buffered']
    #allocation18 [shape = 'u8[1024]{0}', space=vmem, size = 0x400, scoped, tag = 'input window, operand 9, single buffered']
    #allocation19 [shape = 's32[1]{0}', space=sflag, size = 0x4, scoped, tag = 'scoped memory for tpu_custom_call.1']
    #allocation20 [shape = 'u8[16384]{0}', space=vmem, size = 0x4000, scoped, tag = 'input window, operand 10, single buffered']
    #allocation21 [shape = 'u8[1024]{0}', space=vmem, size = 0x400, scoped, tag = 'input window, operand 11, single buffered']
    #allocation22 [shape = 's32[1]{0}', space=sflag, size = 0x4, scoped, tag = 'scoped memory for tpu_custom_call.1']
    #allocation23 [shape = 'u8[8192]{0}', space=vmem, size = 0x2000, scoped, tag = 'input window, operand 12, single buffered']
    #allocation24 [shape = 'u8[512]{0}', space=vmem, size = 0x400, scoped, tag = 'input window, operand 13, single buffered']
    #allocation25 [shape = 's32[1]{0}', space=sflag, size = 0x4, scoped, tag = 'scoped memory for tpu_custom_call.1']
    #allocation26 [shape = 'u8[16384]{0}', space=vmem, size = 0x4000, scoped, tag = 'input window, operand 14, single buffered']
    #allocation27 [shape = 'u8[512]{0}', space=vmem, size = 0x400, scoped, tag = 'input window, operand 15, single buffered']
    #allocation28 [shape = 's32[1]{0}', space=sflag, size = 0x4, scoped, tag = 'scoped memory for tpu_custom_call.1']
    #allocation29 [shape = 'u8[8192]{0}', space=vmem, size = 0x2000, scoped, tag = 'output window, operand 0']
    #allocation30 [shape = 'u8[32768]{0}', space=vmem, size = 0x8000, scoped, tag = 'output window, operand 1']
    #allocation31 [shape = 's32[2]{0}', space=sflag, size = 0x8, scoped, tag = 'scoped memory for tpu_custom_call.1']
    #allocation32 [shape = 'u8[32768]{0}', space=vmem, size = 0x8000, scoped, tag = 'output window, operand 2']
    %24 = vsyncpa [#allocation4], 0
    %s25 = scalar_lea.sflag [#allocation4], 1
    %26 = vsyncpa %s25, 0
    %27 = vsyncpa [#allocation7], 0
    %s28 = scalar_lea.sflag [#allocation7], 1
    %29 = vsyncpa %s28, 0
    %30 = vsyncpa [#allocation10], 0
    %s31 = scalar_lea.sflag [#allocation10], 1
    %32 = vsyncpa %s31, 0
    %33 = vsyncpa [#allocation13], 0
    %34 = vsyncpa [#allocation16], 0
    %35 = vsyncpa [#allocation19], 0
    %36 = vsyncpa [#allocation22], 0
    %37 = vsyncpa [#allocation25], 0
    %38 = vsyncpa [#allocation28], 0
    %39 = vsyncpa [#allocation5], 0
    %s40 = scalar_lea.sflag [#allocation5], 1
    %41 = vsyncpa %s40, 0
    %42 = vsyncpa [#allocation31], 0
    %s43 = scalar_lea.sflag [#allocation31], 1
    %44 = vsyncpa %s43, 0
    loop: start=0, step=1, limit=4
    $region2: #{tpu_custom_call.1} parent=1 // loop_pre_header
      _
    $region3: #{tpu_custom_call.1} parent=1 // loop_header
      %s46 = sphi 0, %s50
      %p47 = scmp.ge.s32.totalorder %s46, 4
      %s56 = sphi 0, %s58
      %s59 = sphi 0, %s56
      %s60 = sphi 0, %s59
      %s76 = sphi 0, %s60
      %s82 = sphi 0, %s84
      %s85 = sphi 0, %s82
      %s86 = sphi 0, %s85
      %s102 = sphi 0, %s86
      %s108 = sphi 0, %s110
      %s111 = sphi 0, %s108
      %s112 = sphi 0, %s111
      %s128 = sphi 0, %s112
      %s134 = sphi 0, %s136
      %s137 = sphi 0, %s134
      %s138 = sphi 0, %s137
      %s154 = sphi 0, %s138
      %s158 = sphi 0, %s158
      %s160 = sphi 0, %s158
      %s161 = sphi 0, %s160
      %s175 = sphi 0, %s161
      %s179 = sphi 0, %s179
      %s181 = sphi 0, %s179
      %s182 = sphi 0, %s181
      %s196 = sphi 0, %s182
      %s200 = sphi 0, %s200
      %s202 = sphi 0, %s200
      %s203 = sphi 0, %s202
      %s217 = sphi 0, %s203
      %s221 = sphi 0, %s221
      %s223 = sphi 0, %s221
      %s224 = sphi 0, %s223
      %s238 = sphi 0, %s224
      %s242 = sphi 0, %s242
      %s244 = sphi 0, %s242
      %s245 = sphi 0, %s244
      %s259 = sphi 0, %s245
      %s263 = sphi 0, %s263
      %s265 = sphi 0, %s263
      %s266 = sphi 0, %s265
      %s280 = sphi 0, %s266
      %s284 = sphi 0, %s284
      %s286 = sphi 0, %s284
      %s287 = sphi 0, %s286
      %s301 = sphi 0, %s287
      %s305 = sphi 0, %s305
      %s307 = sphi 0, %s305
      %s308 = sphi 0, %s307
      %s322 = sphi 0, %s308
      %s326 = sphi 0, %s326
      %s328 = sphi 0, %s326
      %s329 = sphi 0, %s328
      %s343 = sphi 0, %s329
      %s347 = sphi 0, %s347
      %s349 = sphi 0, %s347
      %s350 = sphi 0, %s349
      %s364 = sphi 0, %s350
      %s368 = sphi 0, %s368
      %s370 = sphi 0, %s368
      %s371 = sphi 0, %s370
      %s385 = sphi 0, %s371
      %s389 = sphi 0, %s389
      %s391 = sphi 0, %s389
      %s392 = sphi 0, %s391
      %s406 = sphi 0, %s392
      %s412 = sphi 0, %s414
      %s415 = sphi 0, %s412
      %s416 = sphi 0, %s415
      %s432 = sphi 0, %s416
      %s438 = sphi 0, %s440
      %s441 = sphi 0, %s438
      %s442 = sphi 0, %s441
      %s458 = sphi 0, %s442
      %s464 = sphi 0, %s466
      %s467 = sphi 0, %s464
      %s468 = sphi 0, %s467
      %s484 = sphi 0, %s468
    $region4: #{tpu_custom_call.1} parent=1 // loop_header_branch
      %49 = sbr.rel (%p47) target = $region8
    $region5: #{tpu_custom_call.1} parent=1 // loop_body
      %s51 = ssub.s32 %s46, 1
      %s52 = ssub.s32 %s46, 2
      %s53 = sadd.s32 %s46, 1
      %s54 = ssub.s32 %s46, %s53
      %p55 = scmp.eq.s32.totalorder %s54, 0
      %s57 = sadd.s32 %s56, 1
      %s58 = scalar_select %p55, %s56, %s57
      %p61 = pneg %p55
      %p62 = scmp.eq.s32.totalorder %s46, 1
      %p63 = por %p61, %p62
      %p64 = scmp.ne.s32.totalorder %s56, %s59
      %p65 = scmp.eq.s32.totalorder %s46, 0
      %p66 = por %p64, %p65
      %p67 = scmp.ne.s32.totalorder %s56, %s59
      %p68 = scmp.eq.s32.totalorder %s51, 1
      %p69 = por %p67, %p68
      %p70 = scmp.ne.s32.totalorder %s59, %s60
      %p71 = scmp.eq.s32.totalorder %s51, 0
      %p72 = por %p70, %p71
      %p73 = scmp.ne.s32.totalorder %s59, %s60
      %p74 = scmp.eq.s32.totalorder %s52, 1
      %p75 = por %p73, %p74
      %p77 = scmp.ne.s32.totalorder %s60, %s76
      %p78 = scmp.eq.s32.totalorder %s52, 0
      %p79 = por %p77, %p78
      %s80 = ssub.s32 %s46, %s53
      %p81 = scmp.eq.s32.totalorder %s80, 0
      %s83 = sadd.s32 %s82, 1
      %s84 = scalar_select %p81, %s82, %s83
      %p87 = pneg %p81
      %p88 = scmp.eq.s32.totalorder %s46, 1
      %p89 = por %p87, %p88
      %p90 = scmp.ne.s32.totalorder %s82, %s85
      %p91 = scmp.eq.s32.totalorder %s46, 0
      %p92 = por %p90, %p91
      %p93 = scmp.ne.s32.totalorder %s82, %s85
      %p94 = scmp.eq.s32.totalorder %s51, 1
      %p95 = por %p93, %p94
      %p96 = scmp.ne.s32.totalorder %s85, %s86
      %p97 = scmp.eq.s32.totalorder %s51, 0
      %p98 = por %p96, %p97
      %p99 = scmp.ne.s32.totalorder %s85, %s86
      %p100 = scmp.eq.s32.totalorder %s52, 1
      %p101 = por %p99, %p100
      %p103 = scmp.ne.s32.totalorder %s86, %s102
      %p104 = scmp.eq.s32.totalorder %s52, 0
      %p105 = por %p103, %p104
      %s106 = ssub.s32 %s46, %s53
      %p107 = scmp.eq.s32.totalorder %s106, 0
      %s109 = sadd.s32 %s108, 1
      %s110 = scalar_select %p107, %s108, %s109
      %p113 = pneg %p107
      %p114 = scmp.eq.s32.totalorder %s46, 1
      %p115 = por %p113, %p114
      %p116 = scmp.ne.s32.totalorder %s108, %s111
      %p117 = scmp.eq.s32.totalorder %s46, 0
      %p118 = por %p116, %p117
      %p119 = scmp.ne.s32.totalorder %s108, %s111
      %p120 = scmp.eq.s32.totalorder %s51, 1
      %p121 = por %p119, %p120
      %p122 = scmp.ne.s32.totalorder %s111, %s112
      %p123 = scmp.eq.s32.totalorder %s51, 0
      %p124 = por %p122, %p123
      %p125 = scmp.ne.s32.totalorder %s111, %s112
      %p126 = scmp.eq.s32.totalorder %s52, 1
      %p127 = por %p125, %p126
      %p129 = scmp.ne.s32.totalorder %s112, %s128
      %p130 = scmp.eq.s32.totalorder %s52, 0
      %p131 = por %p129, %p130
      %s132 = ssub.s32 %s46, %s53
      %p133 = scmp.eq.s32.totalorder %s132, 0
      %s135 = sadd.s32 %s134, 1
      %s136 = scalar_select %p133, %s134, %s135
      %p139 = pneg %p133
      %p140 = scmp.eq.s32.totalorder %s46, 1
      %p141 = por %p139, %p140
      %p142 = scmp.ne.s32.totalorder %s134, %s137
      %p143 = scmp.eq.s32.totalorder %s46, 0
      %p144 = por %p142, %p143
      %p145 = scmp.ne.s32.totalorder %s134, %s137
      %p146 = scmp.eq.s32.totalorder %s51, 1
      %p147 = por %p145, %p146
      %p148 = scmp.ne.s32.totalorder %s137, %s138
      %p149 = scmp.eq.s32.totalorder %s51, 0
      %p150 = por %p148, %p149
      %p151 = scmp.ne.s32.totalorder %s137, %s138
      %p152 = scmp.eq.s32.totalorder %s52, 1
      %p153 = por %p151, %p152
      %p155 = scmp.ne.s32.totalorder %s138, %s154
      %p156 = scmp.eq.s32.totalorder %s52, 0
      %p157 = por %p155, %p156
      %s159 = sadd.s32 %s158, 1
      %p162 = scmp.eq.s32.totalorder %s46, 1
      %p163 = scmp.ne.s32.totalorder %s158, %s160
      %p164 = scmp.eq.s32.totalorder %s46, 0
      %p165 = por %p163, %p164
      %p166 = scmp.ne.s32.totalorder %s158, %s160
      %p167 = scmp.eq.s32.totalorder %s51, 1
      %p168 = por %p166, %p167
      %p169 = scmp.ne.s32.totalorder %s160, %s161
      %p170 = scmp.eq.s32.totalorder %s51, 0
      %p171 = por %p169, %p170
      %p172 = scmp.ne.s32.totalorder %s160, %s161
      %p173 = scmp.eq.s32.totalorder %s52, 1
      %p174 = por %p172, %p173
      %p176 = scmp.ne.s32.totalorder %s161, %s175
      %p177 = scmp.eq.s32.totalorder %s52, 0
      %p178 = por %p176, %p177
      %s180 = sadd.s32 %s179, 1
      %p183 = scmp.eq.s32.totalorder %s46, 1
      %p184 = scmp.ne.s32.totalorder %s179, %s181
      %p185 = scmp.eq.s32.totalorder %s46, 0
      %p186 = por %p184, %p185
      %p187 = scmp.ne.s32.totalorder %s179, %s181
      %p188 = scmp.eq.s32.totalorder %s51, 1
      %p189 = por %p187, %p188
      %p190 = scmp.ne.s32.totalorder %s181, %s182
      %p191 = scmp.eq.s32.totalorder %s51, 0
      %p192 = por %p190, %p191
      %p193 = scmp.ne.s32.totalorder %s181, %s182
      %p194 = scmp.eq.s32.totalorder %s52, 1
      %p195 = por %p193, %p194
      %p197 = scmp.ne.s32.totalorder %s182, %s196
      %p198 = scmp.eq.s32.totalorder %s52, 0
      %p199 = por %p197, %p198
      %s201 = sadd.s32 %s200, 1
      %p204 = scmp.eq.s32.totalorder %s46, 1
      %p205 = scmp.ne.s32.totalorder %s200, %s202
      %p206 = scmp.eq.s32.totalorder %s46, 0
      %p207 = por %p205, %p206
      %p208 = scmp.ne.s32.totalorder %s200, %s202
      %p209 = scmp.eq.s32.totalorder %s51, 1
      %p210 = por %p208, %p209
      %p211 = scmp.ne.s32.totalorder %s202, %s203
      %p212 = scmp.eq.s32.totalorder %s51, 0
      %p213 = por %p211, %p212
      %p214 = scmp.ne.s32.totalorder %s202, %s203
      %p215 = scmp.eq.s32.totalorder %s52, 1
      %p216 = por %p214, %p215
      %p218 = scmp.ne.s32.totalorder %s203, %s217
      %p219 = scmp.eq.s32.totalorder %s52, 0
      %p220 = por %p218, %p219
      %s222 = sadd.s32 %s221, 1
      %p225 = scmp.eq.s32.totalorder %s46, 1
      %p226 = scmp.ne.s32.totalorder %s221, %s223
      %p227 = scmp.eq.s32.totalorder %s46, 0
      %p228 = por %p226, %p227
      %p229 = scmp.ne.s32.totalorder %s221, %s223
      %p230 = scmp.eq.s32.totalorder %s51, 1
      %p231 = por %p229, %p230
      %p232 = scmp.ne.s32.totalorder %s223, %s224
      %p233 = scmp.eq.s32.totalorder %s51, 0
      %p234 = por %p232, %p233
      %p235 = scmp.ne.s32.totalorder %s223, %s224
      %p236 = scmp.eq.s32.totalorder %s52, 1
      %p237 = por %p235, %p236
      %p239 = scmp.ne.s32.totalorder %s224, %s238
      %p240 = scmp.eq.s32.totalorder %s52, 0
      %p241 = por %p239, %p240
      %s243 = sadd.s32 %s242, 1
      %p246 = scmp.eq.s32.totalorder %s46, 1
      %p247 = scmp.ne.s32.totalorder %s242, %s244
      %p248 = scmp.eq.s32.totalorder %s46, 0
      %p249 = por %p247, %p248
      %p250 = scmp.ne.s32.totalorder %s242, %s244
      %p251 = scmp.eq.s32.totalorder %s51, 1
      %p252 = por %p250, %p251
      %p253 = scmp.ne.s32.totalorder %s244, %s245
      %p254 = scmp.eq.s32.totalorder %s51, 0
      %p255 = por %p253, %p254
      %p256 = scmp.ne.s32.totalorder %s244, %s245
      %p257 = scmp.eq.s32.totalorder %s52, 1
      %p258 = por %p256, %p257
      %p260 = scmp.ne.s32.totalorder %s245, %s259
      %p261 = scmp.eq.s32.totalorder %s52, 0
      %p262 = por %p260, %p261
      %s264 = sadd.s32 %s263, 1
      %p267 = scmp.eq.s32.totalorder %s46, 1
      %p268 = scmp.ne.s32.totalorder %s263, %s265
      %p269 = scmp.eq.s32.totalorder %s46, 0
      %p270 = por %p268, %p269
      %p271 = scmp.ne.s32.totalorder %s263, %s265
      %p272 = scmp.eq.s32.totalorder %s51, 1
      %p273 = por %p271, %p272
      %p274 = scmp.ne.s32.totalorder %s265, %s266
      %p275 = scmp.eq.s32.totalorder %s51, 0
      %p276 = por %p274, %p275
      %p277 = scmp.ne.s32.totalorder %s265, %s266
      %p278 = scmp.eq.s32.totalorder %s52, 1
      %p279 = por %p277, %p278
      %p281 = scmp.ne.s32.totalorder %s266, %s280
      %p282 = scmp.eq.s32.totalorder %s52, 0
      %p283 = por %p281, %p282
      %s285 = sadd.s32 %s284, 1
      %p288 = scmp.eq.s32.totalorder %s46, 1
      %p289 = scmp.ne.s32.totalorder %s284, %s286
      %p290 = scmp.eq.s32.totalorder %s46, 0
      %p291 = por %p289, %p290
      %p292 = scmp.ne.s32.totalorder %s284, %s286
      %p293 = scmp.eq.s32.totalorder %s51, 1
      %p294 = por %p292, %p293
      %p295 = scmp.ne.s32.totalorder %s286, %s287
      %p296 = scmp.eq.s32.totalorder %s51, 0
      %p297 = por %p295, %p296
      %p298 = scmp.ne.s32.totalorder %s286, %s287
      %p299 = scmp.eq.s32.totalorder %s52, 1
      %p300 = por %p298, %p299
      %p302 = scmp.ne.s32.totalorder %s287, %s301
      %p303 = scmp.eq.s32.totalorder %s52, 0
      %p304 = por %p302, %p303
      %s306 = sadd.s32 %s305, 1
      %p309 = scmp.eq.s32.totalorder %s46, 1
      %p310 = scmp.ne.s32.totalorder %s305, %s307
      %p311 = scmp.eq.s32.totalorder %s46, 0
      %p312 = por %p310, %p311
      %p313 = scmp.ne.s32.totalorder %s305, %s307
      %p314 = scmp.eq.s32.totalorder %s51, 1
      %p315 = por %p313, %p314
      %p316 = scmp.ne.s32.totalorder %s307, %s308
      %p317 = scmp.eq.s32.totalorder %s51, 0
      %p318 = por %p316, %p317
      %p319 = scmp.ne.s32.totalorder %s307, %s308
      %p320 = scmp.eq.s32.totalorder %s52, 1
      %p321 = por %p319, %p320
      %p323 = scmp.ne.s32.totalorder %s308, %s322
      %p324 = scmp.eq.s32.totalorder %s52, 0
      %p325 = por %p323, %p324
      %s327 = sadd.s32 %s326, 1
      %p330 = scmp.eq.s32.totalorder %s46, 1
      %p331 = scmp.ne.s32.totalorder %s326, %s328
      %p332 = scmp.eq.s32.totalorder %s46, 0
      %p333 = por %p331, %p332
      %p334 = scmp.ne.s32.totalorder %s326, %s328
      %p335 = scmp.eq.s32.totalorder %s51, 1
      %p336 = por %p334, %p335
      %p337 = scmp.ne.s32.totalorder %s328, %s329
      %p338 = scmp.eq.s32.totalorder %s51, 0
      %p339 = por %p337, %p338
      %p340 = scmp.ne.s32.totalorder %s328, %s329
      %p341 = scmp.eq.s32.totalorder %s52, 1
      %p342 = por %p340, %p341
      %p344 = scmp.ne.s32.totalorder %s329, %s343
      %p345 = scmp.eq.s32.totalorder %s52, 0
      %p346 = por %p344, %p345
      %s348 = sadd.s32 %s347, 1
      %p351 = scmp.eq.s32.totalorder %s46, 1
      %p352 = scmp.ne.s32.totalorder %s347, %s349
      %p353 = scmp.eq.s32.totalorder %s46, 0
      %p354 = por %p352, %p353
      %p355 = scmp.ne.s32.totalorder %s347, %s349
      %p356 = scmp.eq.s32.totalorder %s51, 1
      %p357 = por %p355, %p356
      %p358 = scmp.ne.s32.totalorder %s349, %s350
      %p359 = scmp.eq.s32.totalorder %s51, 0
      %p360 = por %p358, %p359
      %p361 = scmp.ne.s32.totalorder %s349, %s350
      %p362 = scmp.eq.s32.totalorder %s52, 1
      %p363 = por %p361, %p362
      %p365 = scmp.ne.s32.totalorder %s350, %s364
      %p366 = scmp.eq.s32.totalorder %s52, 0
      %p367 = por %p365, %p366
      %s369 = sadd.s32 %s368, 1
      %p372 = scmp.eq.s32.totalorder %s46, 1
      %p373 = scmp.ne.s32.totalorder %s368, %s370
      %p374 = scmp.eq.s32.totalorder %s46, 0
      %p375 = por %p373, %p374
      %p376 = scmp.ne.s32.totalorder %s368, %s370
      %p377 = scmp.eq.s32.totalorder %s51, 1
      %p378 = por %p376, %p377
      %p379 = scmp.ne.s32.totalorder %s370, %s371
      %p380 = scmp.eq.s32.totalorder %s51, 0
      %p381 = por %p379, %p380
      %p382 = scmp.ne.s32.totalorder %s370, %s371
      %p383 = scmp.eq.s32.totalorder %s52, 1
      %p384 = por %p382, %p383
      %p386 = scmp.ne.s32.totalorder %s371, %s385
      %p387 = scmp.eq.s32.totalorder %s52, 0
      %p388 = por %p386, %p387
      %s390 = sadd.s32 %s389, 1
      %p393 = scmp.eq.s32.totalorder %s46, 1
      %p394 = scmp.ne.s32.totalorder %s389, %s391
      %p395 = scmp.eq.s32.totalorder %s46, 0
      %p396 = por %p394, %p395
      %p397 = scmp.ne.s32.totalorder %s389, %s391
      %p398 = scmp.eq.s32.totalorder %s51, 1
      %p399 = por %p397, %p398
      %p400 = scmp.ne.s32.totalorder %s391, %s392
      %p401 = scmp.eq.s32.totalorder %s51, 0
      %p402 = por %p400, %p401
      %p403 = scmp.ne.s32.totalorder %s391, %s392
      %p404 = scmp.eq.s32.totalorder %s52, 1
      %p405 = por %p403, %p404
      %p407 = scmp.ne.s32.totalorder %s392, %s406
      %p408 = scmp.eq.s32.totalorder %s52, 0
      %p409 = por %p407, %p408
      %s410 = ssub.s32 %s46, %s53
      %p411 = scmp.eq.s32.totalorder %s410, 0
      %s413 = sadd.s32 %s412, 1
      %s414 = scalar_select %p411, %s412, %s413
      %p417 = pneg %p411
      %p418 = scmp.eq.s32.totalorder %s46, 1
      %p419 = por %p417, %p418
      %p420 = scmp.ne.s32.totalorder %s412, %s415
      %p421 = scmp.eq.s32.totalorder %s46, 0
      %p422 = por %p420, %p421
      %p423 = scmp.ne.s32.totalorder %s412, %s415
      %p424 = scmp.eq.s32.totalorder %s51, 1
      %p425 = por %p423, %p424
      %p426 = scmp.ne.s32.totalorder %s415, %s416
      %p427 = scmp.eq.s32.totalorder %s51, 0
      %p428 = por %p426, %p427
      %p429 = scmp.ne.s32.totalorder %s415, %s416
      %p430 = scmp.eq.s32.totalorder %s52, 1
      %p431 = por %p429, %p430
      %p433 = scmp.ne.s32.totalorder %s416, %s432
      %p434 = scmp.eq.s32.totalorder %s52, 0
      %p435 = por %p433, %p434
      %s436 = ssub.s32 %s46, %s53
      %p437 = scmp.eq.s32.totalorder %s436, 0
      %s439 = sadd.s32 %s438, 1
      %s440 = scalar_select %p437, %s438, %s439
      %p443 = pneg %p437
      %p444 = scmp.eq.s32.totalorder %s46, 1
      %p445 = por %p443, %p444
      %p446 = scmp.ne.s32.totalorder %s438, %s441
      %p447 = scmp.eq.s32.totalorder %s46, 0
      %p448 = por %p446, %p447
      %p449 = scmp.ne.s32.totalorder %s438, %s441
      %p450 = scmp.eq.s32.totalorder %s51, 1
      %p451 = por %p449, %p450
      %p452 = scmp.ne.s32.totalorder %s441, %s442
      %p453 = scmp.eq.s32.totalorder %s51, 0
      %p454 = por %p452, %p453
      %p455 = scmp.ne.s32.totalorder %s441, %s442
      %p456 = scmp.eq.s32.totalorder %s52, 1
      %p457 = por %p455, %p456
      %p459 = scmp.ne.s32.totalorder %s442, %s458
      %p460 = scmp.eq.s32.totalorder %s52, 0
      %p461 = por %p459, %p460
      %s462 = ssub.s32 %s46, %s53
      %p463 = scmp.eq.s32.totalorder %s462, 0
      %s465 = sadd.s32 %s464, 1
      %s466 = scalar_select %p463, %s464, %s465
      %p469 = pneg %p463
      %p470 = scmp.eq.s32.totalorder %s46, 1
      %p471 = por %p469, %p470
      %p472 = scmp.ne.s32.totalorder %s464, %s467
      %p473 = scmp.eq.s32.totalorder %s46, 0
      %p474 = por %p472, %p473
      %p475 = scmp.ne.s32.totalorder %s464, %s467
      %p476 = scmp.eq.s32.totalorder %s51, 1
      %p477 = por %p475, %p476
      %p478 = scmp.ne.s32.totalorder %s467, %s468
      %p479 = scmp.eq.s32.totalorder %s51, 0
      %p480 = por %p478, %p479
      %p481 = scmp.ne.s32.totalorder %s467, %s468
      %p482 = scmp.eq.s32.totalorder %s52, 1
      %p483 = por %p481, %p482
      %p485 = scmp.ne.s32.totalorder %s468, %s484
      %p486 = scmp.eq.s32.totalorder %s52, 0
      %p487 = por %p485, %p486
      %p488 = scmp.le.s32.totalorder 1, %s46
      %p489 = scmp.lt.s32.totalorder %s46, 3
      %p490 = pnand %p488, %p489
      %p491 = pneg %p490
      // Predicated region
      $region9: #{tpu_custom_call.1} parent=5 // pred_check
        _
      $region10: #{tpu_custom_call.1} parent=5 // pred_check_branch
        %493 = sbr.rel (%p490) target = $region12
      $region11: #{tpu_custom_call.1} parent=5 // pred_region
        %s494 = ssub.s32 %s46, 1
        // Predicated region
        $region13: #{tpu_custom_call.1} parent=11 // pred_check
          %p495 = pneg %p171
        $region14: #{tpu_custom_call.1} parent=11 // pred_check_branch
          %497 = sbr.rel (%p495) target = $region16
        $region15: #{tpu_custom_call.1} parent=11 // pred_region
          %s499 = ssub.s32 64, 64
          %500 = vsyncadd [#allocation10], %s499
          %s502 = sshll.u32 [#allocation11], 4
          %s503 = int_to_ptr.vmem [resolvable:$true] %s502
          %505 = dma.hbm_to_vmem [thread:$0]  %s4, 64, %s503, [#allocation10]
        $region16: #{tpu_custom_call.1} parent=11 // pred_fallthru
          _
        // Predicated region
        $region17: #{tpu_custom_call.1} parent=11 // pred_check
          %p506 = pneg %p192
        $region18: #{tpu_custom_call.1} parent=11 // pred_check_branch
          %508 = sbr.rel (%p506) target = $region20
        $region19: #{tpu_custom_call.1} parent=11 // pred_region
          %s510 = ssub.s32 64, 64
          %511 = vsyncadd [#allocation13], %s510
          %s513 = sshll.u32 [#allocation12], 4
          %s514 = int_to_ptr.vmem [resolvable:$true] %s513
          %516 = dma.hbm_to_vmem [thread:$0]  %s5, 64, %s514, [#allocation13]
        $region20: #{tpu_custom_call.1} parent=11 // pred_fallthru
          _
        // Predicated region
        $region21: #{tpu_custom_call.1} parent=11 // pred_check
          %p517 = pneg %p213
        $region22: #{tpu_custom_call.1} parent=11 // pred_check_branch
          %519 = sbr.rel (%p517) target = $region24
        $region23: #{tpu_custom_call.1} parent=11 // pred_region
          %s521 = ssub.s32 512, 512
          %522 = vsyncadd [#allocation13], %s521
          %s523 = sshll.u32 [#allocation14], 4
          %s524 = int_to_ptr.vmem [resolvable:$true] %s523
          %529 = dma.hbm_to_vmem [thread:$0]  %s6, 512, %s524, [#allocation13], 64, 64, 4
        $region24: #{tpu_custom_call.1} parent=11 // pred_fallthru
          _
        // Predicated region
        $region25: #{tpu_custom_call.1} parent=11 // pred_check
          %p530 = pneg %p234
        $region26: #{tpu_custom_call.1} parent=11 // pred_check_branch
          %532 = sbr.rel (%p530) target = $region28
        $region27: #{tpu_custom_call.1} parent=11 // pred_region
          %s534 = ssub.s32 32, 32
          %535 = vsyncadd [#allocation16], %s534
          %s537 = sshll.u32 [#allocation15], 4
          %s538 = int_to_ptr.vmem [resolvable:$true] %s537
          %540 = dma.hbm_to_vmem [thread:$0]  %s7, 32, %s538, [#allocation16]
        $region28: #{tpu_custom_call.1} parent=11 // pred_fallthru
          _
        // Predicated region
        $region29: #{tpu_custom_call.1} parent=11 // pred_check
          %p541 = pneg %p255
        $region30: #{tpu_custom_call.1} parent=11 // pred_check_branch
          %543 = sbr.rel (%p541) target = $region32
        $region31: #{tpu_custom_call.1} parent=11 // pred_region
          %s545 = ssub.s32 512, 512
          %546 = vsyncadd [#allocation16], %s545
          %s547 = sshll.u32 [#allocation17], 4
          %s548 = int_to_ptr.vmem [resolvable:$true] %s547
          %553 = dma.hbm_to_vmem [thread:$0]  %s8, 512, %s548, [#allocation16], 64, 64, 4
        $region32: #{tpu_custom_call.1} parent=11 // pred_fallthru
          _
        // Predicated region
        $region33: #{tpu_custom_call.1} parent=11 // pred_check
          %p554 = pneg %p276
        $region34: #{tpu_custom_call.1} parent=11 // pred_check_branch
          %556 = sbr.rel (%p554) target = $region36
        $region35: #{tpu_custom_call.1} parent=11 // pred_region
          %s558 = ssub.s32 32, 32
          %559 = vsyncadd [#allocation19], %s558
          %s561 = sshll.u32 [#allocation18], 4
          %s562 = int_to_ptr.vmem [resolvable:$true] %s561
          %564 = dma.hbm_to_vmem [thread:$0]  %s9, 32, %s562, [#allocation19]
        $region36: #{tpu_custom_call.1} parent=11 // pred_fallthru
          _
        // Predicated region
        $region37: #{tpu_custom_call.1} parent=11 // pred_check
          %p565 = pneg %p297
        $region38: #{tpu_custom_call.1} parent=11 // pred_check_branch
          %567 = sbr.rel (%p565) target = $region40
        $region39: #{tpu_custom_call.1} parent=11 // pred_region
          %s569 = ssub.s32 512, 512
          %570 = vsyncadd [#allocation19], %s569
          %s571 = sshll.u32 [#allocation20], 4
          %s572 = int_to_ptr.vmem [resolvable:$true] %s571
          %577 = dma.hbm_to_vmem [thread:$0]  %s10, 512, %s572, [#allocation19], 64, 64, 4
        $region40: #{tpu_custom_call.1} parent=11 // pred_fallthru
          _
        // Predicated region
        $region41: #{tpu_custom_call.1} parent=11 // pred_check
          %p578 = pneg %p318
        $region42: #{tpu_custom_call.1} parent=11 // pred_check_branch
          %580 = sbr.rel (%p578) target = $region44
        $region43: #{tpu_custom_call.1} parent=11 // pred_region
          %s582 = ssub.s32 32, 32
          %583 = vsyncadd [#allocation22], %s582
          %s585 = sshll.u32 [#allocation21], 4
          %s586 = int_to_ptr.vmem [resolvable:$true] %s585
          %588 = dma.hbm_to_vmem [thread:$0]  %s11, 32, %s586, [#allocation22]
        $region44: #{tpu_custom_call.1} parent=11 // pred_fallthru
          _
        // Predicated region
        $region45: #{tpu_custom_call.1} parent=11 // pred_check
          %p589 = pneg %p339
        $region46: #{tpu_custom_call.1} parent=11 // pred_check_branch
          %591 = sbr.rel (%p589) target = $region48
        $region47: #{tpu_custom_call.1} parent=11 // pred_region
          %s593 = ssub.s32 256, 256
          %594 = vsyncadd [#allocation22], %s593
          %s595 = sshll.u32 [#allocation23], 4
          %s596 = int_to_ptr.vmem [resolvable:$true] %s595
          %601 = dma.hbm_to_vmem [thread:$0]  %s12, 256, %s596, [#allocation22], 64, 64, 4
        $region48: #{tpu_custom_call.1} parent=11 // pred_fallthru
          _
        // Predicated region
        $region49: #{tpu_custom_call.1} parent=11 // pred_check
          %p602 = pneg %p360
        $region50: #{tpu_custom_call.1} parent=11 // pred_check_branch
          %604 = sbr.rel (%p602) target = $region52
        $region51: #{tpu_custom_call.1} parent=11 // pred_region
          %s606 = ssub.s32 16, 16
          %607 = vsyncadd [#allocation25], %s606
          %s609 = sshll.u32 [#allocation24], 4
          %s610 = int_to_ptr.vmem [resolvable:$true] %s609
          %612 = dma.hbm_to_vmem [thread:$0]  %s13, 16, %s610, [#allocation25]
        $region52: #{tpu_custom_call.1} parent=11 // pred_fallthru
          _
        // Predicated region
        $region53: #{tpu_custom_call.1} parent=11 // pred_check
          %p613 = pneg %p381
        $region54: #{tpu_custom_call.1} parent=11 // pred_check_branch
          %615 = sbr.rel (%p613) target = $region56
        $region55: #{tpu_custom_call.1} parent=11 // pred_region
          %s617 = ssub.s32 512, 512
          %618 = vsyncadd [#allocation25], %s617
          %s619 = sshll.u32 [#allocation26], 4
          %s620 = int_to_ptr.vmem [resolvable:$true] %s619
          %625 = dma.hbm_to_vmem [thread:$0]  %s14, 512, %s620, [#allocation25], 64, 64, 4
        $region56: #{tpu_custom_call.1} parent=11 // pred_fallthru
          _
        // Predicated region
        $region57: #{tpu_custom_call.1} parent=11 // pred_check
          %p626 = pneg %p402
        $region58: #{tpu_custom_call.1} parent=11 // pred_check_branch
          %628 = sbr.rel (%p626) target = $region60
        $region59: #{tpu_custom_call.1} parent=11 // pred_region
          %s630 = ssub.s32 16, 16
          %631 = vsyncadd [#allocation28], %s630
          %s633 = sshll.u32 [#allocation27], 4
          %s634 = int_to_ptr.vmem [resolvable:$true] %s633
          %636 = dma.hbm_to_vmem [thread:$0]  %s15, 16, %s634, [#allocation28]
        $region60: #{tpu_custom_call.1} parent=11 // pred_fallthru
          _
      $region12: #{tpu_custom_call.1} parent=5 // pred_fallthru
        _
      %p637 = scmp.lt.s32.totalorder %s46, 2
      // Predicated region
      $region61: #{tpu_custom_call.1} parent=5 // pred_check
        %p638 = pneg %p637
      $region62: #{tpu_custom_call.1} parent=5 // pred_check_branch
        %640 = sbr.rel (%p638) target = $region64
      $region63: #{tpu_custom_call.1} parent=5 // pred_region
        // Predicated region
        $region65: #{tpu_custom_call.1} parent=63 // pred_check
          %p641 = pneg %p66
        $region66: #{tpu_custom_call.1} parent=63 // pred_check_branch
          %643 = sbr.rel (%p641) target = $region68
        $region67: #{tpu_custom_call.1} parent=63 // pred_region
          %s644 = sand.u32 %s56, 1
          %s645 = scalar_lea.sflag [#allocation4], %s644
          %s646 = sand.u32 %s56, 1
          %s647 = smul.addr %s646, 8
          %s648 = scalar_lea.vmem [#allocation3], %s647
          %s650 = ssub.s32 128, 128
          %651 = vsyncadd %s645, %s650
          %s652 = smul.addr %s46, 128
          %s653 = scalar_lea.hbm %s0, %s652
          %s655 = sshll.u32 %s648, 4
          %s656 = int_to_ptr.vmem [resolvable:$true] %s655
          %658 = dma.hbm_to_vmem [thread:$0]  %s653, 128, %s656, %s645
        $region68: #{tpu_custom_call.1} parent=63 // pred_fallthru
          _
        // Predicated region
        $region69: #{tpu_custom_call.1} parent=63 // pred_check
          %p659 = pneg %p92
        $region70: #{tpu_custom_call.1} parent=63 // pred_check_branch
          %661 = sbr.rel (%p659) target = $region72
        $region71: #{tpu_custom_call.1} parent=63 // pred_region
          %s662 = sand.u32 %s46, 1
          %s663 = scalar_lea.sflag [#allocation7], %s662
          %s664 = sand.u32 %s82, 1
          %s665 = smul.addr %s664, 16
          %s666 = scalar_lea.vmem [#allocation6], %s665
          %s668 = ssub.s32 256, 256
          %669 = vsyncadd %s663, %s668
          %s670 = smul.addr %s46, 2
          %s671 = smul.addr %s670, 128
          %s672 = scalar_lea.hbm %s1, %s671
          %s673 = sshll.u32 %s666, 4
          %s674 = int_to_ptr.vmem [resolvable:$true] %s673
          %679 = dma.hbm_to_vmem [thread:$0]  %s672, 256, %s674, %s663, 128, 128, 8
        $region72: #{tpu_custom_call.1} parent=63 // pred_fallthru
          _
        // Predicated region
        $region73: #{tpu_custom_call.1} parent=63 // pred_check
          %p680 = pneg %p118
        $region74: #{tpu_custom_call.1} parent=63 // pred_check_branch
          %682 = sbr.rel (%p680) target = $region76
        $region75: #{tpu_custom_call.1} parent=63 // pred_region
          %s683 = sand.u32 %s46, 1
          %s684 = scalar_lea.sflag [#allocation7], %s683
          %s685 = sand.u32 %s108, 1
          %s686 = smul.addr %s685, 8
          %s687 = scalar_lea.vmem [#allocation8], %s686
          %s689 = ssub.s32 128, 128
          %690 = vsyncadd %s684, %s689
          %s691 = smul.addr %s46, 128
          %s692 = scalar_lea.hbm %s2, %s691
          %s694 = sshll.u32 %s687, 4
          %s695 = int_to_ptr.vmem [resolvable:$true] %s694
          %697 = dma.hbm_to_vmem [thread:$0]  %s692, 128, %s695, %s684
        $region76: #{tpu_custom_call.1} parent=63 // pred_fallthru
          _
        // Predicated region
        $region77: #{tpu_custom_call.1} parent=63 // pred_check
          %p698 = pneg %p144
        $region78: #{tpu_custom_call.1} parent=63 // pred_check_branch
          %700 = sbr.rel (%p698) target = $region80
        $region79: #{tpu_custom_call.1} parent=63 // pred_region
          %s701 = sand.u32 %s46, 1
          %s702 = scalar_lea.sflag [#allocation10], %s701
          %s703 = sand.u32 %s134, 1
          %s704 = smul.addr %s703, 8
          %s705 = scalar_lea.vmem [#allocation9], %s704
          %s707 = ssub.s32 128, 128
          %708 = vsyncadd %s702, %s707
          %s709 = smul.addr %s46, 128
          %s710 = scalar_lea.hbm %s3, %s709
          %s712 = sshll.u32 %s705, 4
          %s713 = int_to_ptr.vmem [resolvable:$true] %s712
          %715 = dma.hbm_to_vmem [thread:$0]  %s710, 128, %s713, %s702
        $region80: #{tpu_custom_call.1} parent=63 // pred_fallthru
          _
      $region64: #{tpu_custom_call.1} parent=5 // pred_fallthru
        _
      %p716 = scmp.le.s32.totalorder 1, %s46
      %p717 = scmp.lt.s32.totalorder %s46, 3
      %p718 = pnand %p716, %p717
      %p719 = pneg %p718
      // Predicated region
      $region81: #{tpu_custom_call.1} parent=5 // pred_check
        _
      $region82: #{tpu_custom_call.1} parent=5 // pred_check_branch
        %721 = sbr.rel (%p718) target = $region84
      $region83: #{tpu_custom_call.1} parent=5 // pred_region
        %s722 = ssub.s32 %s46, 1
        %s723 = sand.u32 %s59, 1
        %s724 = scalar_lea.sflag [#allocation4], %s723
        %s725 = sand.u32 %s59, 1
        %s726 = smul.addr %s725, 8
        %s727 = scalar_lea.vmem [#allocation3], %s726
        // Predicated region
        $region85: #{tpu_custom_call.1} parent=83 // pred_check
          %p728 = pneg %p72
        $region86: #{tpu_custom_call.1} parent=83 // pred_check_branch
          %730 = sbr.rel (%p728) target = $region88
        $region87: #{tpu_custom_call.1} parent=83 // pred_region
          %731 = dma.done %s724, 128
        $region88: #{tpu_custom_call.1} parent=83 // pred_fallthru
          _
        %s732 = sand.u32 %s51, 1
        %s733 = scalar_lea.sflag [#allocation7], %s732
        %s734 = sand.u32 %s85, 1
        %s735 = smul.addr %s734, 16
        %s736 = scalar_lea.vmem [#allocation6], %s735
        // Predicated region
        $region89: #{tpu_custom_call.1} parent=83 // pred_check
          %p737 = pneg %p98
        $region90: #{tpu_custom_call.1} parent=83 // pred_check_branch
          %739 = sbr.rel (%p737) target = $region92
        $region91: #{tpu_custom_call.1} parent=83 // pred_region
          %740 = dma.done %s733, 256
        $region92: #{tpu_custom_call.1} parent=83 // pred_fallthru
          _
        %s741 = sand.u32 %s51, 1
        %s742 = scalar_lea.sflag [#allocation7], %s741
        %s743 = sand.u32 %s111, 1
        %s744 = smul.addr %s743, 8
        %s745 = scalar_lea.vmem [#allocation8], %s744
        // Predicated region
        $region93: #{tpu_custom_call.1} parent=83 // pred_check
          %p746 = pneg %p124
        $region94: #{tpu_custom_call.1} parent=83 // pred_check_branch
          %748 = sbr.rel (%p746) target = $region96
        $region95: #{tpu_custom_call.1} parent=83 // pred_region
          %749 = dma.done %s742, 128
        $region96: #{tpu_custom_call.1} parent=83 // pred_fallthru
          _
        %s750 = sand.u32 %s51, 1
        %s751 = scalar_lea.sflag [#allocation10], %s750
        %s752 = sand.u32 %s137, 1
        %s753 = smul.addr %s752, 8
        %s754 = scalar_lea.vmem [#allocation9], %s753
        // Predicated region
        $region97: #{tpu_custom_call.1} parent=83 // pred_check
          %p755 = pneg %p150
        $region98: #{tpu_custom_call.1} parent=83 // pred_check_branch
          %757 = sbr.rel (%p755) target = $region100
        $region99: #{tpu_custom_call.1} parent=83 // pred_region
          %758 = dma.done %s751, 128
        $region100: #{tpu_custom_call.1} parent=83 // pred_fallthru
          _
        // Predicated region
        $region101: #{tpu_custom_call.1} parent=83 // pred_check
          %p759 = pneg %p171
        $region102: #{tpu_custom_call.1} parent=83 // pred_check_branch
          %761 = sbr.rel (%p759) target = $region104
        $region103: #{tpu_custom_call.1} parent=83 // pred_region
          %762 = dma.done [#allocation10], 64
        $region104: #{tpu_custom_call.1} parent=83 // pred_fallthru
          _
        // Predicated region
        $region105: #{tpu_custom_call.1} parent=83 // pred_check
          %p763 = pneg %p192
        $region106: #{tpu_custom_call.1} parent=83 // pred_check_branch
          %765 = sbr.rel (%p763) target = $region108
        $region107: #{tpu_custom_call.1} parent=83 // pred_region
          %766 = dma.done [#allocation13], 64
        $region108: #{tpu_custom_call.1} parent=83 // pred_fallthru
          _
        // Predicated region
        $region109: #{tpu_custom_call.1} parent=83 // pred_check
          %p767 = pneg %p213
        $region110: #{tpu_custom_call.1} parent=83 // pred_check_branch
          %769 = sbr.rel (%p767) target = $region112
        $region111: #{tpu_custom_call.1} parent=83 // pred_region
          %770 = dma.done [#allocation13], 512
        $region112: #{tpu_custom_call.1} parent=83 // pred_fallthru
          _
        // Predicated region
        $region113: #{tpu_custom_call.1} parent=83 // pred_check
          %p771 = pneg %p234
        $region114: #{tpu_custom_call.1} parent=83 // pred_check_branch
          %773 = sbr.rel (%p771) target = $region116
        $region115: #{tpu_custom_call.1} parent=83 // pred_region
          %774 = dma.done [#allocation16], 32
        $region116: #{tpu_custom_call.1} parent=83 // pred_fallthru
          _
        // Predicated region
        $region117: #{tpu_custom_call.1} parent=83 // pred_check
          %p775 = pneg %p255
        $region118: #{tpu_custom_call.1} parent=83 // pred_check_branch
          %777 = sbr.rel (%p775) target = $region120
        $region119: #{tpu_custom_call.1} parent=83 // pred_region
          %778 = dma.done [#allocation16], 512
        $region120: #{tpu_custom_call.1} parent=83 // pred_fallthru
          _
        // Predicated region
        $region121: #{tpu_custom_call.1} parent=83 // pred_check
          %p779 = pneg %p276
        $region122: #{tpu_custom_call.1} parent=83 // pred_check_branch
          %781 = sbr.rel (%p779) target = $region124
        $region123: #{tpu_custom_call.1} parent=83 // pred_region
          %782 = dma.done [#allocation19], 32
        $region124: #{tpu_custom_call.1} parent=83 // pred_fallthru
          _
        // Predicated region
        $region125: #{tpu_custom_call.1} parent=83 // pred_check
          %p783 = pneg %p297
        $region126: #{tpu_custom_call.1} parent=83 // pred_check_branch
          %785 = sbr.rel (%p783) target = $region128
        $region127: #{tpu_custom_call.1} parent=83 // pred_region
          %786 = dma.done [#allocation19], 512
        $region128: #{tpu_custom_call.1} parent=83 // pred_fallthru
          _
        // Predicated region
        $region129: #{tpu_custom_call.1} parent=83 // pred_check
          %p787 = pneg %p318
        $region130: #{tpu_custom_call.1} parent=83 // pred_check_branch
          %789 = sbr.rel (%p787) target = $region132
        $region131: #{tpu_custom_call.1} parent=83 // pred_region
          %790 = dma.done [#allocation22], 32
        $region132: #{tpu_custom_call.1} parent=83 // pred_fallthru
          _
        // Predicated region
        $region133: #{tpu_custom_call.1} parent=83 // pred_check
          %p791 = pneg %p339
        $region134: #{tpu_custom_call.1} parent=83 // pred_check_branch
          %793 = sbr.rel (%p791) target = $region136
        $region135: #{tpu_custom_call.1} parent=83 // pred_region
          %794 = dma.done [#allocation22], 256
        $region136: #{tpu_custom_call.1} parent=83 // pred_fallthru
          _
        // Predicated region
        $region137: #{tpu_custom_call.1} parent=83 // pred_check
          %p795 = pneg %p360
        $region138: #{tpu_custom_call.1} parent=83 // pred_check_branch
          %797 = sbr.rel (%p795) target = $region140
        $region139: #{tpu_custom_call.1} parent=83 // pred_region
          %798 = dma.done [#allocation25], 16
        $region140: #{tpu_custom_call.1} parent=83 // pred_fallthru
          _
        // Predicated region
        $region141: #{tpu_custom_call.1} parent=83 // pred_check
          %p799 = pneg %p381
        $region142: #{tpu_custom_call.1} parent=83 // pred_check_branch
          %801 = sbr.rel (%p799) target = $region144
        $region143: #{tpu_custom_call.1} parent=83 // pred_region
          %802 = dma.done [#allocation25], 512
        $region144: #{tpu_custom_call.1} parent=83 // pred_fallthru
          _
        // Predicated region
        $region145: #{tpu_custom_call.1} parent=83 // pred_check
          %p803 = pneg %p402
        $region146: #{tpu_custom_call.1} parent=83 // pred_check_branch
          %805 = sbr.rel (%p803) target = $region148
        $region147: #{tpu_custom_call.1} parent=83 // pred_region
          %806 = dma.done [#allocation28], 16
        $region148: #{tpu_custom_call.1} parent=83 // pred_fallthru
          _
        %s807 = sand.u32 %s59, 1
        %s808 = scalar_lea.sflag [#allocation4], %s807
        %s809 = sand.u32 %s59, 1
        %s810 = smul.addr %s809, 8
        %s811 = scalar_lea.vmem [#allocation3], %s810
        %p812 = pneg %p72
        %p813 = pneg %p69
        %s814 = sand.u32 %s51, 1
        %s815 = scalar_lea.sflag [#allocation7], %s814
        %s816 = sand.u32 %s85, 1
        %s817 = smul.addr %s816, 16
        %s818 = scalar_lea.vmem [#allocation6], %s817
        %p819 = pneg %p98
        %p820 = pneg %p95
        %s821 = sand.u32 %s51, 1
        %s822 = scalar_lea.sflag [#allocation7], %s821
        %s823 = sand.u32 %s111, 1
        %s824 = smul.addr %s823, 8
        %s825 = scalar_lea.vmem [#allocation8], %s824
        %p826 = pneg %p124
        %p827 = pneg %p121
        %s828 = sand.u32 %s51, 1
        %s829 = scalar_lea.sflag [#allocation10], %s828
        %s830 = sand.u32 %s137, 1
        %s831 = smul.addr %s830, 8
        %s832 = scalar_lea.vmem [#allocation9], %s831
        %p833 = pneg %p150
        %p834 = pneg %p147
        %p835 = pneg %p171
        %p836 = pneg %p168
        %p837 = pneg %p192
        %p838 = pneg %p189
        %p839 = pneg %p213
        %p840 = pneg %p210
        %p841 = pneg %p234
        %p842 = pneg %p231
        %p843 = pneg %p255
        %p844 = pneg %p252
        %p845 = pneg %p276
        %p846 = pneg %p273
        %p847 = pneg %p297
        %p848 = pneg %p294
        %p849 = pneg %p318
        %p850 = pneg %p315
        %p851 = pneg %p339
        %p852 = pneg %p336
        %p853 = pneg %p360
        %p854 = pneg %p357
        %p855 = pneg %p381
        %p856 = pneg %p378
        %p857 = pneg %p402
        %p858 = pneg %p399
        %p859 = pneg %p428
        %p860 = pneg %p425
        %s861 = sand.u32 %s415, 1
        %s862 = scalar_lea.sflag [#allocation5], %s861
        %s863 = sand.u32 %s415, 1
        %s864 = smul.addr %s863, 8
        %s865 = scalar_lea.vmem [#allocation29], %s864
        %p866 = pneg %p454
        %p867 = pneg %p451
        %s868 = sand.u32 %s51, 1
        %s869 = scalar_lea.sflag [#allocation31], %s868
        %s870 = sand.u32 %s441, 1
        %s871 = smul.addr %s870, 32
        %s872 = scalar_lea.vmem [#allocation30], %s871
        %p873 = pneg %p480
        %p874 = pneg %p477
        %s875 = sand.u32 %s51, 1
        %s876 = scalar_lea.sflag [#allocation31], %s875
        %s877 = sand.u32 %s467, 1
        %s878 = smul.addr %s877, 32
        %s879 = scalar_lea.vmem [#allocation32], %s878
        %v881 = vld [vmem:[%s727] sm:$0xff]
        %v882 = vld [vmem:[%s736] sm:$0xff]
        %v883 = vld [vmem:[%s736 + $0x8] sm:$0xff]
        %v884 = vpack.c.bf16 %v883, %v882
        %v885 = vld [vmem:[%s745] sm:$0xff]
        %v886 = vld [vmem:[%s754] sm:$0xff]
        %v887 = vpack.c.bf16 %v881, %v881
        %v888 = vld [vmem:[#allocation14] sm:$0xf]
        %v889 = vld [vmem:[#allocation14 + $0x4] sm:$0xf]
        %v890 = vld [vmem:[#allocation14 + $0x8] sm:$0xf]
        %v891 = vld [vmem:[#allocation14 + $0xc] sm:$0xf]
        %v892 = vld [vmem:[#allocation17] sm:$0xf]
        %v893 = vld [vmem:[#allocation17 + $0x4] sm:$0xf]
        %v894 = vld [vmem:[#allocation17 + $0x8] sm:$0xf]
        %v895 = vld [vmem:[#allocation17 + $0xc] sm:$0xf]
        %v896 = vld [vmem:[#allocation20] sm:$0xf]
        %v897 = vld [vmem:[#allocation20 + $0x4] sm:$0xf]
        %v898 = vld [vmem:[#allocation20 + $0x8] sm:$0xf]
        %v899 = vld [vmem:[#allocation20 + $0xc] sm:$0xf]
        %v900 = vld [vmem:[#allocation15] sm:$0x1]
        %v901 = vld [vmem:[#allocation18] sm:$0x1]
        %v902 = vld [vmem:[#allocation21] sm:$0x1]
        %v903 = vlaneseq
        %v904 = vshrl.u32 %v903, 7
        %v905 = vsub.s32 0, %v904
        %v906 = vrot.slane %v900, %v905
        %v911 = vunpack.c.l.b16 %v888
        %v912 = vunpack.c.l.b16 %v889
        %v913 = vunpack.c.l.b16 %v890
        %v914 = vunpack.c.l.b16 %v891
        %v915 = vpack.c.b16 %v912, %v911
        %v916 = vpack.c.b16 %v914, %v913
        %vm919 = vcmask 261120
        %v921 = vsel %vm919, %v887, 0
        %923 = vmatprep.subr.bf16.mxu0 0
        %924 = vmatpush1.bf16.msra.mxu0 %v915
        %925 = vmatprep.subr.bf16.mxu0 0
        %926 = vmatpush1.bf16.msra.mxu0 %v916
        %927 = vmatprep.subr.bf16.mxu0 0
        %928 = vmatpush1.bf16.msra.mxu0 0
        %929 = vmatprep.subr.bf16.mxu0 0
        %930 = vmatpush1.bf16.msra.mxu0 0
        %931 = vmatprep.subr.bf16.mxu0 0
        %932 = vmatpush1.bf16.msra.mxu0 0
        %933 = vmatprep.subr.bf16.mxu0 0
        %934 = vmatpush1.bf16.msra.mxu0 0
        %935 = vmatprep.subr.bf16.mxu0 0
        %936 = vmatpush1.bf16.msra.mxu0 0
        %937 = vmatprep.subr.bf16.mxu0 0
        %938 = vmatpush1.bf16.msra.mxu0 0
        %939 = vmatprep.subr.bf16.mxu0 0
        %940 = vmatpush1.bf16.msra.mxu0 0
        %941 = vmatprep.subr.bf16.mxu0 0
        %942 = vmatpush1.bf16.msra.mxu0 0
        %943 = vmatprep.subr.bf16.mxu0 0
        %944 = vmatpush1.bf16.msra.mxu0 0
        %945 = vmatprep.subr.bf16.mxu0 0
        %946 = vmatpush1.bf16.msra.mxu0 0
        %947 = vmatprep.subr.bf16.mxu0 0
        %948 = vmatpush1.bf16.msra.mxu0 0
        %949 = vmatprep.subr.bf16.mxu0 0
        %950 = vmatpush1.bf16.msra.mxu0 0
        %951 = vmatprep.subr.bf16.mxu0 0
        %952 = vmatpush1.bf16.msra.mxu0 0
        %953 = vmatprep.subr.bf16.mxu0 0
        %954 = vmatpush1.bf16.msra.mxu0 0
        %955 = vmatprep.mubr.bf16.mxu0 0
        %956 = vmatmul.mubr.bf16.gmra.mrb[0].mxu0 %v921
        %v957 = vpop.f32.mrb[0].mxu0
        %v958 = vadd.f32 %v906, %v957
        %v959 = vpop.f32.mrb[0].mxu0
        %v960 = vpop.f32.mrb[0].mxu0
        %v961 = vpop.f32.mrb[0].mxu0
        %962 = vdwg.mxu0
        %v963 = vlaneseq
        %v964 = vshrl.u32 %v963, 7
        %v965 = vsub.s32 0, %v964
        %v966 = vrot.slane %v901, %v965
        %v971 = vunpack.c.l.b16 %v892
        %v972 = vunpack.c.l.b16 %v893
        %v973 = vunpack.c.l.b16 %v894
        %v974 = vunpack.c.l.b16 %v895
        %v975 = vpack.c.b16 %v972, %v971
        %v976 = vpack.c.b16 %v974, %v973
        %979 = vmatprep.subr.bf16.mxu0 0
        %980 = vmatpush1.bf16.msra.mxu0 %v975
        %981 = vmatprep.subr.bf16.mxu0 0
        %982 = vmatpush1.bf16.msra.mxu0 %v976
        %983 = vmatprep.subr.bf16.mxu0 0
        %984 = vmatpush1.bf16.msra.mxu0 0
        %985 = vmatprep.subr.bf16.mxu0 0
        %986 = vmatpush1.bf16.msra.mxu0 0
        %987 = vmatprep.subr.bf16.mxu0 0
        %988 = vmatpush1.bf16.msra.mxu0 0
        %989 = vmatprep.subr.bf16.mxu0 0
        %990 = vmatpush1.bf16.msra.mxu0 0
        %991 = vmatprep.subr.bf16.mxu0 0
        %992 = vmatpush1.bf16.msra.mxu0 0
        %993 = vmatprep.subr.bf16.mxu0 0
        %994 = vmatpush1.bf16.msra.mxu0 0
        %995 = vmatprep.subr.bf16.mxu0 0
        %996 = vmatpush1.bf16.msra.mxu0 0
        %997 = vmatprep.subr.bf16.mxu0 0
        %998 = vmatpush1.bf16.msra.mxu0 0
        %999 = vmatprep.subr.bf16.mxu0 0
        %1000 = vmatpush1.bf16.msra.mxu0 0
        %1001 = vmatprep.subr.bf16.mxu0 0
        %1002 = vmatpush1.bf16.msra.mxu0 0
        %1003 = vmatprep.subr.bf16.mxu0 0
        %1004 = vmatpush1.bf16.msra.mxu0 0
        %1005 = vmatprep.subr.bf16.mxu0 0
        %1006 = vmatpush1.bf16.msra.mxu0 0
        %1007 = vmatprep.subr.bf16.mxu0 0
        %1008 = vmatpush1.bf16.msra.mxu0 0
        %1009 = vmatprep.subr.bf16.mxu0 0
        %1010 = vmatpush1.bf16.msra.mxu0 0
        %1011 = vmatprep.mubr.bf16.mxu0 0
        %1012 = vmatmul.mubr.bf16.gmra.mrb[0].mxu0 %v921
        %v1013 = vpop.f32.mrb[0].mxu0
        %v1014 = vadd.f32 %v966, %v1013
        %v1015 = vpop.f32.mrb[0].mxu0
        %v1016 = vpop.f32.mrb[0].mxu0
        %v1017 = vpop.f32.mrb[0].mxu0
        %1018 = vdwg.mxu0
        %v1019 = vpack.c.bf16 %v958, %v958
        %v1020 = vpack.c.bf16 %v1014, %v1014
        %vm1021 = vcmp.gt.f32.partialorder %v885, 0.5
        %v1022 = vsel %vm1021, -1e+09, 0.0
        %vm1023 = vcmask 64512
        %v1025 = vsel %vm1023, %v1019, 0
        %v1028 = vsel %vm1023, %v1020, 0
        %1030 = vmatprep.subr.bf16.mxu0 0
        %1031 = vmatpush1.bf16.xpose.msra.mxu0 %v1028
        %1032 = vmatprep.subr.bf16.mxu0 0
        %1033 = vmatpush1.bf16.xpose.msra.mxu0 0
        %1034 = vmatprep.subr.bf16.mxu0 0
        %1035 = vmatpush1.bf16.xpose.msra.mxu0 0
        %1036 = vmatprep.subr.bf16.mxu0 0
        %1037 = vmatpush1.bf16.xpose.msra.mxu0 0
        %1038 = vmatprep.subr.bf16.mxu0 0
        %1039 = vmatpush1.bf16.xpose.msra.mxu0 0
        %1040 = vmatprep.subr.bf16.mxu0 0
        %1041 = vmatpush1.bf16.xpose.msra.mxu0 0
        %1042 = vmatprep.subr.bf16.mxu0 0
        %1043 = vmatpush1.bf16.xpose.msra.mxu0 0
        %1044 = vmatprep.subr.bf16.mxu0 0
        %1045 = vmatpush1.bf16.xpose.msra.mxu0 0
        %1046 = vmatprep.subr.bf16.mxu0 0
        %1047 = vmatpush1.bf16.xpose.msra.mxu0 0
        %1048 = vmatprep.subr.bf16.mxu0 0
        %1049 = vmatpush1.bf16.xpose.msra.mxu0 0
        %1050 = vmatprep.subr.bf16.mxu0 0
        %1051 = vmatpush1.bf16.xpose.msra.mxu0 0
        %1052 = vmatprep.subr.bf16.mxu0 0
        %1053 = vmatpush1.bf16.xpose.msra.mxu0 0
        %1054 = vmatprep.subr.bf16.mxu0 0
        %1055 = vmatpush1.bf16.xpose.msra.mxu0 0
        %1056 = vmatprep.subr.bf16.mxu0 0
        %1057 = vmatpush1.bf16.xpose.msra.mxu0 0
        %1058 = vmatprep.subr.bf16.mxu0 0
        %1059 = vmatpush1.bf16.xpose.msra.mxu0 0
        %1060 = vmatprep.subr.bf16.mxu0 0
        %1061 = vmatpush1.bf16.xpose.msra.mxu0 0
        %1062 = vmatprep.mubr.bf16.mxu0 0
        %1063 = vmatmul.mubr.bf16.gmra.mrb[0].mxu0 %v1025
        %v1064 = vpop.f32.mrb[0].mxu0
        %v1065 = vadd.f32 %v1022, %v1064
        %v1066 = vpop.f32.mrb[0].mxu0
        %v1067 = vpop.f32.mrb[0].mxu0
        %v1068 = vpop.f32.mrb[0].mxu0
        %1069 = vdwg.mxu0
        %v1070 = vsel %vm1023, %v1065, -inf
        %1071 = vmax.xlane.f32.xlu0 %v1070
        %v1072 = vpop.xlane.xlu0 %1071
        %v1073 = vsub.f32 %v1065, %v1072
        %v1074 = vmul.f32 %v1073, 1.442695
        %v1075 = vpow.pop %v1074
        %v1076 = vsel %vm1023, %v1075, 0.0
        %1077 = vadd.xlane.f32.xlu0 %v1076
        %v1078 = vpop.xlane.xlu0 %1077
        %v1079 = vrcp.pop %v1078
        %v1080 = vmul.f32 %v1075, %v1079
        %1081 = vst.msk [vmem:[%s872] sm:$0xff] %vm1023, %v1080
        %v1082 = vpack.c.bf16 %v1080, %v1080
        %1084 = vrot.lane.b32.xlu0 %v1020, 96
        %v1085 = vpop.permute.xlu0 %1084
        %v1087 = vsel %vm1023, %v1082, 0
        %vm1089 = vcmask 1043456
        %v1091 = vsel %vm1089, %v1085, 0
        %1093 = vmatprep.subr.bf16.mxu0 0
        %1094 = vmatpush1.bf16.msra.mxu0 %v1091
        %1095 = vmatprep.subr.bf16.mxu0 0
        %1096 = vmatpush1.bf16.msra.mxu0 0
        %1097 = vmatprep.subr.bf16.mxu0 0
        %1098 = vmatpush1.bf16.msra.mxu0 0
        %1099 = vmatprep.subr.bf16.mxu0 0
        %1100 = vmatpush1.bf16.msra.mxu0 0
        %1101 = vmatprep.subr.bf16.mxu0 0
        %1102 = vmatpush1.bf16.msra.mxu0 0
        %1103 = vmatprep.subr.bf16.mxu0 0
        %1104 = vmatpush1.bf16.msra.mxu0 0
        %1105 = vmatprep.subr.bf16.mxu0 0
        %1106 = vmatpush1.bf16.msra.mxu0 0
        %1107 = vmatprep.subr.bf16.mxu0 0
        %1108 = vmatpush1.bf16.msra.mxu0 0
        %1109 = vmatprep.subr.bf16.mxu0 0
        %1110 = vmatpush1.bf16.msra.mxu0 0
        %1111 = vmatprep.subr.bf16.mxu0 0
        %1112 = vmatpush1.bf16.msra.mxu0 0
        %1113 = vmatprep.subr.bf16.mxu0 0
        %1114 = vmatpush1.bf16.msra.mxu0 0
        %1115 = vmatprep.subr.bf16.mxu0 0
        %1116 = vmatpush1.bf16.msra.mxu0 0
        %1117 = vmatprep.subr.bf16.mxu0 0
        %1118 = vmatpush1.bf16.msra.mxu0 0
        %1119 = vmatprep.subr.bf16.mxu0 0
        %1120 = vmatpush1.bf16.msra.mxu0 0
        %1121 = vmatprep.subr.bf16.mxu0 0
        %1122 = vmatpush1.bf16.msra.mxu0 0
        %1123 = vmatprep.subr.bf16.mxu0 0
        %1124 = vmatpush1.bf16.msra.mxu0 0
        %1125 = vmatprep.mubr.bf16.mxu0 0
        %1126 = vmatmul.mubr.bf16.gmra.mrb[0].mxu0 %v1087
        %v1127 = vpop.f32.mrb[0].mxu0
        %v1128 = vadd.f32 0.0, %v1127
        %v1129 = vpop.f32.mrb[0].mxu0
        %v1130 = vpop.f32.mrb[0].mxu0
        %v1131 = vpop.f32.mrb[0].mxu0
        %1132 = vdwg.mxu0
        %1133 = vst.msk [vmem:[#allocation2] sm:$0xff] %vm1023, %v1128
        %1135 = vrot.lane.b32.xlu0 %v1019, 120
        %v1136 = vpop.permute.xlu0 %1135
        %1137 = vrot.lane.b32.xlu0 %v1020, 120
        %v1138 = vpop.permute.xlu0 %1137
        %v1140 = vsel %vm1023, %v1136, 0
        %v1143 = vsel %vm1023, %v1138, 0
        %1145 = vmatprep.subr.bf16.mxu0 0
        %1146 = vmatpush1.bf16.xpose.msra.mxu0 %v1143
        %1147 = vmatprep.subr.bf16.mxu0 0
        %1148 = vmatpush1.bf16.xpose.msra.mxu0 0
        %1149 = vmatprep.subr.bf16.mxu0 0
        %1150 = vmatpush1.bf16.xpose.msra.mxu0 0
        %1151 = vmatprep.subr.bf16.mxu0 0
        %1152 = vmatpush1.bf16.xpose.msra.mxu0 0
        %1153 = vmatprep.subr.bf16.mxu0 0
        %1154 = vmatpush1.bf16.xpose.msra.mxu0 0
        %1155 = vmatprep.subr.bf16.mxu0 0
        %1156 = vmatpush1.bf16.xpose.msra.mxu0 0
        %1157 = vmatprep.subr.bf16.mxu0 0
        %1158 = vmatpush1.bf16.xpose.msra.mxu0 0
        %1159 = vmatprep.subr.bf16.mxu0 0
        %1160 = vmatpush1.bf16.xpose.msra.mxu0 0
        %1161 = vmatprep.subr.bf16.mxu0 0
        %1162 = vmatpush1.bf16.xpose.msra.mxu0 0
        %1163 = vmatprep.subr.bf16.mxu0 0
        %1164 = vmatpush1.bf16.xpose.msra.mxu0 0
        %1165 = vmatprep.subr.bf16.mxu0 0
        %1166 = vmatpush1.bf16.xpose.msra.mxu0 0
        %1167 = vmatprep.subr.bf16.mxu0 0
        %1168 = vmatpush1.bf16.xpose.msra.mxu0 0
        %1169 = vmatprep.subr.bf16.mxu0 0
        %1170 = vmatpush1.bf16.xpose.msra.mxu0 0
        %1171 = vmatprep.subr.bf16.mxu0 0
        %1172 = vmatpush1.bf16.xpose.msra.mxu0 0
        %1173 = vmatprep.subr.bf16.mxu0 0
        %1174 = vmatpush1.bf16.xpose.msra.mxu0 0
        %1175 = vmatprep.subr.bf16.mxu0 0
        %1176 = vmatpush1.bf16.xpose.msra.mxu0 0
        %1177 = vmatprep.mubr.bf16.mxu0 0
        %1178 = vmatmul.mubr.bf16.gmra.mrb[0].mxu0 %v1140
        %v1179 = vpop.f32.mrb[0].mxu0
        %v1180 = vadd.f32 %v1022, %v1179
        %v1181 = vpop.f32.mrb[0].mxu0
        %v1182 = vpop.f32.mrb[0].mxu0
        %v1183 = vpop.f32.mrb[0].mxu0
        %1184 = vdwg.mxu0
        %v1185 = vsel %vm1023, %v1180, -inf
        %1186 = vmax.xlane.f32.xlu0 %v1185
        %v1187 = vpop.xlane.xlu0 %1186
        %v1188 = vsub.f32 %v1180, %v1187
        %v1189 = vmul.f32 %v1188, 1.442695
        %v1190 = vpow.pop %v1189
        %v1191 = vsel %vm1023, %v1190, 0.0
        %1192 = vadd.xlane.f32.xlu0 %v1191
        %v1193 = vpop.xlane.xlu0 %1192
        %v1194 = vrcp.pop %v1193
        %v1195 = vmul.f32 %v1190, %v1194
        %s1196 = scalar_lea.vmem %s872, 8 [#allocation30]
        %1197 = vst.msk [vmem:[%s1196] sm:$0xff] %vm1023, %v1195
        %v1198 = vpack.c.bf16 %v1195, %v1195
        %1199 = vrot.lane.b32.xlu0 %v1020, 88
        %v1200 = vpop.permute.xlu0 %1199
        %v1202 = vsel %vm1023, %v1198, 0
        %v1205 = vsel %vm1089, %v1200, 0
        %1207 = vmatprep.subr.bf16.mxu0 0
        %1208 = vmatpush1.bf16.msra.mxu0 %v1205
        %1209 = vmatprep.subr.bf16.mxu0 0
        %1210 = vmatpush1.bf16.msra.mxu0 0
        %1211 = vmatprep.subr.bf16.mxu0 0
        %1212 = vmatpush1.bf16.msra.mxu0 0
        %1213 = vmatprep.subr.bf16.mxu0 0
        %1214 = vmatpush1.bf16.msra.mxu0 0
        %1215 = vmatprep.subr.bf16.mxu0 0
        %1216 = vmatpush1.bf16.msra.mxu0 0
        %1217 = vmatprep.subr.bf16.mxu0 0
        %1218 = vmatpush1.bf16.msra.mxu0 0
        %1219 = vmatprep.subr.bf16.mxu0 0
        %1220 = vmatpush1.bf16.msra.mxu0 0
        %1221 = vmatprep.subr.bf16.mxu0 0
        %1222 = vmatpush1.bf16.msra.mxu0 0
        %1223 = vmatprep.subr.bf16.mxu0 0
        %1224 = vmatpush1.bf16.msra.mxu0 0
        %1225 = vmatprep.subr.bf16.mxu0 0
        %1226 = vmatpush1.bf16.msra.mxu0 0
        %1227 = vmatprep.subr.bf16.mxu0 0
        %1228 = vmatpush1.bf16.msra.mxu0 0
        %1229 = vmatprep.subr.bf16.mxu0 0
        %1230 = vmatpush1.bf16.msra.mxu0 0
        %1231 = vmatprep.subr.bf16.mxu0 0
        %1232 = vmatpush1.bf16.msra.mxu0 0
        %1233 = vmatprep.subr.bf16.mxu0 0
        %1234 = vmatpush1.bf16.msra.mxu0 0
        %1235 = vmatprep.subr.bf16.mxu0 0
        %1236 = vmatpush1.bf16.msra.mxu0 0
        %1237 = vmatprep.subr.bf16.mxu0 0
        %1238 = vmatpush1.bf16.msra.mxu0 0
        %1239 = vmatprep.mubr.bf16.mxu0 0
        %1240 = vmatmul.mubr.bf16.gmra.mrb[0].mxu0 %v1202
        %v1241 = vpop.f32.mrb[0].mxu0
        %v1242 = vadd.f32 0.0, %v1241
        %v1243 = vpop.f32.mrb[0].mxu0
        %v1244 = vpop.f32.mrb[0].mxu0
        %v1245 = vpop.f32.mrb[0].mxu0
        %1246 = vdwg.mxu0
        %1248 = vrot.lane.b32.xlu0 %v1242, 8
        %v1249 = vpop.permute.xlu0 %1248
        %vm1251 = vcmask 130112
        %1252 = vst.msk [vmem:[#allocation2] sm:$0xff] %vm1251, %v1249
        %1253 = vrot.lane.b32.xlu0 %v1019, 112
        %v1254 = vpop.permute.xlu0 %1253
        %1255 = vrot.lane.b32.xlu0 %v1020, 112
        %v1256 = vpop.permute.xlu0 %1255
        %v1258 = vsel %vm1023, %v1254, 0
        %v1261 = vsel %vm1023, %v1256, 0
        %1263 = vmatprep.subr.bf16.mxu0 0
        %1264 = vmatpush1.bf16.xpose.msra.mxu0 %v1261
        %1265 = vmatprep.subr.bf16.mxu0 0
        %1266 = vmatpush1.bf16.xpose.msra.mxu0 0
        %1267 = vmatprep.subr.bf16.mxu0 0
        %1268 = vmatpush1.bf16.xpose.msra.mxu0 0
        %1269 = vmatprep.subr.bf16.mxu0 0
        %1270 = vmatpush1.bf16.xpose.msra.mxu0 0
        %1271 = vmatprep.subr.bf16.mxu0 0
        %1272 = vmatpush1.bf16.xpose.msra.mxu0 0
        %1273 = vmatprep.subr.bf16.mxu0 0
        %1274 = vmatpush1.bf16.xpose.msra.mxu0 0
        %1275 = vmatprep.subr.bf16.mxu0 0
        %1276 = vmatpush1.bf16.xpose.msra.mxu0 0
        %1277 = vmatprep.subr.bf16.mxu0 0
        %1278 = vmatpush1.bf16.xpose.msra.mxu0 0
        %1279 = vmatprep.subr.bf16.mxu0 0
        %1280 = vmatpush1.bf16.xpose.msra.mxu0 0
        %1281 = vmatprep.subr.bf16.mxu0 0
        %1282 = vmatpush1.bf16.xpose.msra.mxu0 0
        %1283 = vmatprep.subr.bf16.mxu0 0
        %1284 = vmatpush1.bf16.xpose.msra.mxu0 0
        %1285 = vmatprep.subr.bf16.mxu0 0
        %1286 = vmatpush1.bf16.xpose.msra.mxu0 0
        %1287 = vmatprep.subr.bf16.mxu0 0
        %1288 = vmatpush1.bf16.xpose.msra.mxu0 0
        %1289 = vmatprep.subr.bf16.mxu0 0
        %1290 = vmatpush1.bf16.xpose.msra.mxu0 0
        %1291 = vmatprep.subr.bf16.mxu0 0
        %1292 = vmatpush1.bf16.xpose.msra.mxu0 0
        %1293 = vmatprep.subr.bf16.mxu0 0
        %1294 = vmatpush1.bf16.xpose.msra.mxu0 0
        %1295 = vmatprep.mubr.bf16.mxu0 0
        %1296 = vmatmul.mubr.bf16.gmra.mrb[0].mxu0 %v1258
        %v1297 = vpop.f32.mrb[0].mxu0
        %v1298 = vadd.f32 %v1022, %v1297
        %v1299 = vpop.f32.mrb[0].mxu0
        %v1300 = vpop.f32.mrb[0].mxu0
        %v1301 = vpop.f32.mrb[0].mxu0
        %1302 = vdwg.mxu0
        %v1303 = vsel %vm1023, %v1298, -inf
        %1304 = vmax.xlane.f32.xlu0 %v1303
        %v1305 = vpop.xlane.xlu0 %1304
        %v1306 = vsub.f32 %v1298, %v1305
        %v1307 = vmul.f32 %v1306, 1.442695
        %v1308 = vpow.pop %v1307
        %v1309 = vsel %vm1023, %v1308, 0.0
        %1310 = vadd.xlane.f32.xlu0 %v1309
        %v1311 = vpop.xlane.xlu0 %1310
        %v1312 = vrcp.pop %v1311
        %v1313 = vmul.f32 %v1308, %v1312
        %s1314 = scalar_lea.vmem %s872, 16 [#allocation30]
        %1315 = vst.msk [vmem:[%s1314] sm:$0xff] %vm1023, %v1313
        %v1316 = vpack.c.bf16 %v1313, %v1313
        %1317 = vrot.lane.b32.xlu0 %v1020, 80
        %v1318 = vpop.permute.xlu0 %1317
        %v1320 = vsel %vm1023, %v1316, 0
        %v1323 = vsel %vm1089, %v1318, 0
        %1325 = vmatprep.subr.bf16.mxu0 0
        %1326 = vmatpush1.bf16.msra.mxu0 %v1323
        %1327 = vmatprep.subr.bf16.mxu0 0
        %1328 = vmatpush1.bf16.msra.mxu0 0
        %1329 = vmatprep.subr.bf16.mxu0 0
        %1330 = vmatpush1.bf16.msra.mxu0 0
        %1331 = vmatprep.subr.bf16.mxu0 0
        %1332 = vmatpush1.bf16.msra.mxu0 0
        %1333 = vmatprep.subr.bf16.mxu0 0
        %1334 = vmatpush1.bf16.msra.mxu0 0
        %1335 = vmatprep.subr.bf16.mxu0 0
        %1336 = vmatpush1.bf16.msra.mxu0 0
        %1337 = vmatprep.subr.bf16.mxu0 0
        %1338 = vmatpush1.bf16.msra.mxu0 0
        %1339 = vmatprep.subr.bf16.mxu0 0
        %1340 = vmatpush1.bf16.msra.mxu0 0
        %1341 = vmatprep.subr.bf16.mxu0 0
        %1342 = vmatpush1.bf16.msra.mxu0 0
        %1343 = vmatprep.subr.bf16.mxu0 0
        %1344 = vmatpush1.bf16.msra.mxu0 0
        %1345 = vmatprep.subr.bf16.mxu0 0
        %1346 = vmatpush1.bf16.msra.mxu0 0
        %1347 = vmatprep.subr.bf16.mxu0 0
        %1348 = vmatpush1.bf16.msra.mxu0 0
        %1349 = vmatprep.subr.bf16.mxu0 0
        %1350 = vmatpush1.bf16.msra.mxu0 0
        %1351 = vmatprep.subr.bf16.mxu0 0
        %1352 = vmatpush1.bf16.msra.mxu0 0
        %1353 = vmatprep.subr.bf16.mxu0 0
        %1354 = vmatpush1.bf16.msra.mxu0 0
        %1355 = vmatprep.subr.bf16.mxu0 0
        %1356 = vmatpush1.bf16.msra.mxu0 0
        %1357 = vmatprep.mubr.bf16.mxu0 0
        %1358 = vmatmul.mubr.bf16.gmra.mrb[0].mxu0 %v1320
        %v1359 = vpop.f32.mrb[0].mxu0
        %v1360 = vadd.f32 0.0, %v1359
        %v1361 = vpop.f32.mrb[0].mxu0
        %v1362 = vpop.f32.mrb[0].mxu0
        %v1363 = vpop.f32.mrb[0].mxu0
        %1364 = vdwg.mxu0
        %1366 = vrot.lane.b32.xlu0 %v1360, 16
        %v1367 = vpop.permute.xlu0 %1366
        %vm1369 = vcmask 195712
        %1370 = vst.msk [vmem:[#allocation2] sm:$0xff] %vm1369, %v1367
        %1371 = vrot.lane.b32.xlu0 %v1019, 104
        %v1372 = vpop.permute.xlu0 %1371
        %1373 = vrot.lane.b32.xlu0 %v1020, 104
        %v1374 = vpop.permute.xlu0 %1373
        %v1376 = vsel %vm1023, %v1372, 0
        %v1379 = vsel %vm1023, %v1374, 0
        %1381 = vmatprep.subr.bf16.mxu0 0
        %1382 = vmatpush1.bf16.xpose.msra.mxu0 %v1379
        %1383 = vmatprep.subr.bf16.mxu0 0
        %1384 = vmatpush1.bf16.xpose.msra.mxu0 0
        %1385 = vmatprep.subr.bf16.mxu0 0
        %1386 = vmatpush1.bf16.xpose.msra.mxu0 0
        %1387 = vmatprep.subr.bf16.mxu0 0
        %1388 = vmatpush1.bf16.xpose.msra.mxu0 0
        %1389 = vmatprep.subr.bf16.mxu0 0
        %1390 = vmatpush1.bf16.xpose.msra.mxu0 0
        %1391 = vmatprep.subr.bf16.mxu0 0
        %1392 = vmatpush1.bf16.xpose.msra.mxu0 0
        %1393 = vmatprep.subr.bf16.mxu0 0
        %1394 = vmatpush1.bf16.xpose.msra.mxu0 0
        %1395 = vmatprep.subr.bf16.mxu0 0
        %1396 = vmatpush1.bf16.xpose.msra.mxu0 0
        %1397 = vmatprep.subr.bf16.mxu0 0
        %1398 = vmatpush1.bf16.xpose.msra.mxu0 0
        %1399 = vmatprep.subr.bf16.mxu0 0
        %1400 = vmatpush1.bf16.xpose.msra.mxu0 0
        %1401 = vmatprep.subr.bf16.mxu0 0
        %1402 = vmatpush1.bf16.xpose.msra.mxu0 0
        %1403 = vmatprep.subr.bf16.mxu0 0
        %1404 = vmatpush1.bf16.xpose.msra.mxu0 0
        %1405 = vmatprep.subr.bf16.mxu0 0
        %1406 = vmatpush1.bf16.xpose.msra.mxu0 0
        %1407 = vmatprep.subr.bf16.mxu0 0
        %1408 = vmatpush1.bf16.xpose.msra.mxu0 0
        %1409 = vmatprep.subr.bf16.mxu0 0
        %1410 = vmatpush1.bf16.xpose.msra.mxu0 0
        %1411 = vmatprep.subr.bf16.mxu0 0
        %1412 = vmatpush1.bf16.xpose.msra.mxu0 0
        %1413 = vmatprep.mubr.bf16.mxu0 0
        %1414 = vmatmul.mubr.bf16.gmra.mrb[0].mxu0 %v1376
        %v1415 = vpop.f32.mrb[0].mxu0
        %v1416 = vadd.f32 %v1022, %v1415
        %v1417 = vpop.f32.mrb[0].mxu0
        %v1418 = vpop.f32.mrb[0].mxu0
        %v1419 = vpop.f32.mrb[0].mxu0
        %1420 = vdwg.mxu0
        %v1421 = vsel %vm1023, %v1416, -inf
        %1422 = vmax.xlane.f32.xlu0 %v1421
        %v1423 = vpop.xlane.xlu0 %1422
        %v1424 = vsub.f32 %v1416, %v1423
        %v1425 = vmul.f32 %v1424, 1.442695
        %v1426 = vpow.pop %v1425
        %v1427 = vsel %vm1023, %v1426, 0.0
        %1428 = vadd.xlane.f32.xlu0 %v1427
        %v1429 = vpop.xlane.xlu0 %1428
        %v1430 = vrcp.pop %v1429
        %v1431 = vmul.f32 %v1426, %v1430
        %s1432 = scalar_lea.vmem %s872, 24 [#allocation30]
        %1433 = vst.msk [vmem:[%s1432] sm:$0xff] %vm1023, %v1431
        %v1434 = vpack.c.bf16 %v1431, %v1431
        %1435 = vrot.lane.b32.xlu0 %v1020, 72
        %v1436 = vpop.permute.xlu0 %1435
        %v1438 = vsel %vm1023, %v1434, 0
        %v1441 = vsel %vm1089, %v1436, 0
        %1443 = vmatprep.subr.bf16.mxu0 0
        %1444 = vmatpush1.bf16.msra.mxu0 %v1441
        %1445 = vmatprep.subr.bf16.mxu0 0
        %1446 = vmatpush1.bf16.msra.mxu0 0
        %1447 = vmatprep.subr.bf16.mxu0 0
        %1448 = vmatpush1.bf16.msra.mxu0 0
        %1449 = vmatprep.subr.bf16.mxu0 0
        %1450 = vmatpush1.bf16.msra.mxu0 0
        %1451 = vmatprep.subr.bf16.mxu0 0
        %1452 = vmatpush1.bf16.msra.mxu0 0
        %1453 = vmatprep.subr.bf16.mxu0 0
        %1454 = vmatpush1.bf16.msra.mxu0 0
        %1455 = vmatprep.subr.bf16.mxu0 0
        %1456 = vmatpush1.bf16.msra.mxu0 0
        %1457 = vmatprep.subr.bf16.mxu0 0
        %1458 = vmatpush1.bf16.msra.mxu0 0
        %1459 = vmatprep.subr.bf16.mxu0 0
        %1460 = vmatpush1.bf16.msra.mxu0 0
        %1461 = vmatprep.subr.bf16.mxu0 0
        %1462 = vmatpush1.bf16.msra.mxu0 0
        %1463 = vmatprep.subr.bf16.mxu0 0
        %1464 = vmatpush1.bf16.msra.mxu0 0
        %1465 = vmatprep.subr.bf16.mxu0 0
        %1466 = vmatpush1.bf16.msra.mxu0 0
        %1467 = vmatprep.subr.bf16.mxu0 0
        %1468 = vmatpush1.bf16.msra.mxu0 0
        %1469 = vmatprep.subr.bf16.mxu0 0
        %1470 = vmatpush1.bf16.msra.mxu0 0
        %1471 = vmatprep.subr.bf16.mxu0 0
        %1472 = vmatpush1.bf16.msra.mxu0 0
        %1473 = vmatprep.subr.bf16.mxu0 0
        %1474 = vmatpush1.bf16.msra.mxu0 0
        %1475 = vmatprep.mubr.bf16.mxu0 0
        %1476 = vmatmul.mubr.bf16.gmra.mrb[0].mxu0 %v1438
        %v1477 = vpop.f32.mrb[0].mxu0
        %v1478 = vadd.f32 0.0, %v1477
        %v1479 = vpop.f32.mrb[0].mxu0
        %v1480 = vpop.f32.mrb[0].mxu0
        %v1481 = vpop.f32.mrb[0].mxu0
        %1482 = vdwg.mxu0
        %1484 = vrot.lane.b32.xlu0 %v1478, 24
        %v1485 = vpop.permute.xlu0 %1484
        %vm1487 = vcmask 261312
        %1488 = vst.msk [vmem:[#allocation2] sm:$0xff] %vm1487, %v1485
        %v1489 = vld [vmem:[#allocation2] sm:$0xff]
        %v1490 = vpack.c.bf16 %v1489, %v1489
        %v1491 = vlaneseq
        %v1492 = vshrl.u32 %v1491, 7
        %v1493 = vsub.s32 0, %v1492
        %v1494 = vrot.slane %v902, %v1493
        %v1499 = vunpack.c.l.b16 %v896
        %v1500 = vunpack.c.l.b16 %v897
        %v1501 = vunpack.c.l.b16 %v898
        %v1502 = vunpack.c.l.b16 %v899
        %v1503 = vpack.c.b16 %v1500, %v1499
        %v1504 = vpack.c.b16 %v1502, %v1501
        %v1508 = vsel %vm919, %v1490, 0
        %1510 = vmatprep.subr.bf16.mxu0 0
        %1511 = vmatpush1.bf16.msra.mxu0 %v1503
        %1512 = vmatprep.subr.bf16.mxu0 0
        %1513 = vmatpush1.bf16.msra.mxu0 %v1504
        %1514 = vmatprep.subr.bf16.mxu0 0
        %1515 = vmatpush1.bf16.msra.mxu0 0
        %1516 = vmatprep.subr.bf16.mxu0 0
        %1517 = vmatpush1.bf16.msra.mxu0 0
        %1518 = vmatprep.subr.bf16.mxu0 0
        %1519 = vmatpush1.bf16.msra.mxu0 0
        %1520 = vmatprep.subr.bf16.mxu0 0
        %1521 = vmatpush1.bf16.msra.mxu0 0
        %1522 = vmatprep.subr.bf16.mxu0 0
        %1523 = vmatpush1.bf16.msra.mxu0 0
        %1524 = vmatprep.subr.bf16.mxu0 0
        %1525 = vmatpush1.bf16.msra.mxu0 0
        %1526 = vmatprep.subr.bf16.mxu0 0
        %1527 = vmatpush1.bf16.msra.mxu0 0
        %1528 = vmatprep.subr.bf16.mxu0 0
        %1529 = vmatpush1.bf16.msra.mxu0 0
        %1530 = vmatprep.subr.bf16.mxu0 0
        %1531 = vmatpush1.bf16.msra.mxu0 0
        %1532 = vmatprep.subr.bf16.mxu0 0
        %1533 = vmatpush1.bf16.msra.mxu0 0
        %1534 = vmatprep.subr.bf16.mxu0 0
        %1535 = vmatpush1.bf16.msra.mxu0 0
        %1536 = vmatprep.subr.bf16.mxu0 0
        %1537 = vmatpush1.bf16.msra.mxu0 0
        %1538 = vmatprep.subr.bf16.mxu0 0
        %1539 = vmatpush1.bf16.msra.mxu0 0
        %1540 = vmatprep.subr.bf16.mxu0 0
        %1541 = vmatpush1.bf16.msra.mxu0 0
        %1542 = vmatprep.mubr.bf16.mxu0 0
        %1543 = vmatmul.mubr.bf16.gmra.mrb[0].mxu0 %v1508
        %v1544 = vpop.f32.mrb[0].mxu0
        %v1545 = vadd.f32 %v1494, %v1544
        %v1546 = vpop.f32.mrb[0].mxu0
        %v1547 = vpop.f32.mrb[0].mxu0
        %v1548 = vpop.f32.mrb[0].mxu0
        %1549 = vdwg.mxu0
        %v1550 = vadd.f32 %v881, %v1545
        %v1551 = vld [vmem:[#allocation11] sm:$0x1]
        %v1552 = vld [vmem:[#allocation12] sm:$0x1]
        %v1553 = vsel %vm919, %v1550, 0.0
        %1554 = vadd.xlane.f32.xlu0 %v1553
        %v1555 = vpop.xlane.xlu0 %1554
        %v1556 = vrcp.pop 32.0
        %v1557 = vmul.f32 %v1555, %v1556
        %v1558 = vmul.f32 %v1550, %v1550
        %v1559 = vsel %vm919, %v1558, 0.0
        %1560 = vadd.xlane.f32.xlu0 %v1559
        %v1561 = vpop.xlane.xlu0 %1560
        %v1562 = vmul.f32 %v1561, %v1556
        %v1563 = vmul.f32 %v1557, %v1557
        %v1564 = vsub.f32 %v1562, %v1563
        %v1565 = vsub.f32 %v1550, %v1557
        %v1566 = vadd.f32 %v1564, 1e-05
        %v1567 = vrsqrt.pop %v1566
        %v1568 = vmul.f32 %v1565, %v1567
        %v1569 = vlaneseq
        %v1570 = vshrl.u32 %v1569, 7
        %v1571 = vsub.s32 0, %v1570
        %v1572 = vrot.slane %v1551, %v1571
        %v1573 = vmul.f32 %v1568, %v1572
        %v1574 = vlaneseq
        %v1575 = vshrl.u32 %v1574, 7
        %v1576 = vsub.s32 0, %v1575
        %v1577 = vrot.slane %v1552, %v1576
        %v1578 = vadd.f32 %v1573, %v1577
        %v1579 = vpack.c.bf16 %v1578, %v1578
        %s1580 = scalar_lea.vmem [#allocation14], 16
        %v1581 = vld [vmem:[%s1580] sm:$0xf]
        %v1582 = vld [vmem:[%s1580 + $0x4] sm:$0xf]
        %v1583 = vld [vmem:[%s1580 + $0x8] sm:$0xf]
        %v1584 = vld [vmem:[%s1580 + $0xc] sm:$0xf]
        %s1585 = scalar_lea.vmem [#allocation17], 16
        %v1586 = vld [vmem:[%s1585] sm:$0xf]
        %v1587 = vld [vmem:[%s1585 + $0x4] sm:$0xf]
        %v1588 = vld [vmem:[%s1585 + $0x8] sm:$0xf]
        %v1589 = vld [vmem:[%s1585 + $0xc] sm:$0xf]
        %s1590 = scalar_lea.vmem [#allocation20], 16
        %v1591 = vld [vmem:[%s1590] sm:$0xf]
        %v1592 = vld [vmem:[%s1590 + $0x4] sm:$0xf]
        %v1593 = vld [vmem:[%s1590 + $0x8] sm:$0xf]
        %v1594 = vld [vmem:[%s1590 + $0xc] sm:$0xf]
        %v1595 = vld [vmem:[#allocation15 + $0x1] sm:$0x1]
        %v1596 = vld [vmem:[#allocation18 + $0x1] sm:$0x1]
        %v1597 = vld [vmem:[#allocation21 + $0x1] sm:$0x1]
        %v1598 = vlaneseq
        %v1599 = vshrl.u32 %v1598, 7
        %v1600 = vsub.s32 0, %v1599
        %v1601 = vrot.slane %v1595, %v1600
        %v1606 = vunpack.c.l.b16 %v1581
        %v1607 = vunpack.c.l.b16 %v1582
        %v1608 = vunpack.c.l.b16 %v1583
        %v1609 = vunpack.c.l.b16 %v1584
        %v1610 = vpack.c.b16 %v1607, %v1606
        %v1611 = vpack.c.b16 %v1609, %v1608
        %v1615 = vsel %vm919, %v1579, 0
        %1617 = vmatprep.subr.bf16.mxu0 0
        %1618 = vmatpush1.bf16.msra.mxu0 %v1610
        %1619 = vmatprep.subr.bf16.mxu0 0
        %1620 = vmatpush1.bf16.msra.mxu0 %v1611
        %1621 = vmatprep.subr.bf16.mxu0 0
        %1622 = vmatpush1.bf16.msra.mxu0 0
        %1623 = vmatprep.subr.bf16.mxu0 0
        %1624 = vmatpush1.bf16.msra.mxu0 0
        %1625 = vmatprep.subr.bf16.mxu0 0
        %1626 = vmatpush1.bf16.msra.mxu0 0
        %1627 = vmatprep.subr.bf16.mxu0 0
        %1628 = vmatpush1.bf16.msra.mxu0 0
        %1629 = vmatprep.subr.bf16.mxu0 0
        %1630 = vmatpush1.bf16.msra.mxu0 0
        %1631 = vmatprep.subr.bf16.mxu0 0
        %1632 = vmatpush1.bf16.msra.mxu0 0
        %1633 = vmatprep.subr.bf16.mxu0 0
        %1634 = vmatpush1.bf16.msra.mxu0 0
        %1635 = vmatprep.subr.bf16.mxu0 0
        %1636 = vmatpush1.bf16.msra.mxu0 0
        %1637 = vmatprep.subr.bf16.mxu0 0
        %1638 = vmatpush1.bf16.msra.mxu0 0
        %1639 = vmatprep.subr.bf16.mxu0 0
        %1640 = vmatpush1.bf16.msra.mxu0 0
        %1641 = vmatprep.subr.bf16.mxu0 0
        %1642 = vmatpush1.bf16.msra.mxu0 0
        %1643 = vmatprep.subr.bf16.mxu0 0
        %1644 = vmatpush1.bf16.msra.mxu0 0
        %1645 = vmatprep.subr.bf16.mxu0 0
        %1646 = vmatpush1.bf16.msra.mxu0 0
        %1647 = vmatprep.subr.bf16.mxu0 0
        %1648 = vmatpush1.bf16.msra.mxu0 0
        %1649 = vmatprep.mubr.bf16.mxu0 0
        %1650 = vmatmul.mubr.bf16.gmra.mrb[0].mxu0 %v1615
        %v1651 = vpop.f32.mrb[0].mxu0
        %v1652 = vadd.f32 %v1601, %v1651
        %v1653 = vpop.f32.mrb[0].mxu0
        %v1654 = vpop.f32.mrb[0].mxu0
        %v1655 = vpop.f32.mrb[0].mxu0
        %1656 = vdwg.mxu0
        %v1657 = vlaneseq
        %v1658 = vshrl.u32 %v1657, 7
        %v1659 = vsub.s32 0, %v1658
        %v1660 = vrot.slane %v1596, %v1659
        %v1665 = vunpack.c.l.b16 %v1586
        %v1666 = vunpack.c.l.b16 %v1587
        %v1667 = vunpack.c.l.b16 %v1588
        %v1668 = vunpack.c.l.b16 %v1589
        %v1669 = vpack.c.b16 %v1666, %v1665
        %v1670 = vpack.c.b16 %v1668, %v1667
        %v1674 = vsel %vm919, %v884, 0
        %1676 = vmatprep.subr.bf16.mxu0 0
        %1677 = vmatpush1.bf16.msra.mxu0 %v1669
        %1678 = vmatprep.subr.bf16.mxu0 0
        %1679 = vmatpush1.bf16.msra.mxu0 %v1670
        %1680 = vmatprep.subr.bf16.mxu0 0
        %1681 = vmatpush1.bf16.msra.mxu0 0
        %1682 = vmatprep.subr.bf16.mxu0 0
        %1683 = vmatpush1.bf16.msra.mxu0 0
        %1684 = vmatprep.subr.bf16.mxu0 0
        %1685 = vmatpush1.bf16.msra.mxu0 0
        %1686 = vmatprep.subr.bf16.mxu0 0
        %1687 = vmatpush1.bf16.msra.mxu0 0
        %1688 = vmatprep.subr.bf16.mxu0 0
        %1689 = vmatpush1.bf16.msra.mxu0 0
        %1690 = vmatprep.subr.bf16.mxu0 0
        %1691 = vmatpush1.bf16.msra.mxu0 0
        %1692 = vmatprep.subr.bf16.mxu0 0
        %1693 = vmatpush1.bf16.msra.mxu0 0
        %1694 = vmatprep.subr.bf16.mxu0 0
        %1695 = vmatpush1.bf16.msra.mxu0 0
        %1696 = vmatprep.subr.bf16.mxu0 0
        %1697 = vmatpush1.bf16.msra.mxu0 0
        %1698 = vmatprep.subr.bf16.mxu0 0
        %1699 = vmatpush1.bf16.msra.mxu0 0
        %1700 = vmatprep.subr.bf16.mxu0 0
        %1701 = vmatpush1.bf16.msra.mxu0 0
        %1702 = vmatprep.subr.bf16.mxu0 0
        %1703 = vmatpush1.bf16.msra.mxu0 0
        %1704 = vmatprep.subr.bf16.mxu0 0
        %1705 = vmatpush1.bf16.msra.mxu0 0
        %1706 = vmatprep.subr.bf16.mxu0 0
        %1707 = vmatpush1.bf16.msra.mxu0 0
        %1708 = vmatprep.mubr.bf16.mxu0 0
        %1709 = vmatmul.mubr.bf16.gmra.mrb[0].mxu0 %v1674
        %v1710 = vpop.f32.mrb[0].mxu0
        %v1711 = vadd.f32 %v1660, %v1710
        %v1712 = vpop.f32.mrb[0].mxu0
        %v1713 = vpop.f32.mrb[0].mxu0
        %v1714 = vadd.f32 %v1660, %v1713
        %v1715 = vpop.f32.mrb[0].mxu0
        %1716 = vdwg.mxu0
        %v1717 = vpack.c.bf16 %v1652, %v1652
        %v1718 = vpack.c.bf16 %v1714, %v1711
        %vm1719 = vcmp.gt.f32.partialorder %v886, 0.5
        %v1720 = vsel %vm1719, -1e+09, 0.0
        %v1722 = vsel %vm1023, %v1717, 0
        %v1725 = vsel %vm1023, %v1718, 0
        %1727 = vmatprep.subr.bf16.mxu0 0
        %1728 = vmatpush1.bf16.xpose.msra.mxu0 %v1725
        %1729 = vmatprep.subr.bf16.mxu0 0
        %1730 = vmatpush1.bf16.xpose.msra.mxu0 0
        %1731 = vmatprep.subr.bf16.mxu0 0
        %1732 = vmatpush1.bf16.xpose.msra.mxu0 0
        %1733 = vmatprep.subr.bf16.mxu0 0
        %1734 = vmatpush1.bf16.xpose.msra.mxu0 0
        %1735 = vmatprep.subr.bf16.mxu0 0
        %1736 = vmatpush1.bf16.xpose.msra.mxu0 0
        %1737 = vmatprep.subr.bf16.mxu0 0
        %1738 = vmatpush1.bf16.xpose.msra.mxu0 0
        %1739 = vmatprep.subr.bf16.mxu0 0
        %1740 = vmatpush1.bf16.xpose.msra.mxu0 0
        %1741 = vmatprep.subr.bf16.mxu0 0
        %1742 = vmatpush1.bf16.xpose.msra.mxu0 0
        %1743 = vmatprep.subr.bf16.mxu0 0
        %1744 = vmatpush1.bf16.xpose.msra.mxu0 0
        %1745 = vmatprep.subr.bf16.mxu0 0
        %1746 = vmatpush1.bf16.xpose.msra.mxu0 0
        %1747 = vmatprep.subr.bf16.mxu0 0
        %1748 = vmatpush1.bf16.xpose.msra.mxu0 0
        %1749 = vmatprep.subr.bf16.mxu0 0
        %1750 = vmatpush1.bf16.xpose.msra.mxu0 0
        %1751 = vmatprep.subr.bf16.mxu0 0
        %1752 = vmatpush1.bf16.xpose.msra.mxu0 0
        %1753 = vmatprep.subr.bf16.mxu0 0
        %1754 = vmatpush1.bf16.xpose.msra.mxu0 0
        %1755 = vmatprep.subr.bf16.mxu0 0
        %1756 = vmatpush1.bf16.xpose.msra.mxu0 0
        %1757 = vmatprep.subr.bf16.mxu0 0
        %1758 = vmatpush1.bf16.xpose.msra.mxu0 0
        %1759 = vmatprep.mubr.bf16.mxu0 0
        %1760 = vmatmul.mubr.bf16.gmra.mrb[0].mxu0 %v1722
        %v1761 = vpop.f32.mrb[0].mxu0
        %v1762 = vadd.f32 %v1720, %v1761
        %v1763 = vpop.f32.mrb[0].mxu0
        %v1764 = vpop.f32.mrb[0].mxu0
        %v1765 = vpop.f32.mrb[0].mxu0
        %1766 = vdwg.mxu0
        %vm1767 = vcmask 130048
        %v1768 = vsel %vm1767, %v1762, -inf
        %1769 = vmax.xlane.f32.xlu0 %v1768
        %v1770 = vpop.xlane.xlu0 %1769
        %v1771 = vsub.f32 %v1762, %v1770
        %v1772 = vmul.f32 %v1771, 1.442695
        %v1773 = vpow.pop %v1772
        %v1774 = vsel %vm1767, %v1773, 0.0
        %1775 = vadd.xlane.f32.xlu0 %v1774
        %v1776 = vpop.xlane.xlu0 %1775
        %v1777 = vrcp.pop %v1776
        %v1778 = vmul.f32 %v1773, %v1777
        %1779 = vst.msk [vmem:[%s879] sm:$0xff] %vm1767, %v1778
        %v1780 = vpack.c.bf16 %v1778, %v1778
        %1782 = vrot.lane.b32.xlu0 %v1718, 96
        %v1783 = vpop.permute.xlu0 %1782
        %v1786 = vsel %vm1767, %v1780, 0
        %1788 = vmatprep.subr.bf16.mxu0 0
        %1789 = vmatpush1.bf16.msra.mxu0 %v1783
        %1790 = vmatprep.subr.bf16.mxu0 0
        %1791 = vmatpush1.bf16.msra.mxu0 0
        %1792 = vmatprep.subr.bf16.mxu0 0
        %1793 = vmatpush1.bf16.msra.mxu0 0
        %1794 = vmatprep.subr.bf16.mxu0 0
        %1795 = vmatpush1.bf16.msra.mxu0 0
        %1796 = vmatprep.subr.bf16.mxu0 0
        %1797 = vmatpush1.bf16.msra.mxu0 0
        %1798 = vmatprep.subr.bf16.mxu0 0
        %1799 = vmatpush1.bf16.msra.mxu0 0
        %1800 = vmatprep.subr.bf16.mxu0 0
        %1801 = vmatpush1.bf16.msra.mxu0 0
        %1802 = vmatprep.subr.bf16.mxu0 0
        %1803 = vmatpush1.bf16.msra.mxu0 0
        %1804 = vmatprep.subr.bf16.mxu0 0
        %1805 = vmatpush1.bf16.msra.mxu0 0
        %1806 = vmatprep.subr.bf16.mxu0 0
        %1807 = vmatpush1.bf16.msra.mxu0 0
        %1808 = vmatprep.subr.bf16.mxu0 0
        %1809 = vmatpush1.bf16.msra.mxu0 0
        %1810 = vmatprep.subr.bf16.mxu0 0
        %1811 = vmatpush1.bf16.msra.mxu0 0
        %1812 = vmatprep.subr.bf16.mxu0 0
        %1813 = vmatpush1.bf16.msra.mxu0 0
        %1814 = vmatprep.subr.bf16.mxu0 0
        %1815 = vmatpush1.bf16.msra.mxu0 0
        %1816 = vmatprep.subr.bf16.mxu0 0
        %1817 = vmatpush1.bf16.msra.mxu0 0
        %1818 = vmatprep.subr.bf16.mxu0 0
        %1819 = vmatpush1.bf16.msra.mxu0 0
        %1820 = vmatprep.mubr.bf16.mxu0 0
        %1821 = vmatmul.mubr.bf16.gmra.mrb[0].mxu0 %v1786
        %v1822 = vpop.f32.mrb[0].mxu0
        %v1823 = vadd.f32 0.0, %v1822
        %v1824 = vpop.f32.mrb[0].mxu0
        %v1825 = vpop.f32.mrb[0].mxu0
        %v1826 = vpop.f32.mrb[0].mxu0
        %1827 = vdwg.mxu0
        %1828 = vst.msk [vmem:[#allocation2] sm:$0xff] %vm1023, %v1823
        %1830 = vrot.lane.b32.xlu0 %v1717, 120
        %v1831 = vpop.permute.xlu0 %1830
        %1832 = vrot.lane.b32.xlu0 %v1718, 120
        %v1833 = vpop.permute.xlu0 %1832
        %v1835 = vsel %vm1023, %v1831, 0
        %v1838 = vsel %vm1023, %v1833, 0
        %1840 = vmatprep.subr.bf16.mxu0 0
        %1841 = vmatpush1.bf16.xpose.msra.mxu0 %v1838
        %1842 = vmatprep.subr.bf16.mxu0 0
        %1843 = vmatpush1.bf16.xpose.msra.mxu0 0
        %1844 = vmatprep.subr.bf16.mxu0 0
        %1845 = vmatpush1.bf16.xpose.msra.mxu0 0
        %1846 = vmatprep.subr.bf16.mxu0 0
        %1847 = vmatpush1.bf16.xpose.msra.mxu0 0
        %1848 = vmatprep.subr.bf16.mxu0 0
        %1849 = vmatpush1.bf16.xpose.msra.mxu0 0
        %1850 = vmatprep.subr.bf16.mxu0 0
        %1851 = vmatpush1.bf16.xpose.msra.mxu0 0
        %1852 = vmatprep.subr.bf16.mxu0 0
        %1853 = vmatpush1.bf16.xpose.msra.mxu0 0
        %1854 = vmatprep.subr.bf16.mxu0 0
        %1855 = vmatpush1.bf16.xpose.msra.mxu0 0
        %1856 = vmatprep.subr.bf16.mxu0 0
        %1857 = vmatpush1.bf16.xpose.msra.mxu0 0
        %1858 = vmatprep.subr.bf16.mxu0 0
        %1859 = vmatpush1.bf16.xpose.msra.mxu0 0
        %1860 = vmatprep.subr.bf16.mxu0 0
        %1861 = vmatpush1.bf16.xpose.msra.mxu0 0
        %1862 = vmatprep.subr.bf16.mxu0 0
        %1863 = vmatpush1.bf16.xpose.msra.mxu0 0
        %1864 = vmatprep.subr.bf16.mxu0 0
        %1865 = vmatpush1.bf16.xpose.msra.mxu0 0
        %1866 = vmatprep.subr.bf16.mxu0 0
        %1867 = vmatpush1.bf16.xpose.msra.mxu0 0
        %1868 = vmatprep.subr.bf16.mxu0 0
        %1869 = vmatpush1.bf16.xpose.msra.mxu0 0
        %1870 = vmatprep.subr.bf16.mxu0 0
        %1871 = vmatpush1.bf16.xpose.msra.mxu0 0
        %1872 = vmatprep.mubr.bf16.mxu0 0
        %1873 = vmatmul.mubr.bf16.gmra.mrb[0].mxu0 %v1835
        %v1874 = vpop.f32.mrb[0].mxu0
        %v1875 = vadd.f32 %v1720, %v1874
        %v1876 = vpop.f32.mrb[0].mxu0
        %v1877 = vpop.f32.mrb[0].mxu0
        %v1878 = vpop.f32.mrb[0].mxu0
        %1879 = vdwg.mxu0
        %v1880 = vsel %vm1767, %v1875, -inf
        %1881 = vmax.xlane.f32.xlu0 %v1880
        %v1882 = vpop.xlane.xlu0 %1881
        %v1883 = vsub.f32 %v1875, %v1882
        %v1884 = vmul.f32 %v1883, 1.442695
        %v1885 = vpow.pop %v1884
        %v1886 = vsel %vm1767, %v1885, 0.0
        %1887 = vadd.xlane.f32.xlu0 %v1886
        %v1888 = vpop.xlane.xlu0 %1887
        %v1889 = vrcp.pop %v1888
        %v1890 = vmul.f32 %v1885, %v1889
        %s1891 = scalar_lea.vmem %s879, 8 [#allocation32]
        %1892 = vst.msk [vmem:[%s1891] sm:$0xff] %vm1767, %v1890
        %v1893 = vpack.c.bf16 %v1890, %v1890
        %1894 = vrot.lane.b32.xlu0 %v1718, 88
        %v1895 = vpop.permute.xlu0 %1894
        %v1898 = vsel %vm1767, %v1893, 0
        %1900 = vmatprep.subr.bf16.mxu0 0
        %1901 = vmatpush1.bf16.msra.mxu0 %v1895
        %1902 = vmatprep.subr.bf16.mxu0 0
        %1903 = vmatpush1.bf16.msra.mxu0 0
        %1904 = vmatprep.subr.bf16.mxu0 0
        %1905 = vmatpush1.bf16.msra.mxu0 0
        %1906 = vmatprep.subr.bf16.mxu0 0
        %1907 = vmatpush1.bf16.msra.mxu0 0
        %1908 = vmatprep.subr.bf16.mxu0 0
        %1909 = vmatpush1.bf16.msra.mxu0 0
        %1910 = vmatprep.subr.bf16.mxu0 0
        %1911 = vmatpush1.bf16.msra.mxu0 0
        %1912 = vmatprep.subr.bf16.mxu0 0
        %1913 = vmatpush1.bf16.msra.mxu0 0
        %1914 = vmatprep.subr.bf16.mxu0 0
        %1915 = vmatpush1.bf16.msra.mxu0 0
        %1916 = vmatprep.subr.bf16.mxu0 0
        %1917 = vmatpush1.bf16.msra.mxu0 0
        %1918 = vmatprep.subr.bf16.mxu0 0
        %1919 = vmatpush1.bf16.msra.mxu0 0
        %1920 = vmatprep.subr.bf16.mxu0 0
        %1921 = vmatpush1.bf16.msra.mxu0 0
        %1922 = vmatprep.subr.bf16.mxu0 0
        %1923 = vmatpush1.bf16.msra.mxu0 0
        %1924 = vmatprep.subr.bf16.mxu0 0
        %1925 = vmatpush1.bf16.msra.mxu0 0
        %1926 = vmatprep.subr.bf16.mxu0 0
        %1927 = vmatpush1.bf16.msra.mxu0 0
        %1928 = vmatprep.subr.bf16.mxu0 0
        %1929 = vmatpush1.bf16.msra.mxu0 0
        %1930 = vmatprep.subr.bf16.mxu0 0
        %1931 = vmatpush1.bf16.msra.mxu0 0
        %1932 = vmatprep.mubr.bf16.mxu0 0
        %1933 = vmatmul.mubr.bf16.gmra.mrb[0].mxu0 %v1898
        %v1934 = vpop.f32.mrb[0].mxu0
        %v1935 = vadd.f32 0.0, %v1934
        %v1936 = vpop.f32.mrb[0].mxu0
        %v1937 = vpop.f32.mrb[0].mxu0
        %v1938 = vpop.f32.mrb[0].mxu0
        %1939 = vdwg.mxu0
        %1941 = vrot.lane.b32.xlu0 %v1935, 8
        %v1942 = vpop.permute.xlu0 %1941
        %1944 = vst.msk [vmem:[#allocation2] sm:$0xff] %vm1251, %v1942
        %1945 = vrot.lane.b32.xlu0 %v1717, 112
        %v1946 = vpop.permute.xlu0 %1945
        %1947 = vrot.lane.b32.xlu0 %v1718, 112
        %v1948 = vpop.permute.xlu0 %1947
        %v1950 = vsel %vm1023, %v1946, 0
        %v1953 = vsel %vm1023, %v1948, 0
        %1955 = vmatprep.subr.bf16.mxu0 0
        %1956 = vmatpush1.bf16.xpose.msra.mxu0 %v1953
        %1957 = vmatprep.subr.bf16.mxu0 0
        %1958 = vmatpush1.bf16.xpose.msra.mxu0 0
        %1959 = vmatprep.subr.bf16.mxu0 0
        %1960 = vmatpush1.bf16.xpose.msra.mxu0 0
        %1961 = vmatprep.subr.bf16.mxu0 0
        %1962 = vmatpush1.bf16.xpose.msra.mxu0 0
        %1963 = vmatprep.subr.bf16.mxu0 0
        %1964 = vmatpush1.bf16.xpose.msra.mxu0 0
        %1965 = vmatprep.subr.bf16.mxu0 0
        %1966 = vmatpush1.bf16.xpose.msra.mxu0 0
        %1967 = vmatprep.subr.bf16.mxu0 0
        %1968 = vmatpush1.bf16.xpose.msra.mxu0 0
        %1969 = vmatprep.subr.bf16.mxu0 0
        %1970 = vmatpush1.bf16.xpose.msra.mxu0 0
        %1971 = vmatprep.subr.bf16.mxu0 0
        %1972 = vmatpush1.bf16.xpose.msra.mxu0 0
        %1973 = vmatprep.subr.bf16.mxu0 0
        %1974 = vmatpush1.bf16.xpose.msra.mxu0 0
        %1975 = vmatprep.subr.bf16.mxu0 0
        %1976 = vmatpush1.bf16.xpose.msra.mxu0 0
        %1977 = vmatprep.subr.bf16.mxu0 0
        %1978 = vmatpush1.bf16.xpose.msra.mxu0 0
        %1979 = vmatprep.subr.bf16.mxu0 0
        %1980 = vmatpush1.bf16.xpose.msra.mxu0 0
        %1981 = vmatprep.subr.bf16.mxu0 0
        %1982 = vmatpush1.bf16.xpose.msra.mxu0 0
        %1983 = vmatprep.subr.bf16.mxu0 0
        %1984 = vmatpush1.bf16.xpose.msra.mxu0 0
        %1985 = vmatprep.subr.bf16.mxu0 0
        %1986 = vmatpush1.bf16.xpose.msra.mxu0 0
        %1987 = vmatprep.mubr.bf16.mxu0 0
        %1988 = vmatmul.mubr.bf16.gmra.mrb[0].mxu0 %v1950
        %v1989 = vpop.f32.mrb[0].mxu0
        %v1990 = vadd.f32 %v1720, %v1989
        %v1991 = vpop.f32.mrb[0].mxu0
        %v1992 = vpop.f32.mrb[0].mxu0
        %v1993 = vpop.f32.mrb[0].mxu0
        %1994 = vdwg.mxu0
        %v1995 = vsel %vm1767, %v1990, -inf
        %1996 = vmax.xlane.f32.xlu0 %v1995
        %v1997 = vpop.xlane.xlu0 %1996
        %v1998 = vsub.f32 %v1990, %v1997
        %v1999 = vmul.f32 %v1998, 1.442695
        %v2000 = vpow.pop %v1999
        %v2001 = vsel %vm1767, %v2000, 0.0
        %2002 = vadd.xlane.f32.xlu0 %v2001
        %v2003 = vpop.xlane.xlu0 %2002
        %v2004 = vrcp.pop %v2003
        %v2005 = vmul.f32 %v2000, %v2004
        %s2006 = scalar_lea.vmem %s879, 16 [#allocation32]
        %2007 = vst.msk [vmem:[%s2006] sm:$0xff] %vm1767, %v2005
        %v2008 = vpack.c.bf16 %v2005, %v2005
        %2009 = vrot.lane.b32.xlu0 %v1718, 80
        %v2010 = vpop.permute.xlu0 %2009
        %v2013 = vsel %vm1767, %v2008, 0
        %2015 = vmatprep.subr.bf16.mxu0 0
        %2016 = vmatpush1.bf16.msra.mxu0 %v2010
        %2017 = vmatprep.subr.bf16.mxu0 0
        %2018 = vmatpush1.bf16.msra.mxu0 0
        %2019 = vmatprep.subr.bf16.mxu0 0
        %2020 = vmatpush1.bf16.msra.mxu0 0
        %2021 = vmatprep.subr.bf16.mxu0 0
        %2022 = vmatpush1.bf16.msra.mxu0 0
        %2023 = vmatprep.subr.bf16.mxu0 0
        %2024 = vmatpush1.bf16.msra.mxu0 0
        %2025 = vmatprep.subr.bf16.mxu0 0
        %2026 = vmatpush1.bf16.msra.mxu0 0
        %2027 = vmatprep.subr.bf16.mxu0 0
        %2028 = vmatpush1.bf16.msra.mxu0 0
        %2029 = vmatprep.subr.bf16.mxu0 0
        %2030 = vmatpush1.bf16.msra.mxu0 0
        %2031 = vmatprep.subr.bf16.mxu0 0
        %2032 = vmatpush1.bf16.msra.mxu0 0
        %2033 = vmatprep.subr.bf16.mxu0 0
        %2034 = vmatpush1.bf16.msra.mxu0 0
        %2035 = vmatprep.subr.bf16.mxu0 0
        %2036 = vmatpush1.bf16.msra.mxu0 0
        %2037 = vmatprep.subr.bf16.mxu0 0
        %2038 = vmatpush1.bf16.msra.mxu0 0
        %2039 = vmatprep.subr.bf16.mxu0 0
        %2040 = vmatpush1.bf16.msra.mxu0 0
        %2041 = vmatprep.subr.bf16.mxu0 0
        %2042 = vmatpush1.bf16.msra.mxu0 0
        %2043 = vmatprep.subr.bf16.mxu0 0
        %2044 = vmatpush1.bf16.msra.mxu0 0
        %2045 = vmatprep.subr.bf16.mxu0 0
        %2046 = vmatpush1.bf16.msra.mxu0 0
        %2047 = vmatprep.mubr.bf16.mxu0 0
        %2048 = vmatmul.mubr.bf16.gmra.mrb[0].mxu0 %v2013
        %v2049 = vpop.f32.mrb[0].mxu0
        %v2050 = vadd.f32 0.0, %v2049
        %v2051 = vpop.f32.mrb[0].mxu0
        %v2052 = vpop.f32.mrb[0].mxu0
        %v2053 = vpop.f32.mrb[0].mxu0
        %2054 = vdwg.mxu0
        %2056 = vrot.lane.b32.xlu0 %v2050, 16
        %v2057 = vpop.permute.xlu0 %2056
        %2059 = vst.msk [vmem:[#allocation2] sm:$0xff] %vm1369, %v2057
        %2060 = vrot.lane.b32.xlu0 %v1717, 104
        %v2061 = vpop.permute.xlu0 %2060
        %2062 = vrot.lane.b32.xlu0 %v1718, 104
        %v2063 = vpop.permute.xlu0 %2062
        %v2065 = vsel %vm1023, %v2061, 0
        %v2068 = vsel %vm1023, %v2063, 0
        %2070 = vmatprep.subr.bf16.mxu0 0
        %2071 = vmatpush1.bf16.xpose.msra.mxu0 %v2068
        %2072 = vmatprep.subr.bf16.mxu0 0
        %2073 = vmatpush1.bf16.xpose.msra.mxu0 0
        %2074 = vmatprep.subr.bf16.mxu0 0
        %2075 = vmatpush1.bf16.xpose.msra.mxu0 0
        %2076 = vmatprep.subr.bf16.mxu0 0
        %2077 = vmatpush1.bf16.xpose.msra.mxu0 0
        %2078 = vmatprep.subr.bf16.mxu0 0
        %2079 = vmatpush1.bf16.xpose.msra.mxu0 0
        %2080 = vmatprep.subr.bf16.mxu0 0
        %2081 = vmatpush1.bf16.xpose.msra.mxu0 0
        %2082 = vmatprep.subr.bf16.mxu0 0
        %2083 = vmatpush1.bf16.xpose.msra.mxu0 0
        %2084 = vmatprep.subr.bf16.mxu0 0
        %2085 = vmatpush1.bf16.xpose.msra.mxu0 0
        %2086 = vmatprep.subr.bf16.mxu0 0
        %2087 = vmatpush1.bf16.xpose.msra.mxu0 0
        %2088 = vmatprep.subr.bf16.mxu0 0
        %2089 = vmatpush1.bf16.xpose.msra.mxu0 0
        %2090 = vmatprep.subr.bf16.mxu0 0
        %2091 = vmatpush1.bf16.xpose.msra.mxu0 0
        %2092 = vmatprep.subr.bf16.mxu0 0
        %2093 = vmatpush1.bf16.xpose.msra.mxu0 0
        %2094 = vmatprep.subr.bf16.mxu0 0
        %2095 = vmatpush1.bf16.xpose.msra.mxu0 0
        %2096 = vmatprep.subr.bf16.mxu0 0
        %2097 = vmatpush1.bf16.xpose.msra.mxu0 0
        %2098 = vmatprep.subr.bf16.mxu0 0
        %2099 = vmatpush1.bf16.xpose.msra.mxu0 0
        %2100 = vmatprep.subr.bf16.mxu0 0
        %2101 = vmatpush1.bf16.xpose.msra.mxu0 0
        %2102 = vmatprep.mubr.bf16.mxu0 0
        %2103 = vmatmul.mubr.bf16.gmra.mrb[0].mxu0 %v2065
        %v2104 = vpop.f32.mrb[0].mxu0
        %v2105 = vadd.f32 %v1720, %v2104
        %v2106 = vpop.f32.mrb[0].mxu0
        %v2107 = vpop.f32.mrb[0].mxu0
        %v2108 = vpop.f32.mrb[0].mxu0
        %2109 = vdwg.mxu0
        %v2110 = vsel %vm1767, %v2105, -inf
        %2111 = vmax.xlane.f32.xlu0 %v2110
        %v2112 = vpop.xlane.xlu0 %2111
        %v2113 = vsub.f32 %v2105, %v2112
        %v2114 = vmul.f32 %v2113, 1.442695
        %v2115 = vpow.pop %v2114
        %v2116 = vsel %vm1767, %v2115, 0.0
        %2117 = vadd.xlane.f32.xlu0 %v2116
        %v2118 = vpop.xlane.xlu0 %2117
        %v2119 = vrcp.pop %v2118
        %v2120 = vmul.f32 %v2115, %v2119
        %s2121 = scalar_lea.vmem %s879, 24 [#allocation32]
        %2122 = vst.msk [vmem:[%s2121] sm:$0xff] %vm1767, %v2120
        %v2123 = vpack.c.bf16 %v2120, %v2120
        %2124 = vrot.lane.b32.xlu0 %v1718, 72
        %v2125 = vpop.permute.xlu0 %2124
        %v2128 = vsel %vm1767, %v2123, 0
        %2130 = vmatprep.subr.bf16.mxu0 0
        %2131 = vmatpush1.bf16.msra.mxu0 %v2125
        %2132 = vmatprep.subr.bf16.mxu0 0
        %2133 = vmatpush1.bf16.msra.mxu0 0
        %2134 = vmatprep.subr.bf16.mxu0 0
        %2135 = vmatpush1.bf16.msra.mxu0 0
        %2136 = vmatprep.subr.bf16.mxu0 0
        %2137 = vmatpush1.bf16.msra.mxu0 0
        %2138 = vmatprep.subr.bf16.mxu0 0
        %2139 = vmatpush1.bf16.msra.mxu0 0
        %2140 = vmatprep.subr.bf16.mxu0 0
        %2141 = vmatpush1.bf16.msra.mxu0 0
        %2142 = vmatprep.subr.bf16.mxu0 0
        %2143 = vmatpush1.bf16.msra.mxu0 0
        %2144 = vmatprep.subr.bf16.mxu0 0
        %2145 = vmatpush1.bf16.msra.mxu0 0
        %2146 = vmatprep.subr.bf16.mxu0 0
        %2147 = vmatpush1.bf16.msra.mxu0 0
        %2148 = vmatprep.subr.bf16.mxu0 0
        %2149 = vmatpush1.bf16.msra.mxu0 0
        %2150 = vmatprep.subr.bf16.mxu0 0
        %2151 = vmatpush1.bf16.msra.mxu0 0
        %2152 = vmatprep.subr.bf16.mxu0 0
        %2153 = vmatpush1.bf16.msra.mxu0 0
        %2154 = vmatprep.subr.bf16.mxu0 0
        %2155 = vmatpush1.bf16.msra.mxu0 0
        %2156 = vmatprep.subr.bf16.mxu0 0
        %2157 = vmatpush1.bf16.msra.mxu0 0
        %2158 = vmatprep.subr.bf16.mxu0 0
        %2159 = vmatpush1.bf16.msra.mxu0 0
        %2160 = vmatprep.subr.bf16.mxu0 0
        %2161 = vmatpush1.bf16.msra.mxu0 0
        %2162 = vmatprep.mubr.bf16.mxu0 0
        %2163 = vmatmul.mubr.bf16.gmra.mrb[0].mxu0 %v2128
        %v2164 = vpop.f32.mrb[0].mxu0
        %v2165 = vadd.f32 0.0, %v2164
        %v2166 = vpop.f32.mrb[0].mxu0
        %v2167 = vpop.f32.mrb[0].mxu0
        %v2168 = vpop.f32.mrb[0].mxu0
        %2169 = vdwg.mxu0
        %2171 = vrot.lane.b32.xlu0 %v2165, 24
        %v2172 = vpop.permute.xlu0 %2171
        %2174 = vst.msk [vmem:[#allocation2] sm:$0xff] %vm1487, %v2172
        %v2175 = vld [vmem:[#allocation2] sm:$0xff]
        %v2176 = vpack.c.bf16 %v2175, %v2175
        %v2177 = vlaneseq
        %v2178 = vshrl.u32 %v2177, 7
        %v2179 = vsub.s32 0, %v2178
        %v2180 = vrot.slane %v1597, %v2179
        %v2185 = vunpack.c.l.b16 %v1591
        %v2186 = vunpack.c.l.b16 %v1592
        %v2187 = vunpack.c.l.b16 %v1593
        %v2188 = vunpack.c.l.b16 %v1594
        %v2189 = vpack.c.b16 %v2186, %v2185
        %v2190 = vpack.c.b16 %v2188, %v2187
        %v2194 = vsel %vm919, %v2176, 0
        %2196 = vmatprep.subr.bf16.mxu0 0
        %2197 = vmatpush1.bf16.msra.mxu0 %v2189
        %2198 = vmatprep.subr.bf16.mxu0 0
        %2199 = vmatpush1.bf16.msra.mxu0 %v2190
        %2200 = vmatprep.subr.bf16.mxu0 0
        %2201 = vmatpush1.bf16.msra.mxu0 0
        %2202 = vmatprep.subr.bf16.mxu0 0
        %2203 = vmatpush1.bf16.msra.mxu0 0
        %2204 = vmatprep.subr.bf16.mxu0 0
        %2205 = vmatpush1.bf16.msra.mxu0 0
        %2206 = vmatprep.subr.bf16.mxu0 0
        %2207 = vmatpush1.bf16.msra.mxu0 0
        %2208 = vmatprep.subr.bf16.mxu0 0
        %2209 = vmatpush1.bf16.msra.mxu0 0
        %2210 = vmatprep.subr.bf16.mxu0 0
        %2211 = vmatpush1.bf16.msra.mxu0 0
        %2212 = vmatprep.subr.bf16.mxu0 0
        %2213 = vmatpush1.bf16.msra.mxu0 0
        %2214 = vmatprep.subr.bf16.mxu0 0
        %2215 = vmatpush1.bf16.msra.mxu0 0
        %2216 = vmatprep.subr.bf16.mxu0 0
        %2217 = vmatpush1.bf16.msra.mxu0 0
        %2218 = vmatprep.subr.bf16.mxu0 0
        %2219 = vmatpush1.bf16.msra.mxu0 0
        %2220 = vmatprep.subr.bf16.mxu0 0
        %2221 = vmatpush1.bf16.msra.mxu0 0
        %2222 = vmatprep.subr.bf16.mxu0 0
        %2223 = vmatpush1.bf16.msra.mxu0 0
        %2224 = vmatprep.subr.bf16.mxu0 0
        %2225 = vmatpush1.bf16.msra.mxu0 0
        %2226 = vmatprep.subr.bf16.mxu0 0
        %2227 = vmatpush1.bf16.msra.mxu0 0
        %2228 = vmatprep.mubr.bf16.mxu0 0
        %2229 = vmatmul.mubr.bf16.gmra.mrb[0].mxu0 %v2194
        %v2230 = vpop.f32.mrb[0].mxu0
        %v2231 = vadd.f32 %v2180, %v2230
        %v2232 = vpop.f32.mrb[0].mxu0
        %v2233 = vpop.f32.mrb[0].mxu0
        %v2234 = vpop.f32.mrb[0].mxu0
        %2235 = vdwg.mxu0
        %v2236 = vadd.f32 %v1578, %v2231
        %v2237 = vld [vmem:[#allocation11 + $0x1] sm:$0x1]
        %v2238 = vld [vmem:[#allocation12 + $0x1] sm:$0x1]
        %v2239 = vsel %vm919, %v2236, 0.0
        %2240 = vadd.xlane.f32.xlu0 %v2239
        %v2241 = vpop.xlane.xlu0 %2240
        %v2242 = vmul.f32 %v2241, %v1556
        %v2243 = vmul.f32 %v2236, %v2236
        %v2244 = vsel %vm919, %v2243, 0.0
        %2245 = vadd.xlane.f32.xlu0 %v2244
        %v2246 = vpop.xlane.xlu0 %2245
        %v2247 = vmul.f32 %v2246, %v1556
        %v2248 = vmul.f32 %v2242, %v2242
        %v2249 = vsub.f32 %v2247, %v2248
        %v2250 = vsub.f32 %v2236, %v2242
        %v2251 = vadd.f32 %v2249, 1e-05
        %v2252 = vrsqrt.pop %v2251
        %v2253 = vmul.f32 %v2250, %v2252
        %v2254 = vlaneseq
        %v2255 = vshrl.u32 %v2254, 7
        %v2256 = vsub.s32 0, %v2255
        %v2257 = vrot.slane %v2237, %v2256
        %v2258 = vmul.f32 %v2253, %v2257
        %v2259 = vlaneseq
        %v2260 = vshrl.u32 %v2259, 7
        %v2261 = vsub.s32 0, %v2260
        %v2262 = vrot.slane %v2238, %v2261
        %v2263 = vadd.f32 %v2258, %v2262
        %v2264 = vpack.c.bf16 %v2263, %v2263
        %v2265 = vld [vmem:[#allocation23] sm:$0xf]
        %v2266 = vld [vmem:[#allocation23 + $0x4] sm:$0xf]
        %v2267 = vld [vmem:[#allocation23 + $0x8] sm:$0xf]
        %v2268 = vld [vmem:[#allocation23 + $0xc] sm:$0xf]
        %v2269 = vld [vmem:[#allocation24] sm:$0x1]
        %v2271 = vlaneseq
        %v2272 = vshrl.u32 %v2271, 7
        %v2273 = vsub.s32 0, %v2272
        %v2274 = vrot.slane %v2269, %v2273
        %v2280 = vunpack.c.l.b16 %v2265
        %v2281 = vunpack.c.l.b16 %v2266
        %v2282 = vunpack.c.l.b16 %v2267
        %v2283 = vunpack.c.l.b16 %v2268
        %v2284 = vpack.c.b16 %v2281, %v2280
        %v2285 = vpack.c.b16 %v2283, %v2282
        %v2289 = vsel %vm919, %v2264, 0
        %2291 = vmatprep.subr.bf16.mxu0 0
        %2292 = vmatpush1.bf16.msra.mxu0 %v2284
        %2293 = vmatprep.subr.bf16.mxu0 0
        %2294 = vmatpush1.bf16.msra.mxu0 %v2285
        %2295 = vmatprep.subr.bf16.mxu0 0
        %2296 = vmatpush1.bf16.msra.mxu0 0
        %2297 = vmatprep.subr.bf16.mxu0 0
        %2298 = vmatpush1.bf16.msra.mxu0 0
        %2299 = vmatprep.subr.bf16.mxu0 0
        %2300 = vmatpush1.bf16.msra.mxu0 0
        %2301 = vmatprep.subr.bf16.mxu0 0
        %2302 = vmatpush1.bf16.msra.mxu0 0
        %2303 = vmatprep.subr.bf16.mxu0 0
        %2304 = vmatpush1.bf16.msra.mxu0 0
        %2305 = vmatprep.subr.bf16.mxu0 0
        %2306 = vmatpush1.bf16.msra.mxu0 0
        %2307 = vmatprep.subr.bf16.mxu0 0
        %2308 = vmatpush1.bf16.msra.mxu0 0
        %2309 = vmatprep.subr.bf16.mxu0 0
        %2310 = vmatpush1.bf16.msra.mxu0 0
        %2311 = vmatprep.subr.bf16.mxu0 0
        %2312 = vmatpush1.bf16.msra.mxu0 0
        %2313 = vmatprep.subr.bf16.mxu0 0
        %2314 = vmatpush1.bf16.msra.mxu0 0
        %2315 = vmatprep.subr.bf16.mxu0 0
        %2316 = vmatpush1.bf16.msra.mxu0 0
        %2317 = vmatprep.subr.bf16.mxu0 0
        %2318 = vmatpush1.bf16.msra.mxu0 0
        %2319 = vmatprep.subr.bf16.mxu0 0
        %2320 = vmatpush1.bf16.msra.mxu0 0
        %2321 = vmatprep.subr.bf16.mxu0 0
        %2322 = vmatpush1.bf16.msra.mxu0 0
        %2323 = vmatprep.mubr.bf16.mxu0 0
        %2324 = vmatmul.mubr.bf16.gmra.mrb[0].mxu0 %v2289
        %v2325 = vpop.f32.mrb[0].mxu0
        %v2326 = vadd.f32 %v2274, %v2325
        %v2327 = vpop.f32.mrb[0].mxu0
        %v2328 = vpop.f32.mrb[0].mxu0
        %v2329 = vpop.f32.mrb[0].mxu0
        %2330 = vdwg.mxu0
        %v2331 = vmax.f32 %v2326, 0.0
        %v2332 = vpack.c.bf16 %v2331, %v2331
        %v2333 = vld [vmem:[#allocation26] sm:$0xf]
        %v2334 = vld [vmem:[#allocation26 + $0x4] sm:$0xf]
        %v2335 = vld [vmem:[#allocation26 + $0x8] sm:$0xf]
        %v2336 = vld [vmem:[#allocation26 + $0xc] sm:$0xf]
        %v2337 = vld [vmem:[#allocation26 + $0x10] sm:$0xf]
        %v2338 = vld [vmem:[#allocation26 + $0x14] sm:$0xf]
        %v2339 = vld [vmem:[#allocation26 + $0x18] sm:$0xf]
        %v2340 = vld [vmem:[#allocation26 + $0x1c] sm:$0xf]
        %v2341 = vld [vmem:[#allocation27] sm:$0x1]
        %v2343 = vlaneseq
        %v2344 = vshrl.u32 %v2343, 7
        %v2345 = vsub.s32 0, %v2344
        %v2346 = vrot.slane %v2341, %v2345
        %v2356 = vunpack.c.l.b16 %v2333
        %v2357 = vunpack.c.l.b16 %v2334
        %v2358 = vunpack.c.l.b16 %v2335
        %v2359 = vunpack.c.l.b16 %v2336
        %v2360 = vunpack.c.l.b16 %v2337
        %v2361 = vunpack.c.l.b16 %v2338
        %v2362 = vunpack.c.l.b16 %v2339
        %v2363 = vunpack.c.l.b16 %v2340
        %v2364 = vpack.c.b16 %v2357, %v2356
        %v2365 = vpack.c.b16 %v2359, %v2358
        %v2366 = vpack.c.b16 %v2361, %v2360
        %v2367 = vpack.c.b16 %v2363, %v2362
        %vm2372 = vcmask 523264
        %v2374 = vsel %vm2372, %v2332, 0
        %2376 = vmatprep.subr.bf16.mxu0 0
        %2377 = vmatpush1.bf16.msra.mxu0 %v2364
        %2378 = vmatprep.subr.bf16.mxu0 0
        %2379 = vmatpush1.bf16.msra.mxu0 %v2365
        %2380 = vmatprep.subr.bf16.mxu0 0
        %2381 = vmatpush1.bf16.msra.mxu0 %v2366
        %2382 = vmatprep.subr.bf16.mxu0 0
        %2383 = vmatpush1.bf16.msra.mxu0 %v2367
        %2384 = vmatprep.subr.bf16.mxu0 0
        %2385 = vmatpush1.bf16.msra.mxu0 0
        %2386 = vmatprep.subr.bf16.mxu0 0
        %2387 = vmatpush1.bf16.msra.mxu0 0
        %2388 = vmatprep.subr.bf16.mxu0 0
        %2389 = vmatpush1.bf16.msra.mxu0 0
        %2390 = vmatprep.subr.bf16.mxu0 0
        %2391 = vmatpush1.bf16.msra.mxu0 0
        %2392 = vmatprep.subr.bf16.mxu0 0
        %2393 = vmatpush1.bf16.msra.mxu0 0
        %2394 = vmatprep.subr.bf16.mxu0 0
        %2395 = vmatpush1.bf16.msra.mxu0 0
        %2396 = vmatprep.subr.bf16.mxu0 0
        %2397 = vmatpush1.bf16.msra.mxu0 0
        %2398 = vmatprep.subr.bf16.mxu0 0
        %2399 = vmatpush1.bf16.msra.mxu0 0
        %2400 = vmatprep.subr.bf16.mxu0 0
        %2401 = vmatpush1.bf16.msra.mxu0 0
        %2402 = vmatprep.subr.bf16.mxu0 0
        %2403 = vmatpush1.bf16.msra.mxu0 0
        %2404 = vmatprep.subr.bf16.mxu0 0
        %2405 = vmatpush1.bf16.msra.mxu0 0
        %2406 = vmatprep.subr.bf16.mxu0 0
        %2407 = vmatpush1.bf16.msra.mxu0 0
        %2408 = vmatprep.mubr.bf16.mxu0 0
        %2409 = vmatmul.mubr.bf16.gmra.mrb[0].mxu0 %v2374
        %v2410 = vpop.f32.mrb[0].mxu0
        %v2411 = vadd.f32 %v2346, %v2410
        %v2412 = vpop.f32.mrb[0].mxu0
        %v2413 = vpop.f32.mrb[0].mxu0
        %v2414 = vpop.f32.mrb[0].mxu0
        %2415 = vdwg.mxu0
        %v2416 = vadd.f32 %v2263, %v2411
        %v2417 = vsel %vm919, %v2416, 0.0
        %2418 = vadd.xlane.f32.xlu0 %v2417
        %v2419 = vpop.xlane.xlu0 %2418
        %v2420 = vmul.f32 %v2419, %v1556
        %v2421 = vmul.f32 %v2416, %v2416
        %v2422 = vsel %vm919, %v2421, 0.0
        %2423 = vadd.xlane.f32.xlu0 %v2422
        %v2424 = vpop.xlane.xlu0 %2423
        %v2425 = vmul.f32 %v2424, %v1556
        %v2426 = vmul.f32 %v2420, %v2420
        %v2427 = vsub.f32 %v2425, %v2426
        %v2428 = vsub.f32 %v2416, %v2420
        %v2429 = vadd.f32 %v2427, 1e-05
        %v2430 = vrsqrt.pop %v2429
        %v2431 = vmul.f32 %v2428, %v2430
        %v2432 = vmul.f32 %v2431, %v2257
        %v2433 = vadd.f32 %v2432, %v2262
        %2434 = vst.msk [vmem:[%s865] sm:$0xff] %vm919, %v2433
        %s2435 = sand.u32 %s415, 1
        %s2436 = scalar_lea.sflag [#allocation5], %s2435
        %s2437 = sand.u32 %s415, 1
        %s2438 = smul.addr %s2437, 8
        %s2439 = scalar_lea.vmem [#allocation29], %s2438
        %s2440 = sand.u32 %s51, 1
        %s2441 = scalar_lea.sflag [#allocation31], %s2440
        %s2442 = sand.u32 %s441, 1
        %s2443 = smul.addr %s2442, 32
        %s2444 = scalar_lea.vmem [#allocation30], %s2443
        %s2445 = sand.u32 %s51, 1
        %s2446 = scalar_lea.sflag [#allocation31], %s2445
        %s2447 = sand.u32 %s467, 1
        %s2448 = smul.addr %s2447, 32
        %s2449 = scalar_lea.vmem [#allocation32], %s2448
        // Predicated region
        $region149: #{tpu_custom_call.1} parent=83 // pred_check
          %p2450 = pneg %p425
        $region150: #{tpu_custom_call.1} parent=83 // pred_check_branch
          %2452 = sbr.rel (%p2450) target = $region152
        $region151: #{tpu_custom_call.1} parent=83 // pred_region
          %s2454 = ssub.s32 128, 128
          %2455 = vsyncadd %s2436, %s2454
          %s2456 = smul.addr %s51, 128
          %s2457 = scalar_lea.hbm %s16, %s2456
          %s2459 = sshll.u32 %s2439, 4
          %s2460 = int_to_ptr.vmem [resolvable:$true] %s2459
          %2462 = dma.vmem_to_hbm [thread:$0]  %s2460, 128, %s2457, %s2436
        $region152: #{tpu_custom_call.1} parent=83 // pred_fallthru
          _
        // Predicated region
        $region153: #{tpu_custom_call.1} parent=83 // pred_check
          %p2463 = pneg %p451
        $region154: #{tpu_custom_call.1} parent=83 // pred_check_branch
          %2465 = sbr.rel (%p2463) target = $region156
        $region155: #{tpu_custom_call.1} parent=83 // pred_region
          %s2467 = ssub.s32 512, 512
          %2468 = vsyncadd %s2441, %s2467
          %s2469 = smul.addr %s51, 4
          %s2470 = smul.addr %s2469, 128
          %s2471 = scalar_lea.hbm %s17, %s2470
          %s2472 = sshll.u32 %s2444, 4
          %s2473 = int_to_ptr.vmem [resolvable:$true] %s2472
          %2478 = dma.vmem_to_hbm [thread:$0]  %s2473, 512, %s2471, %s2441, 128, 128, 8
        $region156: #{tpu_custom_call.1} parent=83 // pred_fallthru
          _
        // Predicated region
        $region157: #{tpu_custom_call.1} parent=83 // pred_check
          %p2479 = pneg %p477
        $region158: #{tpu_custom_call.1} parent=83 // pred_check_branch
          %2481 = sbr.rel (%p2479) target = $region160
        $region159: #{tpu_custom_call.1} parent=83 // pred_region
          %s2483 = ssub.s32 512, 512
          %2484 = vsyncadd %s2446, %s2483
          %s2485 = smul.addr %s51, 4
          %s2486 = smul.addr %s2485, 128
          %s2487 = scalar_lea.hbm %s18, %s2486
          %s2488 = sshll.u32 %s2449, 4
          %s2489 = int_to_ptr.vmem [resolvable:$true] %s2488
          %2494 = dma.vmem_to_hbm [thread:$0]  %s2489, 512, %s2487, %s2446, 128, 128, 8
        $region160: #{tpu_custom_call.1} parent=83 // pred_fallthru
          _
      $region84: #{tpu_custom_call.1} parent=5 // pred_fallthru
        _
      %p2495 = scmp.le.s32.totalorder 2, %s46
      // Predicated region
      $region161: #{tpu_custom_call.1} parent=5 // pred_check
        %p2496 = pneg %p2495
      $region162: #{tpu_custom_call.1} parent=5 // pred_check_branch
        %2498 = sbr.rel (%p2496) target = $region164
      $region163: #{tpu_custom_call.1} parent=5 // pred_region
        %s2499 = ssub.s32 %s46, 2
        // Predicated region
        $region165: #{tpu_custom_call.1} parent=163 // pred_check
          %p2500 = pneg %p431
        $region166: #{tpu_custom_call.1} parent=163 // pred_check_branch
          %2502 = sbr.rel (%p2500) target = $region168
        $region167: #{tpu_custom_call.1} parent=163 // pred_region
          %s2503 = sand.u32 %s416, 1
          %s2504 = scalar_lea.sflag [#allocation5], %s2503
          %s2505 = sand.u32 %s416, 1
          %s2506 = smul.addr %s2505, 8
          %s2507 = scalar_lea.vmem [#allocation29], %s2506
          %2508 = dma.done %s2504, 128
        $region168: #{tpu_custom_call.1} parent=163 // pred_fallthru
          _
        // Predicated region
        $region169: #{tpu_custom_call.1} parent=163 // pred_check
          %p2509 = pneg %p457
        $region170: #{tpu_custom_call.1} parent=163 // pred_check_branch
          %2511 = sbr.rel (%p2509) target = $region172
        $region171: #{tpu_custom_call.1} parent=163 // pred_region
          %s2512 = sand.u32 %s52, 1
          %s2513 = scalar_lea.sflag [#allocation31], %s2512
          %s2514 = sand.u32 %s442, 1
          %s2515 = smul.addr %s2514, 32
          %s2516 = scalar_lea.vmem [#allocation30], %s2515
          %2517 = dma.done %s2513, 512
        $region172: #{tpu_custom_call.1} parent=163 // pred_fallthru
          _
        // Predicated region
        $region173: #{tpu_custom_call.1} parent=163 // pred_check
          %p2518 = pneg %p483
        $region174: #{tpu_custom_call.1} parent=163 // pred_check_branch
          %2520 = sbr.rel (%p2518) target = $region176
        $region175: #{tpu_custom_call.1} parent=163 // pred_region
          %s2521 = sand.u32 %s52, 1
          %s2522 = scalar_lea.sflag [#allocation31], %s2521
          %s2523 = sand.u32 %s468, 1
          %s2524 = smul.addr %s2523, 32
          %s2525 = scalar_lea.vmem [#allocation32], %s2524
          %2526 = dma.done %s2522, 512
        $region176: #{tpu_custom_call.1} parent=163 // pred_fallthru
          _
      $region164: #{tpu_custom_call.1} parent=5 // pred_fallthru
        _
    $region6: #{tpu_custom_call.1} parent=1 // loop_footer
      %s50 = sadd.s32 1, %s46
    $region7: #{tpu_custom_call.1} parent=1 // loop_footer_branch
      %45 = sbr.rel target = $region3
    $region8: #{tpu_custom_call.1} parent=1 // loop_exit
      _
    %2527 = vsyncpa [#allocation4], 1
    %s2528 = scalar_lea.sflag [#allocation4], 1
    %2529 = vsyncpa %s2528, 1
    %2530 = vsyncpa [#allocation7], 1
    %s2531 = scalar_lea.sflag [#allocation7], 1
    %2532 = vsyncpa %s2531, 1
    %2533 = vsyncpa [#allocation10], 1
    %s2534 = scalar_lea.sflag [#allocation10], 1
    %2535 = vsyncpa %s2534, 1
    %2536 = vsyncpa [#allocation13], 1
    %2537 = vsyncpa [#allocation16], 1
    %2538 = vsyncpa [#allocation19], 1
    %2539 = vsyncpa [#allocation22], 1
    %2540 = vsyncpa [#allocation25], 1
    %2541 = vsyncpa [#allocation28], 1
    %2542 = vsyncpa [#allocation5], 1
    %s2543 = scalar_lea.sflag [#allocation5], 1
    %2544 = vsyncpa %s2543, 1
    %2545 = vsyncpa [#allocation31], 1
    %s2546 = scalar_lea.sflag [#allocation31], 1
    %2547 = vsyncpa %s2546, 1

</llo_original>
